<compile_context>
chip_gen: v7x
topology: tpu7x:2x2x1
jax: 0.10.0
libtpu: 0.0.40
codegen_flags: <defaults>
</compile_context>

<pallas_src>
import functools

import jax
import jax.numpy as jnp
import numpy as np
from jax import lax
from jax.experimental import pallas as pl
from jax.experimental.pallas import tpu as pltpu

EPS = 1e-5  # PyTorch BatchNorm2d default eps


# --------------------------- compiler parameters ---------------------------

def _vmem_limit_bytes():
  # Budget the scoped VMEM limit per generation (v7x only has 64 MiB physical).
  try:
    cap = pltpu.get_tpu_info().vmem_capacity_bytes
  except Exception:  # older jax / query unavailable
    cap = 64 * 1024 * 1024
  return int(min(64 * 1024 * 1024, (cap * 3) // 4))


VMEM_LIMIT = _vmem_limit_bytes()


def _cparams(parallel):
  return pltpu.CompilerParams(
      dimension_semantics=("parallel" if parallel else "arbitrary",),
      vmem_limit_bytes=VMEM_LIMIT)


# ------------------------------ Pallas kernels ------------------------------

def _channel_sums_kernel(x_ref, st_ref, acc_s, acc_ss):
  """Accumulate per-lane sum / sum-of-squares across the row grid (BN stats)."""
  @pl.when(pl.program_id(0) == 0)
  def _init():
    acc_s[...] = jnp.zeros_like(acc_s)
    acc_ss[...] = jnp.zeros_like(acc_ss)

  x = x_ref[...]
  acc_s[...] += jnp.sum(x, axis=0, keepdims=True)
  acc_ss[...] += jnp.sum(x * x, axis=0, keepdims=True)

  @pl.when(pl.program_id(0) == pl.num_programs(0) - 1)
  def _done():
    st_ref[0:1, :] = acc_s[...]
    st_ref[1:2, :] = acc_ss[...]


def _bn_relu_mm_stats_kernel(x_ref, scale_ref, shift_ref, w_ref,
                             h_ref, st_ref, acc_s, acc_ss,
                             *, true_rows, block_rows):
  """h = ReLU(x*scale + shift) @ w ; accumulate sum/sumsq of h for the next BN."""
  @pl.when(pl.program_id(0) == 0)
  def _init():
    acc_s[...] = jnp.zeros_like(acc_s)
    acc_ss[...] = jnp.zeros_like(acc_ss)

  a = jnp.maximum(x_ref[...] * scale_ref[...] + shift_ref[...], 0.0)
  h = jnp.dot(a, w_ref[...], preferred_element_type=jnp.float32)
  # Zero out rows past the true row count (row padding) so the accumulated
  # batch statistics stay exact.
  rid = (pl.program_id(0) * block_rows
         + lax.broadcasted_iota(jnp.int32, (block_rows, 1), 0))
  h = jnp.where(rid < true_rows, h, 0.0)
  h_ref[...] = h
  acc_s[...] += jnp.sum(h, axis=0, keepdims=True)
  acc_ss[...] += jnp.sum(h * h, axis=0, keepdims=True)

  @pl.when(pl.program_id(0) == pl.num_programs(0) - 1)
  def _done():
    st_ref[0:1, :] = acc_s[...]
    st_ref[1:2, :] = acc_ss[...]


def _mm_stats_kernel(p_ref, w_ref, h_ref, st_ref, acc_s, acc_ss):
  """h = p @ w (parity-packed conv-transpose); accumulate sum/sumsq of h."""
  @pl.when(pl.program_id(0) == 0)
  def _init():
    acc_s[...] = jnp.zeros_like(acc_s)
    acc_ss[...] = jnp.zeros_like(acc_ss)

  h = jnp.dot(p_ref[...], w_ref[...], preferred_element_type=jnp.float32)
  h_ref[...] = h
  acc_s[...] += jnp.sum(h, axis=0, keepdims=True)
  acc_ss[...] += jnp.sum(h * h, axis=0, keepdims=True)

  @pl.when(pl.program_id(0) == pl.num_programs(0) - 1)
  def _done():
    st_ref[0:1, :] = acc_s[...]
    st_ref[1:2, :] = acc_ss[...]


def _affine_relu_kernel(x_ref, scale_ref, shift_ref, o_ref):
  o_ref[...] = jnp.maximum(x_ref[...] * scale_ref[...] + shift_ref[...], 0.0)


def _final_kernel(h_ref, p_ref, scale_ref, shift_ref, w3_ref, wsc_ref, o_ref):
  """out = ReLU(h*scale+shift) @ w3_packed + shortcut_patches @ wsc_packed."""
  a = jnp.maximum(h_ref[...] * scale_ref[...] + shift_ref[...], 0.0)
  o_ref[...] = (
      jnp.dot(a, w3_ref[...], preferred_element_type=jnp.float32)
      + jnp.dot(p_ref[...], wsc_ref[...], preferred_element_type=jnp.float32))


# ------------------------------ pallas_call wrappers ------------------------

def _row_spec(tr, c):
  return pl.BlockSpec((tr, c), lambda i: (i, 0))


def _rep_spec(shape):
  return pl.BlockSpec(shape, lambda i: (0, 0))


def channel_sums(x2d, tr):
  rp, c = x2d.shape
  return pl.pallas_call(
      _channel_sums_kernel,
      out_shape=jax.ShapeDtypeStruct((2, c), jnp.float32),
      grid=(rp // tr,),
      in_specs=[_row_spec(tr, c)],
      out_specs=_rep_spec((2, c)),
      scratch_shapes=[pltpu.VMEM((1, c), jnp.float32),
                      pltpu.VMEM((1, c), jnp.float32)],
      compiler_params=_cparams(parallel=False),
      cost_estimate=pl.CostEstimate(flops=2 * rp * c, transcendentals=0,
                                    bytes_accessed=4 * rp * c),
  )(x2d)


def bn_relu_mm_stats(x2d, scale, shift, w, tr, true_rows):
  rp, k = x2d.shape
  n = w.shape[1]
  kern = functools.partial(_bn_relu_mm_stats_kernel,
                           true_rows=true_rows, block_rows=tr)
  return pl.pallas_call(
      kern,
      out_shape=(jax.ShapeDtypeStruct((rp, n), jnp.float32),
                 jax.ShapeDtypeStruct((2, n), jnp.float32)),
      grid=(rp // tr,),
      in_specs=[_row_spec(tr, k), _rep_spec((1, k)), _rep_spec((1, k)),
                _rep_spec((k, n))],
      out_specs=(_row_spec(tr, n), _rep_spec((2, n))),
      scratch_shapes=[pltpu.VMEM((1, n), jnp.float32),
                      pltpu.VMEM((1, n), jnp.float32)],
      compiler_params=_cparams(parallel=False),
      cost_estimate=pl.CostEstimate(
          flops=2 * rp * k * n, transcendentals=0,
          bytes_accessed=4 * (rp * k + rp * n + k * n)),
  )(x2d, scale, shift, w)


def mm_stats(p2d, w, tr):
  rp, k = p2d.shape
  n = w.shape[1]
  return pl.pallas_call(
      _mm_stats_kernel,
      out_shape=(jax.ShapeDtypeStruct((rp, n), jnp.float32),
                 jax.ShapeDtypeStruct((2, n), jnp.float32)),
      grid=(rp // tr,),
      in_specs=[_row_spec(tr, k), _rep_spec((k, n))],
      out_specs=(_row_spec(tr, n), _rep_spec((2, n))),
      scratch_shapes=[pltpu.VMEM((1, n), jnp.float32),
                      pltpu.VMEM((1, n), jnp.float32)],
      compiler_params=_cparams(parallel=False),
      cost_estimate=pl.CostEstimate(
          flops=2 * rp * k * n, transcendentals=0,
          bytes_accessed=4 * (rp * k + rp * n + k * n)),
  )(p2d, w)


def affine_relu(x2d, scale, shift, tr):
  rp, c = x2d.shape
  return pl.pallas_call(
      _affine_relu_kernel,
      out_shape=jax.ShapeDtypeStruct((rp, c), jnp.float32),
      grid=(rp // tr,),
      in_specs=[_row_spec(tr, c), _rep_spec((1, c)), _rep_spec((1, c))],
      out_specs=_row_spec(tr, c),
      compiler_params=_cparams(parallel=True),
      cost_estimate=pl.CostEstimate(flops=2 * rp * c, transcendentals=0,
                                    bytes_accessed=8 * rp * c),
  )(x2d, scale, shift)


def final_fused(h2d, p2d, scale, shift, w3p, wscp, tr):
  rp, k1 = h2d.shape
  k2 = p2d.shape[1]
  n = w3p.shape[1]
  return pl.pallas_call(
      _final_kernel,
      out_shape=jax.ShapeDtypeStruct((rp, n), jnp.float32),
      grid=(rp // tr,),
      in_specs=[_row_spec(tr, k1), _row_spec(tr, k2),
                _rep_spec((1, k1)), _rep_spec((1, k1)),
                _rep_spec((k1, n)), _rep_spec((k2, n))],
      out_specs=_row_spec(tr, n),
      compiler_params=_cparams(parallel=True),
      cost_estimate=pl.CostEstimate(
          flops=2 * rp * (k1 + k2) * n, transcendentals=0,
          bytes_accessed=4 * (rp * (k1 + k2 + n) + (k1 + k2) * n)),
  )(h2d, p2d, scale, shift, w3p, wscp)


# ------------------------------- XLA-side glue -------------------------------

def _round_up(n, m):
  return (n + m - 1) // m * m


def _pad_rows(x2d, rows):
  r = x2d.shape[0]
  return x2d if rows == r else jnp.pad(x2d, ((0, rows - r), (0, 0)))


def _im2col_3x3(x_nhwc):
  """(N,H,W,C) -> (N*H*W, 9*C) patches of the zero-padded input, (s,t,c) order."""
  n, h, w, c = x_nhwc.shape
  xp = jnp.pad(x_nhwc, ((0, 0), (1, 1), (1, 1), (0, 0)))
  cols = [xp[:, s:s + h, t:t + w, :] for s in range(3) for t in range(3)]
  return jnp.concatenate(cols, axis=-1).reshape(n * h * w, 9 * c)


def _convT_packed_weight(w_pt):
  """PyTorch ConvTranspose2d(4,2,1) weight (Cin,Cout,4,4) -> (9*Cin, 4*Cout).

  Row index = (s*3 + t)*Cin + ci over the 3x3 input patch; column index =
  (a*2 + b)*Cout + co over the 2x2 output-parity block, such that
    out[n, 2i+a, 2j+b, co] = sum_{s,t,ci} xpad[n, i+s, j+t, ci] * W[(s,t,ci),(a,b,co)].
  """
  cin, cout = w_pt.shape[0], w_pt.shape[1]
  wb = jnp.zeros((3, 3, cin, 2, 2, cout), jnp.float32)
  for a in range(2):
    for b in range(2):
      for dy in range(2):
        for dx in range(2):
          s, t = a + dy, b + dx
          wb = wb.at[s, t, :, a, b, :].set(
              w_pt[:, :, 3 - 2 * dy - a, 3 - 2 * dx - b].astype(jnp.float32))
  return wb.reshape(9 * cin, 4 * cout)


def _scale_shift(stats, count, gamma, beta):
  """Fold BN (mean/var from sum & sumsq) + affine into scale/shift vectors."""
  mean = stats[0] / count
  var = jnp.maximum(stats[1] / count - mean * mean, 0.0)
  scale = gamma * lax.rsqrt(var + EPS)
  shift = beta - mean * scale
  return (scale.reshape(1, -1).astype(jnp.float32),
          shift.reshape(1, -1).astype(jnp.float32))


# -------------------------------- forward pass --------------------------------

def residual_block_up(x_nchw, params, *, row_block=128):
  """Forward of LineDistiller ResidualBlockUp (train-mode BatchNorm).

  row_block: pixels (N*H*W rows) per grid step; use 512-2048 for production
  shapes, kept small here so the toy test exercises multi-step pipelining.
  """
  n, cin, h, w = x_nchw.shape
  cmid = params["w1_pt"].shape[0]
  cout = params["w3_pt"].shape[0]
  r = n * h * w
  tr = min(row_block, _round_up(r, 8))
  rp = _round_up(r, tr)

  x_nhwc = jnp.transpose(x_nchw, (0, 2, 3, 1)).astype(jnp.float32)
  x2d = _pad_rows(x_nhwc.reshape(r, cin), rp)

  # ---- BN1 statistics (one pass over x) ----
  st1 = channel_sums(x2d, tr)
  sc1, sh1 = _scale_shift(st1, r, params["g1"], params["b1"])

  # ---- BN1 -> ReLU -> Conv1x1, fused with BN2-stat accumulation ----
  w1 = params["w1_pt"][:, :, 0, 0].T.astype(jnp.float32)          # (Cin, Cmid)
  h1, st2 = bn_relu_mm_stats(x2d, sc1, sh1, w1, tr, r)
  sc2, sh2 = _scale_shift(st2, r, params["g2"], params["b2"])

  # ---- BN2 -> ReLU ----
  # TODO(synk): fuse this pass into the conv-transpose kernel with halo-aware
  # in-kernel patch extraction so a2 never round-trips HBM.
  a2 = affine_relu(h1, sc2, sh2, tr)[:r].reshape(n, h, w, cmid)

  # ---- left ConvT(4,2,1): one parity-packed matmul + BN3-stat accumulation ----
  wtl = _convT_packed_weight(params["wt_left"])                   # (9*Cmid, 4*Cmid)
  patches_l = _pad_rows(_im2col_3x3(a2), rp)
  h2, st3 = mm_stats(patches_l, wtl, tr)                          # (rp, 4*Cmid)
  st3c = st3.reshape(2, 4, cmid).sum(axis=1)      # fold the 4 parity groups
  sc3, sh3 = _scale_shift(st3c, 4 * r, params["g3"], params["b3"])
  sc3p, sh3p = jnp.tile(sc3, (1, 4)), jnp.tile(sh3, (1, 4))

  # ---- final: BN3 -> ReLU -> Conv1x1 (block-diag packed) + fused shortcut ----
  w3p = jnp.kron(jnp.eye(4, dtype=jnp.float32),
                 params["w3_pt"][:, :, 0, 0].T.astype(jnp.float32))
  wsc = _convT_packed_weight(params["wt_sc"])                     # (9*Cin, 4*Cout)
  patches_s = _pad_rows(_im2col_3x3(x_nhwc), rp)
  outp = final_fused(h2, patches_s, sc3p, sh3p, w3p, wsc, tr)     # (rp, 4*Cout)

  # Single parity interleave at the very end, then back to NCHW.
  out = outp[:r].reshape(n, h, w, 2, 2, cout)
  out = out.transpose(0, 1, 3, 2, 4, 5).reshape(n, 2 * h, 2 * w, cout)
  return out.transpose(0, 3, 1, 2)


# --------------------------- numpy float64 reference ---------------------------

def _np_conv_transpose_4x4_s2_p1(x, w):
  """x: (N,Cin,H,W), w: (Cin,Cout,4,4); textbook ConvTranspose2d(k=4,s=2,p=1)."""
  n, cin, h, wd = x.shape
  cout = w.shape[1]
  full = np.zeros((n, cout, 2 * h + 2, 2 * wd + 2), dtype=np.float64)
  for kh in range(4):
    for kw in range(4):
      full[:, :, kh:kh + 2 * h:2, kw:kw + 2 * wd:2] += np.einsum(
          "ncij,cd->ndij", x, w[:, :, kh, kw])
  return full[:, :, 1:1 + 2 * h, 1:1 + 2 * wd]


def _ref_forward_np(x, p):
  def bn(v, g, b):
    m = v.mean(axis=(0, 2, 3), keepdims=True)
    var = ((v - m) ** 2).mean(axis=(0, 2, 3), keepdims=True)
    return ((v - m) / np.sqrt(var + EPS) * g.reshape(1, -1, 1, 1)
            + b.reshape(1, -1, 1, 1))

  def conv1x1(v, w_pt):
    return np.einsum("nchw,oc->nohw", v, w_pt[:, :, 0, 0])

  hh = np.maximum(bn(x, p["g1"], p["b1"]), 0.0)
  hh = conv1x1(hh, p["w1_pt"])
  hh = np.maximum(bn(hh, p["g2"], p["b2"]), 0.0)
  hh = _np_conv_transpose_4x4_s2_p1(hh, p["wt_left"])
  hh = np.maximum(bn(hh, p["g3"], p["b3"]), 0.0)
  hh = conv1x1(hh, p["w3_pt"])
  return hh + _np_conv_transpose_4x4_s2_p1(x, p["wt_sc"])


# ------------------------------------ main ------------------------------------

if __name__ == "__main__":
  N, Cin, Cmid, Cout, H, W = 2, 4, 8, 4, 16, 16

  key = jax.random.PRNGKey(0)
  ks = jax.random.split(key, 11)
  f32 = jnp.float32
  params = {
      "g1": jax.random.normal(ks[0], (Cin,), f32) * 0.5 + 1.0,
      "b1": jax.random.normal(ks[1], (Cin,), f32) * 0.1,
      "w1_pt": jax.random.normal(ks[2], (Cmid, Cin, 1, 1), f32) * 0.3,
      "g2": jax.random.normal(ks[3], (Cmid,), f32) * 0.5 + 1.0,
      "b2": jax.random.normal(ks[4], (Cmid,), f32) * 0.1,
      "wt_left": jax.random.normal(ks[5], (Cmid, Cmid, 4, 4), f32) * 0.2,
      "g3": jax.random.normal(ks[6], (Cmid,), f32) * 0.5 + 1.0,
      "b3": jax.random.normal(ks[7], (Cmid,), f32) * 0.1,
      "w3_pt": jax.random.normal(ks[8], (Cout, Cmid, 1, 1), f32) * 0.3,
      "wt_sc": jax.random.normal(ks[9], (Cin, Cout, 4, 4), f32) * 0.2,
  }
  x = jax.random.normal(ks[10], (N, Cin, H, W), f32)

  out = jax.block_until_ready(jax.jit(residual_block_up)(x, params))
  assert out.shape == (N, Cout, 2 * H, 2 * W), out.shape

  np_params = {k: np.asarray(v, np.float64) for k, v in params.items()}
  ref = _ref_forward_np(np.asarray(x, np.float64), np_params)
  err = float(np.max(np.abs(np.asarray(out, np.float64) - ref)))
  # Default (non-"highest") MXU precision -> allow bf16-pass rounding error.
  if not np.allclose(np.asarray(out, np.float64), ref, rtol=5e-2, atol=5e-2):
    raise AssertionError(f"mismatch vs reference: max abs err = {err}")

  print("KERNEL_OK")
</pallas_src>

<mosaic_0001>
module attributes {stable_mosaic.version = 11 : i64} {
  func.func @_bn_relu_mm_stats_kernel(%arg0: i32, %arg1: memref<128x4xf32, #tpu.memory_space<vmem>>, %arg2: memref<1x4xf32, #tpu.memory_space<vmem>>, %arg3: memref<1x4xf32, #tpu.memory_space<vmem>>, %arg4: memref<4x8xf32, #tpu.memory_space<vmem>>, %arg5: memref<128x8xf32, #tpu.memory_space<vmem>>, %arg6: memref<2x8xf32, #tpu.memory_space<vmem>>, %arg7: memref<1x8xf32, #tpu.memory_space<vmem>>, %arg8: memref<1x8xf32, #tpu.memory_space<vmem>>) attributes {dimension_semantics = [#tpu.dimension_semantics<arbitrary>], iteration_bounds = array<i64: 4>, scalar_prefetch = 0 : i64, scratch_operands = 2 : i64, tpu.core_type = #tpu.core_type<tc>, window_params = [{transform_indices = @transform_0, window_bounds = array<i64: 128, 4>}, {pipeline_mode = #tpu.pipeline_mode<synchronous>, transform_indices = @transform_1, window_bounds = array<i64: 1, 4>}, {pipeline_mode = #tpu.pipeline_mode<synchronous>, transform_indices = @transform_2, window_bounds = array<i64: 1, 4>}, {pipeline_mode = #tpu.pipeline_mode<synchronous>, transform_indices = @transform_3, window_bounds = array<i64: 4, 8>}, {transform_indices = @transform_4, window_bounds = array<i64: 128, 8>}, {pipeline_mode = #tpu.pipeline_mode<synchronous>, transform_indices = @transform_5, window_bounds = array<i64: 2, 8>}]} {
    %c0_i32 = arith.constant 0 : i32
    %0 = arith.cmpi eq, %arg0, %c0_i32 : i32
    %1 = arith.extui %0 : i1 to i32
    %c0_i32_0 = arith.constant 0 : i32
    %2 = arith.cmpi ne, %1, %c0_i32_0 : i32
    scf.if %2 {
      %cst_23 = arith.constant 0.000000e+00 : f32
      %39 = vector.broadcast %cst_23 : f32 to vector<1x8xf32>
      %c0_24 = arith.constant 0 : index
      %c0_25 = arith.constant 0 : index
      %40 = vector.load %arg7[%c0_24, %c0_25] : memref<1x8xf32, #tpu.memory_space<vmem>>, vector<1x8xf32>
      tpu.vector_store %arg7[%c0_24, %c0_25], %39 {strides = array<i32>} : memref<1x8xf32, #tpu.memory_space<vmem>>, vector<1x8xf32>,
      %cst_26 = arith.constant 0.000000e+00 : f32
      %41 = vector.broadcast %cst_26 : f32 to vector<1x8xf32>
      %c0_27 = arith.constant 0 : index
      %c0_28 = arith.constant 0 : index
      %42 = vector.load %arg8[%c0_27, %c0_28] : memref<1x8xf32, #tpu.memory_space<vmem>>, vector<1x8xf32>
      tpu.vector_store %arg8[%c0_27, %c0_28], %41 {strides = array<i32>} : memref<1x8xf32, #tpu.memory_space<vmem>>, vector<1x8xf32>,
    } else {
    }
    %c0 = arith.constant 0 : index
    %c0_1 = arith.constant 0 : index
    %3 = vector.load %arg1[%c0, %c0_1] : memref<128x4xf32, #tpu.memory_space<vmem>>, vector<128x4xf32>
    %c0_2 = arith.constant 0 : index
    %c0_3 = arith.constant 0 : index
    %4 = vector.load %arg2[%c0_2, %c0_3] : memref<1x4xf32, #tpu.memory_space<vmem>>, vector<1x4xf32>
    %5 = vector.broadcast %4 : vector<1x4xf32> to vector<128x4xf32>
    %6 = arith.mulf %3, %5 : vector<128x4xf32>
    %c0_4 = arith.constant 0 : index
    %c0_5 = arith.constant 0 : index
    %7 = vector.load %arg3[%c0_4, %c0_5] : memref<1x4xf32, #tpu.memory_space<vmem>>, vector<1x4xf32>
    %8 = vector.broadcast %7 : vector<1x4xf32> to vector<128x4xf32>
    %9 = arith.addf %6, %8 : vector<128x4xf32>
    %cst = arith.constant 0.000000e+00 : f32
    %10 = vector.broadcast %cst : f32 to vector<128x4xf32>
    %11 = arith.maximumf %9, %10 : vector<128x4xf32>
    %c0_6 = arith.constant 0 : index
    %c0_7 = arith.constant 0 : index
    %12 = vector.load %arg4[%c0_6, %c0_7] : memref<4x8xf32, #tpu.memory_space<vmem>>, vector<4x8xf32>
    %cst_8 = arith.constant dense<0.000000e+00> : vector<128x8xf32>
    %13 = tpu.matmul %11, %12, %cst_8 {dimension_numbers = #tpu.dot_dimension_numbers<[1], [0], [0], [1], [0, 0, 1, 1], [], []>} : vector<128x4xf32>, vector<4x8xf32>, vector<128x8xf32> -> vector<128x8xf32>
    %c128_i32 = arith.constant 128 : i32
    %14 = arith.muli %arg0, %c128_i32 : i32
    %15 = tpu.iota {dimensions = array<i32: 0>} : vector<128x1xi32>
    %16 = vector.broadcast %14 : i32 to vector<128x1xi32>
    %17 = arith.addi %16, %15 : vector<128x1xi32>
    %c512_i32 = arith.constant 512 : i32
    %18 = vector.broadcast %c512_i32 : i32 to vector<128x1xi32>
    %19 = arith.cmpi slt, %17, %18 : vector<128x1xi32>
    %cst_9 = arith.constant 0.000000e+00 : f32
    %20 = vector.shape_cast %19 : vector<128x1xi1> to vector<128x1xi1>
    %21 = vector.broadcast %20 : vector<128x1xi1> to vector<128x8xi1>
    %22 = vector.broadcast %cst_9 : f32 to vector<128x8xf32>
    %23 = arith.select %21, %13, %22 : vector<128x8xi1>, vector<128x8xf32>
    %c0_10 = arith.constant 0 : index
    %c0_11 = arith.constant 0 : index
    %24 = vector.load %arg5[%c0_10, %c0_11] : memref<128x8xf32, #tpu.memory_space<vmem>>, vector<128x8xf32>
    tpu.vector_store %arg5[%c0_10, %c0_11], %23 {strides = array<i32>} : memref<128x8xf32, #tpu.memory_space<vmem>>, vector<128x8xf32>,
    %c0_12 = arith.constant 0 : index
    %c0_13 = arith.constant 0 : index
    %25 = vector.load %arg7[%c0_12, %c0_13] : memref<1x8xf32, #tpu.memory_space<vmem>>, vector<1x8xf32>
    %cst_14 = arith.constant dense<0.000000e+00> : vector<8xf32>
    %26 = vector.multi_reduction <add>, %23, %cst_14 [0] : vector<128x8xf32> to vector<8xf32>
    %27 = vector.shape_cast %26 : vector<8xf32> to vector<1x8xf32>
    %28 = arith.addf %25, %27 : vector<1x8xf32>
    %c0_15 = arith.constant 0 : index
    %c0_16 = arith.constant 0 : index
    %29 = vector.load %arg7[%c0_15, %c0_16] : memref<1x8xf32, #tpu.memory_space<vmem>>, vector<1x8xf32>
    tpu.vector_store %arg7[%c0_15, %c0_16], %28 {strides = array<i32>} : memref<1x8xf32, #tpu.memory_space<vmem>>, vector<1x8xf32>,
    %c0_17 = arith.constant 0 : index
    %c0_18 = arith.constant 0 : index
    %30 = vector.load %arg8[%c0_17, %c0_18] : memref<1x8xf32, #tpu.memory_space<vmem>>, vector<1x8xf32>
    %31 = arith.mulf %23, %23 : vector<128x8xf32>
    %cst_19 = arith.constant dense<0.000000e+00> : vector<8xf32>
    %32 = vector.multi_reduction <add>, %31, %cst_19 [0] : vector<128x8xf32> to vector<8xf32>
    %33 = vector.shape_cast %32 : vector<8xf32> to vector<1x8xf32>
    %34 = arith.addf %30, %33 : vector<1x8xf32>
    %c0_20 = arith.constant 0 : index
    %c0_21 = arith.constant 0 : index
    %35 = vector.load %arg8[%c0_20, %c0_21] : memref<1x8xf32, #tpu.memory_space<vmem>>, vector<1x8xf32>
    tpu.vector_store %arg8[%c0_20, %c0_21], %34 {strides = array<i32>} : memref<1x8xf32, #tpu.memory_space<vmem>>, vector<1x8xf32>,
    %c3_i32 = arith.constant 3 : i32
    %36 = arith.cmpi eq, %arg0, %c3_i32 : i32
    %37 = arith.extui %36 : i1 to i32
    %c0_i32_22 = arith.constant 0 : i32
    %38 = arith.cmpi ne, %37, %c0_i32_22 : i32
    scf.if %38 {
      %c0_23 = arith.constant 0 : index
      %c0_24 = arith.constant 0 : index
      %39 = vector.load %arg7[%c0_23, %c0_24] : memref<1x8xf32, #tpu.memory_space<vmem>>, vector<1x8xf32>
      %c0_25 = arith.constant 0 : index
      %c0_26 = arith.constant 0 : index
      %40 = vector.load %arg6[%c0_25, %c0_26] : memref<2x8xf32, #tpu.memory_space<vmem>>, vector<1x8xf32>
      tpu.vector_store %arg6[%c0_25, %c0_26], %39 {strides = array<i32>} : memref<2x8xf32, #tpu.memory_space<vmem>>, vector<1x8xf32>,
      %c0_27 = arith.constant 0 : index
      %c0_28 = arith.constant 0 : index
      %41 = vector.load %arg8[%c0_27, %c0_28] : memref<1x8xf32, #tpu.memory_space<vmem>>, vector<1x8xf32>
      %c1 = arith.constant 1 : index
      %c0_29 = arith.constant 0 : index
      %42 = vector.load %arg6[%c1, %c0_29] : memref<2x8xf32, #tpu.memory_space<vmem>>, vector<1x8xf32>
      tpu.vector_store %arg6[%c1, %c0_29], %41 {strides = array<i32>} : memref<2x8xf32, #tpu.memory_space<vmem>>, vector<1x8xf32>,
    } else {
    }
    return
  }
  func.func @transform_0(%arg0: i32) -> (i32, i32) {
    %c0_i32 = arith.constant 0 : i32
    %c0_i32_0 = arith.constant 0 : i32
    return %arg0, %c0_i32 : i32, i32
  }
  func.func @transform_1(%arg0: i32) -> (i32, i32) {
    %c0_i32 = arith.constant 0 : i32
    %c0_i32_0 = arith.constant 0 : i32
    %c0_i32_1 = arith.constant 0 : i32
    return %c0_i32, %c0_i32_0 : i32, i32
  }
  func.func @transform_2(%arg0: i32) -> (i32, i32) {
    %c0_i32 = arith.constant 0 : i32
    %c0_i32_0 = arith.constant 0 : i32
    %c0_i32_1 = arith.constant 0 : i32
    return %c0_i32, %c0_i32_0 : i32, i32
  }
  func.func @transform_3(%arg0: i32) -> (i32, i32) {
    %c0_i32 = arith.constant 0 : i32
    %c0_i32_0 = arith.constant 0 : i32
    %c0_i32_1 = arith.constant 0 : i32
    return %c0_i32, %c0_i32_0 : i32, i32
  }
  func.func @transform_4(%arg0: i32) -> (i32, i32) {
    %c0_i32 = arith.constant 0 : i32
    %c0_i32_0 = arith.constant 0 : i32
    return %arg0, %c0_i32 : i32, i32
  }
  func.func @transform_5(%arg0: i32) -> (i32, i32) {
    %c0_i32 = arith.constant 0 : i32
    %c0_i32_0 = arith.constant 0 : i32
    %c0_i32_1 = arith.constant 0 : i32
    return %c0_i32, %c0_i32_0 : i32, i32
  }
}

module attributes {stable_mosaic.version = 11 : i64} {
  func.func @_channel_sums_kernel(%arg0: i32, %arg1: memref<128x4xf32, #tpu.memory_space<vmem>>, %arg2: memref<2x4xf32, #tpu.memory_space<vmem>>, %arg3: memref<1x4xf32, #tpu.memory_space<vmem>>, %arg4: memref<1x4xf32, #tpu.memory_space<vmem>>) attributes {dimension_semantics = [#tpu.dimension_semantics<arbitrary>], iteration_bounds = array<i64: 4>, scalar_prefetch = 0 : i64, scratch_operands = 2 : i64, tpu.core_type = #tpu.core_type<tc>, window_params = [{transform_indices = @transform_0, window_bounds = array<i64: 128, 4>}, {pipeline_mode = #tpu.pipeline_mode<synchronous>, transform_indices = @transform_1, window_bounds = array<i64: 2, 4>}]} {
    %c0_i32 = arith.constant 0 : i32
    %0 = arith.cmpi eq, %arg0, %c0_i32 : i32
    %1 = arith.extui %0 : i1 to i32
    %c0_i32_0 = arith.constant 0 : i32
    %2 = arith.cmpi ne, %1, %c0_i32_0 : i32
    scf.if %2 {
      %cst_12 = arith.constant 0.000000e+00 : f32
      %18 = vector.broadcast %cst_12 : f32 to vector<1x4xf32>
      %c0_13 = arith.constant 0 : index
      %c0_14 = arith.constant 0 : index
      %19 = vector.load %arg3[%c0_13, %c0_14] : memref<1x4xf32, #tpu.memory_space<vmem>>, vector<1x4xf32>
      tpu.vector_store %arg3[%c0_13, %c0_14], %18 {strides = array<i32>} : memref<1x4xf32, #tpu.memory_space<vmem>>, vector<1x4xf32>,
      %cst_15 = arith.constant 0.000000e+00 : f32
      %20 = vector.broadcast %cst_15 : f32 to vector<1x4xf32>
      %c0_16 = arith.constant 0 : index
      %c0_17 = arith.constant 0 : index
      %21 = vector.load %arg4[%c0_16, %c0_17] : memref<1x4xf32, #tpu.memory_space<vmem>>, vector<1x4xf32>
      tpu.vector_store %arg4[%c0_16, %c0_17], %20 {strides = array<i32>} : memref<1x4xf32, #tpu.memory_space<vmem>>, vector<1x4xf32>,
    } else {
    }
    %c0 = arith.constant 0 : index
    %c0_1 = arith.constant 0 : index
    %3 = vector.load %arg1[%c0, %c0_1] : memref<128x4xf32, #tpu.memory_space<vmem>>, vector<128x4xf32>
    %c0_2 = arith.constant 0 : index
    %c0_3 = arith.constant 0 : index
    %4 = vector.load %arg3[%c0_2, %c0_3] : memref<1x4xf32, #tpu.memory_space<vmem>>, vector<1x4xf32>
    %cst = arith.constant dense<0.000000e+00> : vector<4xf32>
    %5 = vector.multi_reduction <add>, %3, %cst [0] : vector<128x4xf32> to vector<4xf32>
    %6 = vector.shape_cast %5 : vector<4xf32> to vector<1x4xf32>
    %7 = arith.addf %4, %6 : vector<1x4xf32>
    %c0_4 = arith.constant 0 : index
    %c0_5 = arith.constant 0 : index
    %8 = vector.load %arg3[%c0_4, %c0_5] : memref<1x4xf32, #tpu.memory_space<vmem>>, vector<1x4xf32>
    tpu.vector_store %arg3[%c0_4, %c0_5], %7 {strides = array<i32>} : memref<1x4xf32, #tpu.memory_space<vmem>>, vector<1x4xf32>,
    %c0_6 = arith.constant 0 : index
    %c0_7 = arith.constant 0 : index
    %9 = vector.load %arg4[%c0_6, %c0_7] : memref<1x4xf32, #tpu.memory_space<vmem>>, vector<1x4xf32>
    %10 = arith.mulf %3, %3 : vector<128x4xf32>
    %cst_8 = arith.constant dense<0.000000e+00> : vector<4xf32>
    %11 = vector.multi_reduction <add>, %10, %cst_8 [0] : vector<128x4xf32> to vector<4xf32>
    %12 = vector.shape_cast %11 : vector<4xf32> to vector<1x4xf32>
    %13 = arith.addf %9, %12 : vector<1x4xf32>
    %c0_9 = arith.constant 0 : index
    %c0_10 = arith.constant 0 : index
    %14 = vector.load %arg4[%c0_9, %c0_10] : memref<1x4xf32, #tpu.memory_space<vmem>>, vector<1x4xf32>
    tpu.vector_store %arg4[%c0_9, %c0_10], %13 {strides = array<i32>} : memref<1x4xf32, #tpu.memory_space<vmem>>, vector<1x4xf32>,
    %c3_i32 = arith.constant 3 : i32
    %15 = arith.cmpi eq, %arg0, %c3_i32 : i32
    %16 = arith.extui %15 : i1 to i32
    %c0_i32_11 = arith.constant 0 : i32
    %17 = arith.cmpi ne, %16, %c0_i32_11 : i32
    scf.if %17 {
      %c0_12 = arith.constant 0 : index
      %c0_13 = arith.constant 0 : index
      %18 = vector.load %arg3[%c0_12, %c0_13] : memref<1x4xf32, #tpu.memory_space<vmem>>, vector<1x4xf32>
      %c0_14 = arith.constant 0 : index
      %c0_15 = arith.constant 0 : index
      %19 = vector.load %arg2[%c0_14, %c0_15] : memref<2x4xf32, #tpu.memory_space<vmem>>, vector<1x4xf32>
      tpu.vector_store %arg2[%c0_14, %c0_15], %18 {strides = array<i32>} : memref<2x4xf32, #tpu.memory_space<vmem>>, vector<1x4xf32>,
      %c0_16 = arith.constant 0 : index
      %c0_17 = arith.constant 0 : index
      %20 = vector.load %arg4[%c0_16, %c0_17] : memref<1x4xf32, #tpu.memory_space<vmem>>, vector<1x4xf32>
      %c1 = arith.constant 1 : index
      %c0_18 = arith.constant 0 : index
      %21 = vector.load %arg2[%c1, %c0_18] : memref<2x4xf32, #tpu.memory_space<vmem>>, vector<1x4xf32>
      tpu.vector_store %arg2[%c1, %c0_18], %20 {strides = array<i32>} : memref<2x4xf32, #tpu.memory_space<vmem>>, vector<1x4xf32>,
    } else {
    }
    return
  }
  func.func @transform_0(%arg0: i32) -> (i32, i32) {
    %c0_i32 = arith.constant 0 : i32
    %c0_i32_0 = arith.constant 0 : i32
    return %arg0, %c0_i32 : i32, i32
  }
  func.func @transform_1(%arg0: i32) -> (i32, i32) {
    %c0_i32 = arith.constant 0 : i32
    %c0_i32_0 = arith.constant 0 : i32
    %c0_i32_1 = arith.constant 0 : i32
    return %c0_i32, %c0_i32_0 : i32, i32
  }
}

module attributes {stable_mosaic.version = 11 : i64} {
  func.func @_affine_relu_kernel(%arg0: i32, %arg1: memref<128x8xf32, #tpu.memory_space<vmem>>, %arg2: memref<1x8xf32, #tpu.memory_space<vmem>>, %arg3: memref<1x8xf32, #tpu.memory_space<vmem>>, %arg4: memref<128x8xf32, #tpu.memory_space<vmem>>) attributes {dimension_semantics = [#tpu.dimension_semantics<parallel>], iteration_bounds = array<i64: 4>, scalar_prefetch = 0 : i64, scratch_operands = 0 : i64, tpu.core_type = #tpu.core_type<tc>, window_params = [{transform_indices = @transform_0, window_bounds = array<i64: 128, 8>}, {pipeline_mode = #tpu.pipeline_mode<synchronous>, transform_indices = @transform_1, window_bounds = array<i64: 1, 8>}, {pipeline_mode = #tpu.pipeline_mode<synchronous>, transform_indices = @transform_2, window_bounds = array<i64: 1, 8>}, {transform_indices = @transform_3, window_bounds = array<i64: 128, 8>}]} {
    %c0 = arith.constant 0 : index
    %c0_0 = arith.constant 0 : index
    %0 = vector.load %arg1[%c0, %c0_0] : memref<128x8xf32, #tpu.memory_space<vmem>>, vector<128x8xf32>
    %c0_1 = arith.constant 0 : index
    %c0_2 = arith.constant 0 : index
    %1 = vector.load %arg2[%c0_1, %c0_2] : memref<1x8xf32, #tpu.memory_space<vmem>>, vector<1x8xf32>
    %2 = vector.broadcast %1 : vector<1x8xf32> to vector<128x8xf32>
    %3 = arith.mulf %0, %2 : vector<128x8xf32>
    %c0_3 = arith.constant 0 : index
    %c0_4 = arith.constant 0 : index
    %4 = vector.load %arg3[%c0_3, %c0_4] : memref<1x8xf32, #tpu.memory_space<vmem>>, vector<1x8xf32>
    %5 = vector.broadcast %4 : vector<1x8xf32> to vector<128x8xf32>
    %6 = arith.addf %3, %5 : vector<128x8xf32>
    %cst = arith.constant 0.000000e+00 : f32
    %7 = vector.broadcast %cst : f32 to vector<128x8xf32>
    %8 = arith.maximumf %6, %7 : vector<128x8xf32>
    %c0_5 = arith.constant 0 : index
    %c0_6 = arith.constant 0 : index
    %9 = vector.load %arg4[%c0_5, %c0_6] : memref<128x8xf32, #tpu.memory_space<vmem>>, vector<128x8xf32>
    tpu.vector_store %arg4[%c0_5, %c0_6], %8 {strides = array<i32>} : memref<128x8xf32, #tpu.memory_space<vmem>>, vector<128x8xf32>,
    return
  }
  func.func @transform_0(%arg0: i32) -> (i32, i32) {
    %c0_i32 = arith.constant 0 : i32
    %c0_i32_0 = arith.constant 0 : i32
    return %arg0, %c0_i32 : i32, i32
  }
  func.func @transform_1(%arg0: i32) -> (i32, i32) {
    %c0_i32 = arith.constant 0 : i32
    %c0_i32_0 = arith.constant 0 : i32
    %c0_i32_1 = arith.constant 0 : i32
    return %c0_i32, %c0_i32_0 : i32, i32
  }
  func.func @transform_2(%arg0: i32) -> (i32, i32) {
    %c0_i32 = arith.constant 0 : i32
    %c0_i32_0 = arith.constant 0 : i32
    %c0_i32_1 = arith.constant 0 : i32
    return %c0_i32, %c0_i32_0 : i32, i32
  }
  func.func @transform_3(%arg0: i32) -> (i32, i32) {
    %c0_i32 = arith.constant 0 : i32
    %c0_i32_0 = arith.constant 0 : i32
    return %arg0, %c0_i32 : i32, i32
  }
}

module attributes {stable_mosaic.version = 11 : i64} {
  func.func @_mm_stats_kernel(%arg0: i32, %arg1: memref<128x72xf32, #tpu.memory_space<vmem>>, %arg2: memref<72x32xf32, #tpu.memory_space<vmem>>, %arg3: memref<128x32xf32, #tpu.memory_space<vmem>>, %arg4: memref<2x32xf32, #tpu.memory_space<vmem>>, %arg5: memref<1x32xf32, #tpu.memory_space<vmem>>, %arg6: memref<1x32xf32, #tpu.memory_space<vmem>>) attributes {dimension_semantics = [#tpu.dimension_semantics<arbitrary>], iteration_bounds = array<i64: 4>, scalar_prefetch = 0 : i64, scratch_operands = 2 : i64, tpu.core_type = #tpu.core_type<tc>, window_params = [{transform_indices = @transform_0, window_bounds = array<i64: 128, 72>}, {pipeline_mode = #tpu.pipeline_mode<synchronous>, transform_indices = @transform_1, window_bounds = array<i64: 72, 32>}, {transform_indices = @transform_2, window_bounds = array<i64: 128, 32>}, {pipeline_mode = #tpu.pipeline_mode<synchronous>, transform_indices = @transform_3, window_bounds = array<i64: 2, 32>}]} {
    %c0_i32 = arith.constant 0 : i32
    %0 = arith.cmpi eq, %arg0, %c0_i32 : i32
    %1 = arith.extui %0 : i1 to i32
    %c0_i32_0 = arith.constant 0 : i32
    %2 = arith.cmpi ne, %1, %c0_i32_0 : i32
    scf.if %2 {
      %cst_17 = arith.constant 0.000000e+00 : f32
      %21 = vector.broadcast %cst_17 : f32 to vector<1x32xf32>
      %c0_18 = arith.constant 0 : index
      %c0_19 = arith.constant 0 : index
      %22 = vector.load %arg5[%c0_18, %c0_19] : memref<1x32xf32, #tpu.memory_space<vmem>>, vector<1x32xf32>
      tpu.vector_store %arg5[%c0_18, %c0_19], %21 {strides = array<i32>} : memref<1x32xf32, #tpu.memory_space<vmem>>, vector<1x32xf32>,
      %cst_20 = arith.constant 0.000000e+00 : f32
      %23 = vector.broadcast %cst_20 : f32 to vector<1x32xf32>
      %c0_21 = arith.constant 0 : index
      %c0_22 = arith.constant 0 : index
      %24 = vector.load %arg6[%c0_21, %c0_22] : memref<1x32xf32, #tpu.memory_space<vmem>>, vector<1x32xf32>
      tpu.vector_store %arg6[%c0_21, %c0_22], %23 {strides = array<i32>} : memref<1x32xf32, #tpu.memory_space<vmem>>, vector<1x32xf32>,
    } else {
    }
    %c0 = arith.constant 0 : index
    %c0_1 = arith.constant 0 : index
    %3 = vector.load %arg1[%c0, %c0_1] : memref<128x72xf32, #tpu.memory_space<vmem>>, vector<128x72xf32>
    %c0_2 = arith.constant 0 : index
    %c0_3 = arith.constant 0 : index
    %4 = vector.load %arg2[%c0_2, %c0_3] : memref<72x32xf32, #tpu.memory_space<vmem>>, vector<72x32xf32>
    %cst = arith.constant dense<0.000000e+00> : vector<128x32xf32>
    %5 = tpu.matmul %3, %4, %cst {dimension_numbers = #tpu.dot_dimension_numbers<[1], [0], [0], [1], [0, 0, 1, 1], [], []>} : vector<128x72xf32>, vector<72x32xf32>, vector<128x32xf32> -> vector<128x32xf32>
    %c0_4 = arith.constant 0 : index
    %c0_5 = arith.constant 0 : index
    %6 = vector.load %arg3[%c0_4, %c0_5] : memref<128x32xf32, #tpu.memory_space<vmem>>, vector<128x32xf32>
    tpu.vector_store %arg3[%c0_4, %c0_5], %5 {strides = array<i32>} : memref<128x32xf32, #tpu.memory_space<vmem>>, vector<128x32xf32>,
    %c0_6 = arith.constant 0 : index
    %c0_7 = arith.constant 0 : index
    %7 = vector.load %arg5[%c0_6, %c0_7] : memref<1x32xf32, #tpu.memory_space<vmem>>, vector<1x32xf32>
    %cst_8 = arith.constant dense<0.000000e+00> : vector<32xf32>
    %8 = vector.multi_reduction <add>, %5, %cst_8 [0] : vector<128x32xf32> to vector<32xf32>
    %9 = vector.shape_cast %8 : vector<32xf32> to vector<1x32xf32>
    %10 = arith.addf %7, %9 : vector<1x32xf32>
    %c0_9 = arith.constant 0 : index
    %c0_10 = arith.constant 0 : index
    %11 = vector.load %arg5[%c0_9, %c0_10] : memref<1x32xf32, #tpu.memory_space<vmem>>, vector<1x32xf32>
    tpu.vector_store %arg5[%c0_9, %c0_10], %10 {strides = array<i32>} : memref<1x32xf32, #tpu.memory_space<vmem>>, vector<1x32xf32>,
    %c0_11 = arith.constant 0 : index
    %c0_12 = arith.constant 0 : index
    %12 = vector.load %arg6[%c0_11, %c0_12] : memref<1x32xf32, #tpu.memory_space<vmem>>, vector<1x32xf32>
    %13 = arith.mulf %5, %5 : vector<128x32xf32>
    %cst_13 = arith.constant dense<0.000000e+00> : vector<32xf32>
    %14 = vector.multi_reduction <add>, %13, %cst_13 [0] : vector<128x32xf32> to vector<32xf32>
    %15 = vector.shape_cast %14 : vector<32xf32> to vector<1x32xf32>
    %16 = arith.addf %12, %15 : vector<1x32xf32>
    %c0_14 = arith.constant 0 : index
    %c0_15 = arith.constant 0 : index
    %17 = vector.load %arg6[%c0_14, %c0_15] : memref<1x32xf32, #tpu.memory_space<vmem>>, vector<1x32xf32>
    tpu.vector_store %arg6[%c0_14, %c0_15], %16 {strides = array<i32>} : memref<1x32xf32, #tpu.memory_space<vmem>>, vector<1x32xf32>,
    %c3_i32 = arith.constant 3 : i32
    %18 = arith.cmpi eq, %arg0, %c3_i32 : i32
    %19 = arith.extui %18 : i1 to i32
    %c0_i32_16 = arith.constant 0 : i32
    %20 = arith.cmpi ne, %19, %c0_i32_16 : i32
    scf.if %20 {
      %c0_17 = arith.constant 0 : index
      %c0_18 = arith.constant 0 : index
      %21 = vector.load %arg5[%c0_17, %c0_18] : memref<1x32xf32, #tpu.memory_space<vmem>>, vector<1x32xf32>
      %c0_19 = arith.constant 0 : index
      %c0_20 = arith.constant 0 : index
      %22 = vector.load %arg4[%c0_19, %c0_20] : memref<2x32xf32, #tpu.memory_space<vmem>>, vector<1x32xf32>
      tpu.vector_store %arg4[%c0_19, %c0_20], %21 {strides = array<i32>} : memref<2x32xf32, #tpu.memory_space<vmem>>, vector<1x32xf32>,
      %c0_21 = arith.constant 0 : index
      %c0_22 = arith.constant 0 : index
      %23 = vector.load %arg6[%c0_21, %c0_22] : memref<1x32xf32, #tpu.memory_space<vmem>>, vector<1x32xf32>
      %c1 = arith.constant 1 : index
      %c0_23 = arith.constant 0 : index
      %24 = vector.load %arg4[%c1, %c0_23] : memref<2x32xf32, #tpu.memory_space<vmem>>, vector<1x32xf32>
      tpu.vector_store %arg4[%c1, %c0_23], %23 {strides = array<i32>} : memref<2x32xf32, #tpu.memory_space<vmem>>, vector<1x32xf32>,
    } else {
    }
    return
  }
  func.func @transform_0(%arg0: i32) -> (i32, i32) {
    %c0_i32 = arith.constant 0 : i32
    %c0_i32_0 = arith.constant 0 : i32
    return %arg0, %c0_i32 : i32, i32
  }
  func.func @transform_1(%arg0: i32) -> (i32, i32) {
    %c0_i32 = arith.constant 0 : i32
    %c0_i32_0 = arith.constant 0 : i32
    %c0_i32_1 = arith.constant 0 : i32
    return %c0_i32, %c0_i32_0 : i32, i32
  }
  func.func @transform_2(%arg0: i32) -> (i32, i32) {
    %c0_i32 = arith.constant 0 : i32
    %c0_i32_0 = arith.constant 0 : i32
    return %arg0, %c0_i32 : i32, i32
  }
  func.func @transform_3(%arg0: i32) -> (i32, i32) {
    %c0_i32 = arith.constant 0 : i32
    %c0_i32_0 = arith.constant 0 : i32
    %c0_i32_1 = arith.constant 0 : i32
    return %c0_i32, %c0_i32_0 : i32, i32
  }
}

module attributes {stable_mosaic.version = 11 : i64} {
  func.func @_final_kernel(%arg0: i32, %arg1: memref<128x32xf32, #tpu.memory_space<vmem>>, %arg2: memref<128x36xf32, #tpu.memory_space<vmem>>, %arg3: memref<1x32xf32, #tpu.memory_space<vmem>>, %arg4: memref<1x32xf32, #tpu.memory_space<vmem>>, %arg5: memref<32x16xf32, #tpu.memory_space<vmem>>, %arg6: memref<36x16xf32, #tpu.memory_space<vmem>>, %arg7: memref<128x16xf32, #tpu.memory_space<vmem>>) attributes {dimension_semantics = [#tpu.dimension_semantics<parallel>], iteration_bounds = array<i64: 4>, scalar_prefetch = 0 : i64, scratch_operands = 0 : i64, tpu.core_type = #tpu.core_type<tc>, window_params = [{transform_indices = @transform_0, window_bounds = array<i64: 128, 32>}, {transform_indices = @transform_1, window_bounds = array<i64: 128, 36>}, {pipeline_mode = #tpu.pipeline_mode<synchronous>, transform_indices = @transform_2, window_bounds = array<i64: 1, 32>}, {pipeline_mode = #tpu.pipeline_mode<synchronous>, transform_indices = @transform_3, window_bounds = array<i64: 1, 32>}, {pipeline_mode = #tpu.pipeline_mode<synchronous>, transform_indices = @transform_4, window_bounds = array<i64: 32, 16>}, {pipeline_mode = #tpu.pipeline_mode<synchronous>, transform_indices = @transform_5, window_bounds = array<i64: 36, 16>}, {transform_indices = @transform_6, window_bounds = array<i64: 128, 16>}]} {
    %c0 = arith.constant 0 : index
    %c0_0 = arith.constant 0 : index
    %0 = vector.load %arg1[%c0, %c0_0] : memref<128x32xf32, #tpu.memory_space<vmem>>, vector<128x32xf32>
    %c0_1 = arith.constant 0 : index
    %c0_2 = arith.constant 0 : index
    %1 = vector.load %arg3[%c0_1, %c0_2] : memref<1x32xf32, #tpu.memory_space<vmem>>, vector<1x32xf32>
    %2 = vector.broadcast %1 : vector<1x32xf32> to vector<128x32xf32>
    %3 = arith.mulf %0, %2 : vector<128x32xf32>
    %c0_3 = arith.constant 0 : index
    %c0_4 = arith.constant 0 : index
    %4 = vector.load %arg4[%c0_3, %c0_4] : memref<1x32xf32, #tpu.memory_space<vmem>>, vector<1x32xf32>
    %5 = vector.broadcast %4 : vector<1x32xf32> to vector<128x32xf32>
    %6 = arith.addf %3, %5 : vector<128x32xf32>
    %cst = arith.constant 0.000000e+00 : f32
    %7 = vector.broadcast %cst : f32 to vector<128x32xf32>
    %8 = arith.maximumf %6, %7 : vector<128x32xf32>
    %c0_5 = arith.constant 0 : index
    %c0_6 = arith.constant 0 : index
    %9 = vector.load %arg5[%c0_5, %c0_6] : memref<32x16xf32, #tpu.memory_space<vmem>>, vector<32x16xf32>
    %cst_7 = arith.constant dense<0.000000e+00> : vector<128x16xf32>
    %10 = tpu.matmul %8, %9, %cst_7 {dimension_numbers = #tpu.dot_dimension_numbers<[1], [0], [0], [1], [0, 0, 1, 1], [], []>} : vector<128x32xf32>, vector<32x16xf32>, vector<128x16xf32> -> vector<128x16xf32>
    %c0_8 = arith.constant 0 : index
    %c0_9 = arith.constant 0 : index
    %11 = vector.load %arg2[%c0_8, %c0_9] : memref<128x36xf32, #tpu.memory_space<vmem>>, vector<128x36xf32>
    %c0_10 = arith.constant 0 : index
    %c0_11 = arith.constant 0 : index
    %12 = vector.load %arg6[%c0_10, %c0_11] : memref<36x16xf32, #tpu.memory_space<vmem>>, vector<36x16xf32>
    %cst_12 = arith.constant dense<0.000000e+00> : vector<128x16xf32>
    %13 = tpu.matmul %11, %12, %cst_12 {dimension_numbers = #tpu.dot_dimension_numbers<[1], [0], [0], [1], [0, 0, 1, 1], [], []>} : vector<128x36xf32>, vector<36x16xf32>, vector<128x16xf32> -> vector<128x16xf32>
    %14 = arith.addf %10, %13 : vector<128x16xf32>
    %c0_13 = arith.constant 0 : index
    %c0_14 = arith.constant 0 : index
    %15 = vector.load %arg7[%c0_13, %c0_14] : memref<128x16xf32, #tpu.memory_space<vmem>>, vector<128x16xf32>
    tpu.vector_store %arg7[%c0_13, %c0_14], %14 {strides = array<i32>} : memref<128x16xf32, #tpu.memory_space<vmem>>, vector<128x16xf32>,
    return
  }
  func.func @transform_0(%arg0: i32) -> (i32, i32) {
    %c0_i32 = arith.constant 0 : i32
    %c0_i32_0 = arith.constant 0 : i32
    return %arg0, %c0_i32 : i32, i32
  }
  func.func @transform_1(%arg0: i32) -> (i32, i32) {
    %c0_i32 = arith.constant 0 : i32
    %c0_i32_0 = arith.constant 0 : i32
    return %arg0, %c0_i32 : i32, i32
  }
  func.func @transform_2(%arg0: i32) -> (i32, i32) {
    %c0_i32 = arith.constant 0 : i32
    %c0_i32_0 = arith.constant 0 : i32
    %c0_i32_1 = arith.constant 0 : i32
    return %c0_i32, %c0_i32_0 : i32, i32
  }
  func.func @transform_3(%arg0: i32) -> (i32, i32) {
    %c0_i32 = arith.constant 0 : i32
    %c0_i32_0 = arith.constant 0 : i32
    %c0_i32_1 = arith.constant 0 : i32
    return %c0_i32, %c0_i32_0 : i32, i32
  }
  func.func @transform_4(%arg0: i32) -> (i32, i32) {
    %c0_i32 = arith.constant 0 : i32
    %c0_i32_0 = arith.constant 0 : i32
    %c0_i32_1 = arith.constant 0 : i32
    return %c0_i32, %c0_i32_0 : i32, i32
  }
  func.func @transform_5(%arg0: i32) -> (i32, i32) {
    %c0_i32 = arith.constant 0 : i32
    %c0_i32_0 = arith.constant 0 : i32
    %c0_i32_1 = arith.constant 0 : i32
    return %c0_i32, %c0_i32_0 : i32, i32
  }
  func.func @transform_6(%arg0: i32) -> (i32, i32) {
    %c0_i32 = arith.constant 0 : i32
    %c0_i32_0 = arith.constant 0 : i32
    return %arg0, %c0_i32 : i32, i32
  }
}

</mosaic_0001>

<llo_original>
// kernel: residual_block_up.5
$region0: #{residual_block_up.5}
  #allocation0 [shape = 'u32[]', space=smem, size = 0x4, offset = 0x4, fixed_abs, tag = 'smem constant byte address 0x4 - core index']
  #allocation1 [shape = 'u32[144,128]{1,0:T(1,128)}', space=vmem, size = 0x12000, scoped, tag = 'internal scratch']
  #allocation2 [shape = 'f32[1,4]{1,0:T(1,128)}', space=vmem, size = 0x200, scoped, tag = 'scratch operand']
  #allocation3 [shape = 'f32[1,4]{1,0:T(1,128)}', space=vmem, size = 0x200, scoped, tag = 'scratch operand']
  %s0 = inlined_call_operand.vmem [shape: f32[512,4], index: 0, kind: input, shape index: {}]
  %s1 = inlined_call_operand.vmem [shape: f32[2,4], index: 1, kind: output, shape index: {}]
  %s2 = sld [smem:[#allocation0]]
  $region45: #{residual_block_up.5} parent=0
    _
  %s4 = ssub.s32 1, %s2
  %s5 = scalar_select 0, %s4, %s2
  loop: start=0, step=1, limit=6
  $region2: #{residual_block_up.5} parent=0 // loop_pre_header
    _
  $region3: #{residual_block_up.5} parent=0 // loop_header
    %s7 = sphi 0, %s11
    %p8 = scmp.ge.s32.totalorder %s7, 6
    %s17 = sphi 0, %s19
    %s20 = sphi 0, %s17
    %s21 = sphi 0, %s20
    %s37 = sphi 0, %s21
    %s41 = sphi 0, %s41
    %s43 = sphi 0, %s41
    %s44 = sphi 0, %s43
    %s58 = sphi 0, %s44
  $region4: #{residual_block_up.5} parent=0 // loop_header_branch
    %10 = sbr.rel (%p8) target = $region8
  $region5: #{residual_block_up.5} parent=0 // loop_body
    %s12 = ssub.s32 %s7, 1
    %s13 = ssub.s32 %s7, 2
    %s14 = sadd.s32 %s7, 1
    %s15 = ssub.s32 %s7, %s14
    %p16 = scmp.eq.s32.totalorder %s15, 0
    %s18 = sadd.s32 %s17, 1
    %s19 = scalar_select %p16, %s17, %s18
    %p22 = pneg %p16
    %p23 = scmp.eq.s32.totalorder %s7, 3
    %p24 = por %p22, %p23
    %p25 = scmp.ne.s32.totalorder %s17, %s20
    %p26 = scmp.eq.s32.totalorder %s7, 0
    %p27 = por %p25, %p26
    %p28 = scmp.ne.s32.totalorder %s17, %s20
    %p29 = scmp.eq.s32.totalorder %s12, 3
    %p30 = por %p28, %p29
    %p31 = scmp.ne.s32.totalorder %s20, %s21
    %p32 = scmp.eq.s32.totalorder %s12, 0
    %p33 = por %p31, %p32
    %p34 = scmp.ne.s32.totalorder %s20, %s21
    %p35 = scmp.eq.s32.totalorder %s13, 3
    %p36 = por %p34, %p35
    %p38 = scmp.ne.s32.totalorder %s21, %s37
    %p39 = scmp.eq.s32.totalorder %s13, 0
    %p40 = por %p38, %p39
    %s42 = sadd.s32 %s41, 1
    %p45 = scmp.eq.s32.totalorder %s7, 3
    %p46 = scmp.ne.s32.totalorder %s41, %s43
    %p47 = scmp.eq.s32.totalorder %s7, 0
    %p48 = por %p46, %p47
    %p49 = scmp.ne.s32.totalorder %s41, %s43
    %p50 = scmp.eq.s32.totalorder %s12, 3
    %p51 = por %p49, %p50
    %p52 = scmp.ne.s32.totalorder %s43, %s44
    %p53 = scmp.eq.s32.totalorder %s12, 0
    %p54 = por %p52, %p53
    %p55 = scmp.ne.s32.totalorder %s43, %s44
    %p56 = scmp.eq.s32.totalorder %s13, 3
    %p57 = por %p55, %p56
    %p59 = scmp.ne.s32.totalorder %s44, %s58
    %p60 = scmp.eq.s32.totalorder %s13, 0
    %p61 = por %p59, %p60
    %p62 = scmp.le.s32.totalorder 1, %s7
    %p63 = scmp.lt.s32.totalorder %s7, 5
    %p64 = pnand %p62, %p63
    %p65 = pneg %p64
    // Predicated region
    $region9: #{residual_block_up.5} parent=5 // pred_check
      _
    $region10: #{residual_block_up.5} parent=5 // pred_check_branch
      %67 = sbr.rel (%p64) target = $region12
    $region11: #{residual_block_up.5} parent=5 // pred_region
      %s68 = ssub.s32 %s7, 1
    $region12: #{residual_block_up.5} parent=5 // pred_fallthru
      _
    %p69 = scmp.lt.s32.totalorder %s7, 4
    // Predicated region
    $region13: #{residual_block_up.5} parent=5 // pred_check
      %p70 = pneg %p69
    $region14: #{residual_block_up.5} parent=5 // pred_check_branch
      %72 = sbr.rel (%p70) target = $region16
    $region15: #{residual_block_up.5} parent=5 // pred_region
      // Predicated region
      $region17: #{residual_block_up.5} parent=15 // pred_check
        %p73 = pneg %p27
      $region18: #{residual_block_up.5} parent=15 // pred_check_branch
        %75 = sbr.rel (%p73) target = $region20
      $region19: #{residual_block_up.5} parent=15 // pred_region
        %s76 = smul.u32 16, %s7
        %p77 = scmp.lt.s32.totalorder %s76, 63
        %s78 = scalar_select %p77, %s76, 63
        %s79 = smul.addr %s78, 8
        %s80 = scalar_lea.vmem %s0, %s79
        %s81 = smul.u32 16, %s7
      $region20: #{residual_block_up.5} parent=15 // pred_fallthru
        _
    $region16: #{residual_block_up.5} parent=5 // pred_fallthru
      _
    %p82 = scmp.le.s32.totalorder 1, %s7
    %p83 = scmp.lt.s32.totalorder %s7, 5
    %p84 = pnand %p82, %p83
    %p85 = pneg %p84
    // Predicated region
    $region21: #{residual_block_up.5} parent=5 // pred_check
      _
    $region22: #{residual_block_up.5} parent=5 // pred_check_branch
      %87 = sbr.rel (%p84) target = $region24
    $region23: #{residual_block_up.5} parent=5 // pred_region
      %s88 = ssub.s32 %s7, 1
      %s89 = smul.u32 16, %s12
      %p90 = scmp.lt.s32.totalorder %s89, 63
      %s91 = scalar_select %p90, %s89, 63
      %s92 = smul.addr %s91, 8
      %s93 = scalar_lea.vmem %s0, %s92
      %p94 = pneg %p33
      %p95 = pneg %p30
      %p96 = pneg %p54
      %p97 = pneg %p51
      %s98 = smul.u32 16, %s12
      %p99 = scmp.lt.s32.totalorder %s98, 63
      %s100 = scalar_select %p99, %s98, 63
      %s101 = smul.addr %s100, 8
      %s102 = scalar_lea.vmem %s0, %s101
      %s103 = smul.u32 16, %s12
      %p104 = scmp.eq.s32.totalorder %s12, 0
      // Predicated region
      $region25: #{residual_block_up.5} parent=23 // pred_check
        %p105 = pneg %p104
      $region26: #{residual_block_up.5} parent=23 // pred_check_branch
        %107 = sbr.rel (%p105) target = $region28
      $region27: #{residual_block_up.5} parent=23 // pred_region
        %vm108 = vcmask 24576
        %109 = vst.msk [vmem:[#allocation2] sm:$0x1] %vm108, 0.0
        %110 = vst.msk [vmem:[#allocation3] sm:$0x1] %vm108, 0.0
      $region28: #{residual_block_up.5} parent=23 // pred_fallthru
        _
      %v111 = vld [vmem:[%s102] sm:$0xff]
      %v112 = vld [vmem:[%s102 + $0x8] sm:$0xff]
      %v113 = vld [vmem:[%s102 + $0x10] sm:$0xff]
      %v114 = vld [vmem:[%s102 + $0x18] sm:$0xff]
      %v115 = vld [vmem:[%s102 + $0x20] sm:$0xff]
      %v116 = vld [vmem:[%s102 + $0x28] sm:$0xff]
      %v117 = vld [vmem:[%s102 + $0x30] sm:$0xff]
      %v118 = vld [vmem:[%s102 + $0x38] sm:$0xff]
      %v119 = vld [vmem:[%s102 + $0x40] sm:$0xff]
      %v120 = vld [vmem:[%s102 + $0x48] sm:$0xff]
      %v121 = vld [vmem:[%s102 + $0x50] sm:$0xff]
      %v122 = vld [vmem:[%s102 + $0x58] sm:$0xff]
      %v123 = vld [vmem:[%s102 + $0x60] sm:$0xff]
      %v124 = vld [vmem:[%s102 + $0x68] sm:$0xff]
      %v125 = vld [vmem:[%s102 + $0x70] sm:$0xff]
      %v126 = vld [vmem:[%s102 + $0x78] sm:$0xff]
      %v127 = vld [vmem:[#allocation2] sm:$0x1]
      %vm128 = vcmask 31744
      %v129 = vsel %vm128, %v111, 0.0
      %v130 = vsel %vm128, %v112, 0.0
      %v131 = vadd.f32 %v129, %v130
      %v132 = vsel %vm128, %v113, 0.0
      %v133 = vadd.f32 %v131, %v132
      %v134 = vsel %vm128, %v114, 0.0
      %v135 = vadd.f32 %v133, %v134
      %v136 = vsel %vm128, %v115, 0.0
      %v137 = vadd.f32 %v135, %v136
      %v138 = vsel %vm128, %v116, 0.0
      %v139 = vadd.f32 %v137, %v138
      %v140 = vsel %vm128, %v117, 0.0
      %v141 = vadd.f32 %v139, %v140
      %v142 = vsel %vm128, %v118, 0.0
      %v143 = vadd.f32 %v141, %v142
      %v144 = vsel %vm128, %v119, 0.0
      %v145 = vadd.f32 %v143, %v144
      %v146 = vsel %vm128, %v120, 0.0
      %v147 = vadd.f32 %v145, %v146
      %v148 = vsel %vm128, %v121, 0.0
      %v149 = vadd.f32 %v147, %v148
      %v150 = vsel %vm128, %v122, 0.0
      %v151 = vadd.f32 %v149, %v150
      %v152 = vsel %vm128, %v123, 0.0
      %v153 = vadd.f32 %v151, %v152
      %v154 = vsel %vm128, %v124, 0.0
      %v155 = vadd.f32 %v153, %v154
      %v156 = vsel %vm128, %v125, 0.0
      %v157 = vadd.f32 %v155, %v156
      %v158 = vsel %vm128, %v126, 0.0
      %v159 = vadd.f32 %v157, %v158
      %v160 = vrot.slane %v159, 4
      %v161 = vadd.f32 %v159, %v160
      %v162 = vrot.slane %v161, 2
      %v163 = vadd.f32 %v161, %v162
      %v164 = vrot.slane %v163, 1
      %v165 = vadd.f32 %v163, %v164
      %v166 = vadd.f32 %v127, %v165
      %vm167 = vcmask 24576
      %168 = vst.msk [vmem:[#allocation2] sm:$0x1] %vm167, %v166
      %v169 = vld [vmem:[#allocation3] sm:$0x1]
      %v170 = vmul.f32 %v111, %v111
      %v171 = vmul.f32 %v112, %v112
      %v172 = vmul.f32 %v113, %v113
      %v173 = vmul.f32 %v114, %v114
      %v174 = vmul.f32 %v115, %v115
      %v175 = vmul.f32 %v116, %v116
      %v176 = vmul.f32 %v117, %v117
      %v177 = vmul.f32 %v118, %v118
      %v178 = vmul.f32 %v119, %v119
      %v179 = vmul.f32 %v120, %v120
      %v180 = vmul.f32 %v121, %v121
      %v181 = vmul.f32 %v122, %v122
      %v182 = vmul.f32 %v123, %v123
      %v183 = vmul.f32 %v124, %v124
      %v184 = vmul.f32 %v125, %v125
      %v185 = vmul.f32 %v126, %v126
      %v186 = vsel %vm128, %v170, 0.0
      %v187 = vsel %vm128, %v171, 0.0
      %v188 = vadd.f32 %v186, %v187
      %v189 = vsel %vm128, %v172, 0.0
      %v190 = vadd.f32 %v188, %v189
      %v191 = vsel %vm128, %v173, 0.0
      %v192 = vadd.f32 %v190, %v191
      %v193 = vsel %vm128, %v174, 0.0
      %v194 = vadd.f32 %v192, %v193
      %v195 = vsel %vm128, %v175, 0.0
      %v196 = vadd.f32 %v194, %v195
      %v197 = vsel %vm128, %v176, 0.0
      %v198 = vadd.f32 %v196, %v197
      %v199 = vsel %vm128, %v177, 0.0
      %v200 = vadd.f32 %v198, %v199
      %v201 = vsel %vm128, %v178, 0.0
      %v202 = vadd.f32 %v200, %v201
      %v203 = vsel %vm128, %v179, 0.0
      %v204 = vadd.f32 %v202, %v203
      %v205 = vsel %vm128, %v180, 0.0
      %v206 = vadd.f32 %v204, %v205
      %v207 = vsel %vm128, %v181, 0.0
      %v208 = vadd.f32 %v206, %v207
      %v209 = vsel %vm128, %v182, 0.0
      %v210 = vadd.f32 %v208, %v209
      %v211 = vsel %vm128, %v183, 0.0
      %v212 = vadd.f32 %v210, %v211
      %v213 = vsel %vm128, %v184, 0.0
      %v214 = vadd.f32 %v212, %v213
      %v215 = vsel %vm128, %v185, 0.0
      %v216 = vadd.f32 %v214, %v215
      %v217 = vrot.slane %v216, 4
      %v218 = vadd.f32 %v216, %v217
      %v219 = vrot.slane %v218, 2
      %v220 = vadd.f32 %v218, %v219
      %v221 = vrot.slane %v220, 1
      %v222 = vadd.f32 %v220, %v221
      %v223 = vadd.f32 %v169, %v222
      %224 = vst.msk [vmem:[#allocation3] sm:$0x1] %vm167, %v223
      %p225 = scmp.eq.s32.totalorder %s12, 3
      // Predicated region
      $region29: #{residual_block_up.5} parent=23 // pred_check
        %p226 = pneg %p225
      $region30: #{residual_block_up.5} parent=23 // pred_check_branch
        %228 = sbr.rel (%p226) target = $region32
      $region31: #{residual_block_up.5} parent=23 // pred_region
        %v229 = vld [vmem:[#allocation2] sm:$0x1]
        %230 = vst.msk [vmem:[%s1] sm:$0x1] %vm167, %v229
        %v231 = vld [vmem:[#allocation3] sm:$0x1]
        %232 = vst.msk [vmem:[%s1 + $0x1] sm:$0x1] %vm167, %v231
      $region32: #{residual_block_up.5} parent=23 // pred_fallthru
        _
      // Predicated region
      $region33: #{residual_block_up.5} parent=23 // pred_check
        %p233 = pneg %p51
      $region34: #{residual_block_up.5} parent=23 // pred_check_branch
        %235 = sbr.rel (%p233) target = $region36
      $region35: #{residual_block_up.5} parent=23 // pred_region
        _
      $region36: #{residual_block_up.5} parent=23 // pred_fallthru
        _
      // Predicated region
      $region37: #{residual_block_up.5} parent=23 // pred_check
        %p236 = pneg %p51
      $region38: #{residual_block_up.5} parent=23 // pred_check_branch
        %238 = sbr.rel (%p236) target = $region40
      $region39: #{residual_block_up.5} parent=23 // pred_region
        _
      $region40: #{residual_block_up.5} parent=23 // pred_fallthru
        _
    $region24: #{residual_block_up.5} parent=5 // pred_fallthru
      _
    %p239 = scmp.le.s32.totalorder 2, %s7
    // Predicated region
    $region41: #{residual_block_up.5} parent=5 // pred_check
      %p240 = pneg %p239
    $region42: #{residual_block_up.5} parent=5 // pred_check_branch
      %242 = sbr.rel (%p240) target = $region44
    $region43: #{residual_block_up.5} parent=5 // pred_region
      %s243 = ssub.s32 %s7, 2
    $region44: #{residual_block_up.5} parent=5 // pred_fallthru
      _
  $region6: #{residual_block_up.5} parent=0 // loop_footer
    %s11 = sadd.s32 1, %s7
  $region7: #{residual_block_up.5} parent=0 // loop_footer_branch
    %6 = sbr.rel target = $region3
  $region8: #{residual_block_up.5} parent=0 // loop_exit
    _

// kernel: residual_block_up.6
$region0: #{residual_block_up.6}
  #allocation0 [shape = 'u32[]', space=smem, size = 0x4, offset = 0x4, fixed_abs, tag = 'smem constant byte address 0x4 - core index']
  #allocation1 [shape = 'u32[144,128]{1,0:T(1,128)}', space=vmem, size = 0x12000, scoped, tag = 'internal scratch']
  #allocation2 [shape = 'f32[1,8]{1,0:T(1,128)}', space=vmem, size = 0x200, scoped, tag = 'scratch operand']
  #allocation3 [shape = 'f32[1,8]{1,0:T(1,128)}', space=vmem, size = 0x200, scoped, tag = 'scratch operand']
  %s0 = inlined_call_operand.vmem [shape: f32[512,4], index: 0, kind: input, shape index: {}]
  %s1 = inlined_call_operand.vmem [shape: f32[1,4], index: 1, kind: input, shape index: {}]
  %s2 = inlined_call_operand.vmem [shape: f32[1,4], index: 2, kind: input, shape index: {}]
  %s3 = inlined_call_operand.vmem [shape: f32[4,8], index: 3, kind: input, shape index: {}]
  %s4 = inlined_call_operand.vmem [shape: f32[512,8], index: 4, kind: output, shape index: {0}]
  %s5 = inlined_call_operand.vmem [shape: f32[2,8], index: 5, kind: output, shape index: {1}]
  %6 = xla_tuple %s4, %s5
  %s7 = sld [smem:[#allocation0]]
  $region65: #{residual_block_up.6} parent=0
    _
  %s9 = ssub.s32 1, %s7
  %s10 = scalar_select 0, %s9, %s7
  loop: start=0, step=1, limit=6
  $region2: #{residual_block_up.6} parent=0 // loop_pre_header
    _
  $region3: #{residual_block_up.6} parent=0 // loop_header
    %s12 = sphi 0, %s16
    %p13 = scmp.ge.s32.totalorder %s12, 6
    %s22 = sphi 0, %s24
    %s25 = sphi 0, %s22
    %s26 = sphi 0, %s25
    %s42 = sphi 0, %s26
    %s46 = sphi 0, %s46
    %s48 = sphi 0, %s46
    %s49 = sphi 0, %s48
    %s63 = sphi 0, %s49
    %s67 = sphi 0, %s67
    %s69 = sphi 0, %s67
    %s70 = sphi 0, %s69
    %s84 = sphi 0, %s70
    %s88 = sphi 0, %s88
    %s90 = sphi 0, %s88
    %s91 = sphi 0, %s90
    %s105 = sphi 0, %s91
    %s111 = sphi 0, %s113
    %s114 = sphi 0, %s111
    %s115 = sphi 0, %s114
    %s131 = sphi 0, %s115
    %s135 = sphi 0, %s135
    %s137 = sphi 0, %s135
    %s138 = sphi 0, %s137
    %s152 = sphi 0, %s138
  $region4: #{residual_block_up.6} parent=0 // loop_header_branch
    %15 = sbr.rel (%p13) target = $region8
  $region5: #{residual_block_up.6} parent=0 // loop_body
    %s17 = ssub.s32 %s12, 1
    %s18 = ssub.s32 %s12, 2
    %s19 = sadd.s32 %s12, 1
    %s20 = ssub.s32 %s12, %s19
    %p21 = scmp.eq.s32.totalorder %s20, 0
    %s23 = sadd.s32 %s22, 1
    %s24 = scalar_select %p21, %s22, %s23
    %p27 = pneg %p21
    %p28 = scmp.eq.s32.totalorder %s12, 3
    %p29 = por %p27, %p28
    %p30 = scmp.ne.s32.totalorder %s22, %s25
    %p31 = scmp.eq.s32.totalorder %s12, 0
    %p32 = por %p30, %p31
    %p33 = scmp.ne.s32.totalorder %s22, %s25
    %p34 = scmp.eq.s32.totalorder %s17, 3
    %p35 = por %p33, %p34
    %p36 = scmp.ne.s32.totalorder %s25, %s26
    %p37 = scmp.eq.s32.totalorder %s17, 0
    %p38 = por %p36, %p37
    %p39 = scmp.ne.s32.totalorder %s25, %s26
    %p40 = scmp.eq.s32.totalorder %s18, 3
    %p41 = por %p39, %p40
    %p43 = scmp.ne.s32.totalorder %s26, %s42
    %p44 = scmp.eq.s32.totalorder %s18, 0
    %p45 = por %p43, %p44
    %s47 = sadd.s32 %s46, 1
    %p50 = scmp.eq.s32.totalorder %s12, 3
    %p51 = scmp.ne.s32.totalorder %s46, %s48
    %p52 = scmp.eq.s32.totalorder %s12, 0
    %p53 = por %p51, %p52
    %p54 = scmp.ne.s32.totalorder %s46, %s48
    %p55 = scmp.eq.s32.totalorder %s17, 3
    %p56 = por %p54, %p55
    %p57 = scmp.ne.s32.totalorder %s48, %s49
    %p58 = scmp.eq.s32.totalorder %s17, 0
    %p59 = por %p57, %p58
    %p60 = scmp.ne.s32.totalorder %s48, %s49
    %p61 = scmp.eq.s32.totalorder %s18, 3
    %p62 = por %p60, %p61
    %p64 = scmp.ne.s32.totalorder %s49, %s63
    %p65 = scmp.eq.s32.totalorder %s18, 0
    %p66 = por %p64, %p65
    %s68 = sadd.s32 %s67, 1
    %p71 = scmp.eq.s32.totalorder %s12, 3
    %p72 = scmp.ne.s32.totalorder %s67, %s69
    %p73 = scmp.eq.s32.totalorder %s12, 0
    %p74 = por %p72, %p73
    %p75 = scmp.ne.s32.totalorder %s67, %s69
    %p76 = scmp.eq.s32.totalorder %s17, 3
    %p77 = por %p75, %p76
    %p78 = scmp.ne.s32.totalorder %s69, %s70
    %p79 = scmp.eq.s32.totalorder %s17, 0
    %p80 = por %p78, %p79
    %p81 = scmp.ne.s32.totalorder %s69, %s70
    %p82 = scmp.eq.s32.totalorder %s18, 3
    %p83 = por %p81, %p82
    %p85 = scmp.ne.s32.totalorder %s70, %s84
    %p86 = scmp.eq.s32.totalorder %s18, 0
    %p87 = por %p85, %p86
    %s89 = sadd.s32 %s88, 1
    %p92 = scmp.eq.s32.totalorder %s12, 3
    %p93 = scmp.ne.s32.totalorder %s88, %s90
    %p94 = scmp.eq.s32.totalorder %s12, 0
    %p95 = por %p93, %p94
    %p96 = scmp.ne.s32.totalorder %s88, %s90
    %p97 = scmp.eq.s32.totalorder %s17, 3
    %p98 = por %p96, %p97
    %p99 = scmp.ne.s32.totalorder %s90, %s91
    %p100 = scmp.eq.s32.totalorder %s17, 0
    %p101 = por %p99, %p100
    %p102 = scmp.ne.s32.totalorder %s90, %s91
    %p103 = scmp.eq.s32.totalorder %s18, 3
    %p104 = por %p102, %p103
    %p106 = scmp.ne.s32.totalorder %s91, %s105
    %p107 = scmp.eq.s32.totalorder %s18, 0
    %p108 = por %p106, %p107
    %s109 = ssub.s32 %s12, %s19
    %p110 = scmp.eq.s32.totalorder %s109, 0
    %s112 = sadd.s32 %s111, 1
    %s113 = scalar_select %p110, %s111, %s112
    %p116 = pneg %p110
    %p117 = scmp.eq.s32.totalorder %s12, 3
    %p118 = por %p116, %p117
    %p119 = scmp.ne.s32.totalorder %s111, %s114
    %p120 = scmp.eq.s32.totalorder %s12, 0
    %p121 = por %p119, %p120
    %p122 = scmp.ne.s32.totalorder %s111, %s114
    %p123 = scmp.eq.s32.totalorder %s17, 3
    %p124 = por %p122, %p123
    %p125 = scmp.ne.s32.totalorder %s114, %s115
    %p126 = scmp.eq.s32.totalorder %s17, 0
    %p127 = por %p125, %p126
    %p128 = scmp.ne.s32.totalorder %s114, %s115
    %p129 = scmp.eq.s32.totalorder %s18, 3
    %p130 = por %p128, %p129
    %p132 = scmp.ne.s32.totalorder %s115, %s131
    %p133 = scmp.eq.s32.totalorder %s18, 0
    %p134 = por %p132, %p133
    %s136 = sadd.s32 %s135, 1
    %p139 = scmp.eq.s32.totalorder %s12, 3
    %p140 = scmp.ne.s32.totalorder %s135, %s137
    %p141 = scmp.eq.s32.totalorder %s12, 0
    %p142 = por %p140, %p141
    %p143 = scmp.ne.s32.totalorder %s135, %s137
    %p144 = scmp.eq.s32.totalorder %s17, 3
    %p145 = por %p143, %p144
    %p146 = scmp.ne.s32.totalorder %s137, %s138
    %p147 = scmp.eq.s32.totalorder %s17, 0
    %p148 = por %p146, %p147
    %p149 = scmp.ne.s32.totalorder %s137, %s138
    %p150 = scmp.eq.s32.totalorder %s18, 3
    %p151 = por %p149, %p150
    %p153 = scmp.ne.s32.totalorder %s138, %s152
    %p154 = scmp.eq.s32.totalorder %s18, 0
    %p155 = por %p153, %p154
    %p156 = scmp.le.s32.totalorder 1, %s12
    %p157 = scmp.lt.s32.totalorder %s12, 5
    %p158 = pnand %p156, %p157
    %p159 = pneg %p158
    // Predicated region
    $region9: #{residual_block_up.6} parent=5 // pred_check
      _
    $region10: #{residual_block_up.6} parent=5 // pred_check_branch
      %161 = sbr.rel (%p158) target = $region12
    $region11: #{residual_block_up.6} parent=5 // pred_region
      %s162 = ssub.s32 %s12, 1
      // Predicated region
      $region13: #{residual_block_up.6} parent=11 // pred_check
        %p163 = pneg %p59
      $region14: #{residual_block_up.6} parent=11 // pred_check_branch
        %165 = sbr.rel (%p163) target = $region16
      $region15: #{residual_block_up.6} parent=11 // pred_region
        _
      $region16: #{residual_block_up.6} parent=11 // pred_fallthru
        _
      // Predicated region
      $region17: #{residual_block_up.6} parent=11 // pred_check
        %p166 = pneg %p80
      $region18: #{residual_block_up.6} parent=11 // pred_check_branch
        %168 = sbr.rel (%p166) target = $region20
      $region19: #{residual_block_up.6} parent=11 // pred_region
        _
      $region20: #{residual_block_up.6} parent=11 // pred_fallthru
        _
      // Predicated region
      $region21: #{residual_block_up.6} parent=11 // pred_check
        %p169 = pneg %p101
      $region22: #{residual_block_up.6} parent=11 // pred_check_branch
        %171 = sbr.rel (%p169) target = $region24
      $region23: #{residual_block_up.6} parent=11 // pred_region
        _
      $region24: #{residual_block_up.6} parent=11 // pred_fallthru
        _
    $region12: #{residual_block_up.6} parent=5 // pred_fallthru
      _
    %p172 = scmp.lt.s32.totalorder %s12, 4
    // Predicated region
    $region25: #{residual_block_up.6} parent=5 // pred_check
      %p173 = pneg %p172
    $region26: #{residual_block_up.6} parent=5 // pred_check_branch
      %175 = sbr.rel (%p173) target = $region28
    $region27: #{residual_block_up.6} parent=5 // pred_region
      // Predicated region
      $region29: #{residual_block_up.6} parent=27 // pred_check
        %p176 = pneg %p32
      $region30: #{residual_block_up.6} parent=27 // pred_check_branch
        %178 = sbr.rel (%p176) target = $region32
      $region31: #{residual_block_up.6} parent=27 // pred_region
        %s179 = smul.u32 16, %s12
        %p180 = scmp.lt.s32.totalorder %s179, 63
        %s181 = scalar_select %p180, %s179, 63
        %s182 = smul.addr %s181, 8
        %s183 = scalar_lea.vmem %s0, %s182
        %s184 = smul.u32 16, %s12
      $region32: #{residual_block_up.6} parent=27 // pred_fallthru
        _
    $region28: #{residual_block_up.6} parent=5 // pred_fallthru
      _
    %p185 = scmp.le.s32.totalorder 1, %s12
    %p186 = scmp.lt.s32.totalorder %s12, 5
    %p187 = pnand %p185, %p186
    %p188 = pneg %p187
    // Predicated region
    $region33: #{residual_block_up.6} parent=5 // pred_check
      _
    $region34: #{residual_block_up.6} parent=5 // pred_check_branch
      %190 = sbr.rel (%p187) target = $region36
    $region35: #{residual_block_up.6} parent=5 // pred_region
      %s191 = ssub.s32 %s12, 1
      %s192 = smul.u32 16, %s17
      %p193 = scmp.lt.s32.totalorder %s192, 63
      %s194 = scalar_select %p193, %s192, 63
      %s195 = smul.addr %s194, 8
      %s196 = scalar_lea.vmem %s0, %s195
      %p197 = pneg %p38
      %p198 = pneg %p35
      %p199 = pneg %p59
      %p200 = pneg %p56
      %p201 = pneg %p80
      %p202 = pneg %p77
      %p203 = pneg %p101
      %p204 = pneg %p98
      %p205 = pneg %p127
      %p206 = pneg %p124
      %s207 = smul.u32 16, %s17
      %p208 = scmp.lt.s32.totalorder %s207, 63
      %s209 = scalar_select %p208, %s207, 63
      %s210 = smul.addr %s209, 8
      %s211 = scalar_lea.vmem %s4, %s210
      %p212 = pneg %p148
      %p213 = pneg %p145
      %s214 = smul.u32 16, %s17
      %p215 = scmp.lt.s32.totalorder %s214, 63
      %s216 = scalar_select %p215, %s214, 63
      %s217 = smul.addr %s216, 8
      %s218 = scalar_lea.vmem %s0, %s217
      %s219 = smul.u32 16, %s17
      %s220 = smul.u32 16, %s17
      %p221 = scmp.lt.s32.totalorder %s220, 63
      %s222 = scalar_select %p221, %s220, 63
      %s223 = smul.addr %s222, 8
      %s224 = scalar_lea.vmem %s4, %s223
      %s225 = smul.u32 16, %s17
      %p226 = scmp.eq.s32.totalorder %s17, 0
      // Predicated region
      $region37: #{residual_block_up.6} parent=35 // pred_check
        %p227 = pneg %p226
      $region38: #{residual_block_up.6} parent=35 // pred_check_branch
        %229 = sbr.rel (%p227) target = $region40
      $region39: #{residual_block_up.6} parent=35 // pred_region
        %vm230 = vcmask 57344
        %231 = vst.msk [vmem:[#allocation2] sm:$0x1] %vm230, 0.0
        %232 = vst.msk [vmem:[#allocation3] sm:$0x1] %vm230, 0.0
      $region40: #{residual_block_up.6} parent=35 // pred_fallthru
        _
      %v233 = vld [vmem:[%s218] sm:$0xff]
      %v234 = vld [vmem:[%s218 + $0x8] sm:$0xff]
      %v235 = vld [vmem:[%s218 + $0x10] sm:$0xff]
      %v236 = vld [vmem:[%s218 + $0x18] sm:$0xff]
      %v237 = vld [vmem:[%s218 + $0x20] sm:$0xff]
      %v238 = vld [vmem:[%s218 + $0x28] sm:$0xff]
      %v239 = vld [vmem:[%s218 + $0x30] sm:$0xff]
      %v240 = vld [vmem:[%s218 + $0x38] sm:$0xff]
      %v241 = vld [vmem:[%s218 + $0x40] sm:$0xff]
      %v242 = vld [vmem:[%s218 + $0x48] sm:$0xff]
      %v243 = vld [vmem:[%s218 + $0x50] sm:$0xff]
      %v244 = vld [vmem:[%s218 + $0x58] sm:$0xff]
      %v245 = vld [vmem:[%s218 + $0x60] sm:$0xff]
      %v246 = vld [vmem:[%s218 + $0x68] sm:$0xff]
      %v247 = vld [vmem:[%s218 + $0x70] sm:$0xff]
      %v248 = vld [vmem:[%s218 + $0x78] sm:$0xff]
      %v249 = vld [vmem:[%s1] sm:$0x1]
      %v251 = vlaneseq
      %v252 = vshrl.u32 %v251, 7
      %v253 = vsub.s32 0, %v252
      %v254 = vrot.slane %v249, %v253
      %v256 = vmul.f32 %v233, %v254
      %v257 = vmul.f32 %v234, %v254
      %v258 = vmul.f32 %v235, %v254
      %v259 = vmul.f32 %v236, %v254
      %v260 = vmul.f32 %v237, %v254
      %v261 = vmul.f32 %v238, %v254
      %v262 = vmul.f32 %v239, %v254
      %v263 = vmul.f32 %v240, %v254
      %v264 = vmul.f32 %v241, %v254
      %v265 = vmul.f32 %v242, %v254
      %v266 = vmul.f32 %v243, %v254
      %v267 = vmul.f32 %v244, %v254
      %v268 = vmul.f32 %v245, %v254
      %v269 = vmul.f32 %v246, %v254
      %v270 = vmul.f32 %v247, %v254
      %v271 = vmul.f32 %v248, %v254
      %v272 = vld [vmem:[%s2] sm:$0x1]
      %v274 = vlaneseq
      %v275 = vshrl.u32 %v274, 7
      %v276 = vsub.s32 0, %v275
      %v277 = vrot.slane %v272, %v276
      %v279 = vadd.f32 %v256, %v277
      %v280 = vadd.f32 %v257, %v277
      %v281 = vadd.f32 %v258, %v277
      %v282 = vadd.f32 %v259, %v277
      %v283 = vadd.f32 %v260, %v277
      %v284 = vadd.f32 %v261, %v277
      %v285 = vadd.f32 %v262, %v277
      %v286 = vadd.f32 %v263, %v277
      %v287 = vadd.f32 %v264, %v277
      %v288 = vadd.f32 %v265, %v277
      %v289 = vadd.f32 %v266, %v277
      %v290 = vadd.f32 %v267, %v277
      %v291 = vadd.f32 %v268, %v277
      %v292 = vadd.f32 %v269, %v277
      %v293 = vadd.f32 %v270, %v277
      %v294 = vadd.f32 %v271, %v277
      %v295 = vmax.f32 %v279, 0.0
      %v296 = vmax.f32 %v280, 0.0
      %v297 = vmax.f32 %v281, 0.0
      %v298 = vmax.f32 %v282, 0.0
      %v299 = vmax.f32 %v283, 0.0
      %v300 = vmax.f32 %v284, 0.0
      %v301 = vmax.f32 %v285, 0.0
      %v302 = vmax.f32 %v286, 0.0
      %v303 = vmax.f32 %v287, 0.0
      %v304 = vmax.f32 %v288, 0.0
      %v305 = vmax.f32 %v289, 0.0
      %v306 = vmax.f32 %v290, 0.0
      %v307 = vmax.f32 %v291, 0.0
      %v308 = vmax.f32 %v292, 0.0
      %v309 = vmax.f32 %v293, 0.0
      %v310 = vmax.f32 %v294, 0.0
      %v311 = vld [vmem:[%s3] sm:$0xf]
      %vm312 = vcmask 31744
      %v314 = vsel %vm312, %v295, 0
      %v317 = vsel %vm312, %v296, 0
      %v320 = vsel %vm312, %v297, 0
      %v323 = vsel %vm312, %v298, 0
      %v326 = vsel %vm312, %v299, 0
      %v329 = vsel %vm312, %v300, 0
      %v332 = vsel %vm312, %v301, 0
      %v335 = vsel %vm312, %v302, 0
      %v338 = vsel %vm312, %v303, 0
      %v341 = vsel %vm312, %v304, 0
      %v344 = vsel %vm312, %v305, 0
      %v347 = vsel %vm312, %v306, 0
      %v350 = vsel %vm312, %v307, 0
      %v353 = vsel %vm312, %v308, 0
      %v356 = vsel %vm312, %v309, 0
      %v359 = vsel %vm312, %v310, 0
      %vm361 = vcmask 1043456
      %v363 = vsel %vm361, %v311, 0
      %365 = vmatprep.subr.mxu0 0.0
      %366 = vmatpush1.msra.mxu0 %v363
      %367 = vmatprep.subr.mxu0 0.0
      %368 = vmatpush1.msra.mxu0 0.0
      %369 = vmatprep.subr.mxu0 0.0
      %370 = vmatpush1.msra.mxu0 0.0
      %371 = vmatprep.subr.mxu0 0.0
      %372 = vmatpush1.msra.mxu0 0.0
      %373 = vmatprep.subr.mxu0 0.0
      %374 = vmatpush1.msra.mxu0 0.0
      %375 = vmatprep.subr.mxu0 0.0
      %376 = vmatpush1.msra.mxu0 0.0
      %377 = vmatprep.subr.mxu0 0.0
      %378 = vmatpush1.msra.mxu0 0.0
      %379 = vmatprep.subr.mxu0 0.0
      %380 = vmatpush1.msra.mxu0 0.0
      %381 = vmatprep.subr.mxu0 0.0
      %382 = vmatpush1.msra.mxu0 0.0
      %383 = vmatprep.subr.mxu0 0.0
      %384 = vmatpush1.msra.mxu0 0.0
      %385 = vmatprep.subr.mxu0 0.0
      %386 = vmatpush1.msra.mxu0 0.0
      %387 = vmatprep.subr.mxu0 0.0
      %388 = vmatpush1.msra.mxu0 0.0
      %389 = vmatprep.subr.mxu0 0.0
      %390 = vmatpush1.msra.mxu0 0.0
      %391 = vmatprep.subr.mxu0 0.0
      %392 = vmatpush1.msra.mxu0 0.0
      %393 = vmatprep.subr.mxu0 0.0
      %394 = vmatpush1.msra.mxu0 0.0
      %395 = vmatprep.subr.mxu0 0.0
      %396 = vmatpush1.msra.mxu0 0.0
      %397 = vmatprep.subr.mxu0 0.0
      %398 = vmatpush1.msra.mxu0 0.0
      %399 = vmatprep.subr.mxu0 0.0
      %400 = vmatpush1.msra.mxu0 0.0
      %401 = vmatprep.subr.mxu0 0.0
      %402 = vmatpush1.msra.mxu0 0.0
      %403 = vmatprep.subr.mxu0 0.0
      %404 = vmatpush1.msra.mxu0 0.0
      %405 = vmatprep.subr.mxu0 0.0
      %406 = vmatpush1.msra.mxu0 0.0
      %407 = vmatprep.subr.mxu0 0.0
      %408 = vmatpush1.msra.mxu0 0.0
      %409 = vmatprep.subr.mxu0 0.0
      %410 = vmatpush1.msra.mxu0 0.0
      %411 = vmatprep.subr.mxu0 0.0
      %412 = vmatpush1.msra.mxu0 0.0
      %413 = vmatprep.subr.mxu0 0.0
      %414 = vmatpush1.msra.mxu0 0.0
      %415 = vmatprep.subr.mxu0 0.0
      %416 = vmatpush1.msra.mxu0 0.0
      %417 = vmatprep.subr.mxu0 0.0
      %418 = vmatpush1.msra.mxu0 0.0
      %419 = vmatprep.subr.mxu0 0.0
      %420 = vmatpush1.msra.mxu0 0.0
      %421 = vmatprep.subr.mxu0 0.0
      %422 = vmatpush1.msra.mxu0 0.0
      %423 = vmatprep.subr.mxu0 0.0
      %424 = vmatpush1.msra.mxu0 0.0
      %425 = vmatprep.subr.mxu0 0.0
      %426 = vmatpush1.msra.mxu0 0.0
      %427 = vmatprep.subr.mxu0 0.0
      %428 = vmatpush1.msra.mxu0 0.0
      %429 = vmatprep.mubr.f32.mxu0 0.0
      %430 = vmatmul.mubr.f32.gmra.mrb[0].mxu0 %v314
      %v431 = vpop.f32.mrb[0].mxu0
      %v432 = vadd.f32 0.0, %v431
      %v433 = vpop.f32.mrb[0].mxu0
      %434 = vmatprep.mubr.f32.mxu0 0.0
      %435 = vmatmul.mubr.f32.gmra.mrb[0].mxu0 %v317
      %v436 = vpop.f32.mrb[0].mxu0
      %v437 = vadd.f32 0.0, %v436
      %v438 = vpop.f32.mrb[0].mxu0
      %439 = vmatprep.mubr.f32.mxu0 0.0
      %440 = vmatmul.mubr.f32.gmra.mrb[0].mxu0 %v320
      %v441 = vpop.f32.mrb[0].mxu0
      %v442 = vadd.f32 0.0, %v441
      %v443 = vpop.f32.mrb[0].mxu0
      %444 = vmatprep.mubr.f32.mxu0 0.0
      %445 = vmatmul.mubr.f32.gmra.mrb[0].mxu0 %v323
      %v446 = vpop.f32.mrb[0].mxu0
      %v447 = vadd.f32 0.0, %v446
      %v448 = vpop.f32.mrb[0].mxu0
      %449 = vmatprep.mubr.f32.mxu0 0.0
      %450 = vmatmul.mubr.f32.gmra.mrb[0].mxu0 %v326
      %v451 = vpop.f32.mrb[0].mxu0
      %v452 = vadd.f32 0.0, %v451
      %v453 = vpop.f32.mrb[0].mxu0
      %454 = vmatprep.mubr.f32.mxu0 0.0
      %455 = vmatmul.mubr.f32.gmra.mrb[0].mxu0 %v329
      %v456 = vpop.f32.mrb[0].mxu0
      %v457 = vadd.f32 0.0, %v456
      %v458 = vpop.f32.mrb[0].mxu0
      %459 = vmatprep.mubr.f32.mxu0 0.0
      %460 = vmatmul.mubr.f32.gmra.mrb[0].mxu0 %v332
      %v461 = vpop.f32.mrb[0].mxu0
      %v462 = vadd.f32 0.0, %v461
      %v463 = vpop.f32.mrb[0].mxu0
      %464 = vmatprep.mubr.f32.mxu0 0.0
      %465 = vmatmul.mubr.f32.gmra.mrb[0].mxu0 %v335
      %v466 = vpop.f32.mrb[0].mxu0
      %v467 = vadd.f32 0.0, %v466
      %v468 = vpop.f32.mrb[0].mxu0
      %469 = vmatprep.mubr.f32.mxu0 0.0
      %470 = vmatmul.mubr.f32.gmra.mrb[0].mxu0 %v338
      %v471 = vpop.f32.mrb[0].mxu0
      %v472 = vadd.f32 0.0, %v471
      %v473 = vpop.f32.mrb[0].mxu0
      %474 = vmatprep.mubr.f32.mxu0 0.0
      %475 = vmatmul.mubr.f32.gmra.mrb[0].mxu0 %v341
      %v476 = vpop.f32.mrb[0].mxu0
      %v477 = vadd.f32 0.0, %v476
      %v478 = vpop.f32.mrb[0].mxu0
      %479 = vmatprep.mubr.f32.mxu0 0.0
      %480 = vmatmul.mubr.f32.gmra.mrb[0].mxu0 %v344
      %v481 = vpop.f32.mrb[0].mxu0
      %v482 = vadd.f32 0.0, %v481
      %v483 = vpop.f32.mrb[0].mxu0
      %484 = vmatprep.mubr.f32.mxu0 0.0
      %485 = vmatmul.mubr.f32.gmra.mrb[0].mxu0 %v347
      %v486 = vpop.f32.mrb[0].mxu0
      %v487 = vadd.f32 0.0, %v486
      %v488 = vpop.f32.mrb[0].mxu0
      %489 = vmatprep.mubr.f32.mxu0 0.0
      %490 = vmatmul.mubr.f32.gmra.mrb[0].mxu0 %v350
      %v491 = vpop.f32.mrb[0].mxu0
      %v492 = vadd.f32 0.0, %v491
      %v493 = vpop.f32.mrb[0].mxu0
      %494 = vmatprep.mubr.f32.mxu0 0.0
      %495 = vmatmul.mubr.f32.gmra.mrb[0].mxu0 %v353
      %v496 = vpop.f32.mrb[0].mxu0
      %v497 = vadd.f32 0.0, %v496
      %v498 = vpop.f32.mrb[0].mxu0
      %499 = vmatprep.mubr.f32.mxu0 0.0
      %500 = vmatmul.mubr.f32.gmra.mrb[0].mxu0 %v356
      %v501 = vpop.f32.mrb[0].mxu0
      %v502 = vadd.f32 0.0, %v501
      %v503 = vpop.f32.mrb[0].mxu0
      %504 = vmatprep.mubr.f32.mxu0 0.0
      %505 = vmatmul.mubr.f32.gmra.mrb[0].mxu0 %v359
      %v506 = vpop.f32.mrb[0].mxu0
      %v507 = vadd.f32 0.0, %v506
      %v508 = vpop.f32.mrb[0].mxu0
      %509 = vdwg.mxu0
      %s510 = smul.u32 %s17, 128
      %v511 = vlaneseq
      %v512 = vshrl.u32 %v511, 7
      %v513 = vadd.s32 %v512, 8
      %v514 = vadd.s32 %v512, 16
      %v515 = vadd.s32 %v512, 24
      %v516 = vadd.s32 %v512, 32
      %v517 = vadd.s32 %v512, 40
      %v518 = vadd.s32 %v512, 48
      %v519 = vadd.s32 %v512, 56
      %v520 = vadd.s32 %v512, 64
      %v521 = vadd.s32 %v512, 72
      %v522 = vadd.s32 %v512, 80
      %v523 = vadd.s32 %v512, 88
      %v524 = vadd.s32 %v512, 96
      %v525 = vadd.s32 %v512, 104
      %v526 = vadd.s32 %v512, 112
      %v527 = vadd.s32 %v512, 120
      %v528 = vstv %s510
      %v529 = vadd.s32 %v528, %v512
      %v530 = vadd.s32 %v528, %v513
      %v531 = vadd.s32 %v528, %v514
      %v532 = vadd.s32 %v528, %v515
      %v533 = vadd.s32 %v528, %v516
      %v534 = vadd.s32 %v528, %v517
      %v535 = vadd.s32 %v528, %v518
      %v536 = vadd.s32 %v528, %v519
      %v537 = vadd.s32 %v528, %v520
      %v538 = vadd.s32 %v528, %v521
      %v539 = vadd.s32 %v528, %v522
      %v540 = vadd.s32 %v528, %v523
      %v541 = vadd.s32 %v528, %v524
      %v542 = vadd.s32 %v528, %v525
      %v543 = vadd.s32 %v528, %v526
      %v544 = vadd.s32 %v528, %v527
      %vm545 = vcmp.lt.s32.totalorder %v529, 512
      %vm546 = vcmp.lt.s32.totalorder %v530, 512
      %vm547 = vcmp.lt.s32.totalorder %v531, 512
      %vm548 = vcmp.lt.s32.totalorder %v532, 512
      %vm549 = vcmp.lt.s32.totalorder %v533, 512
      %vm550 = vcmp.lt.s32.totalorder %v534, 512
      %vm551 = vcmp.lt.s32.totalorder %v535, 512
      %vm552 = vcmp.lt.s32.totalorder %v536, 512
      %vm553 = vcmp.lt.s32.totalorder %v537, 512
      %vm554 = vcmp.lt.s32.totalorder %v538, 512
      %vm555 = vcmp.lt.s32.totalorder %v539, 512
      %vm556 = vcmp.lt.s32.totalorder %v540, 512
      %vm557 = vcmp.lt.s32.totalorder %v541, 512
      %vm558 = vcmp.lt.s32.totalorder %v542, 512
      %vm559 = vcmp.lt.s32.totalorder %v543, 512
      %vm560 = vcmp.lt.s32.totalorder %v544, 512
      %v561 = vsel %vm545, 1, 0
      %v562 = vsel %vm546, 1, 0
      %v563 = vsel %vm547, 1, 0
      %v564 = vsel %vm548, 1, 0
      %v565 = vsel %vm549, 1, 0
      %v566 = vsel %vm550, 1, 0
      %v567 = vsel %vm551, 1, 0
      %v568 = vsel %vm552, 1, 0
      %v569 = vsel %vm553, 1, 0
      %v570 = vsel %vm554, 1, 0
      %v571 = vsel %vm555, 1, 0
      %v572 = vsel %vm556, 1, 0
      %v573 = vsel %vm557, 1, 0
      %v574 = vsel %vm558, 1, 0
      %v575 = vsel %vm559, 1, 0
      %v576 = vsel %vm560, 1, 0
      %vm577 = vcmp.eq.s32.totalorder %v561, 1
      %vm578 = vcmp.eq.s32.totalorder %v562, 1
      %vm579 = vcmp.eq.s32.totalorder %v563, 1
      %vm580 = vcmp.eq.s32.totalorder %v564, 1
      %vm581 = vcmp.eq.s32.totalorder %v565, 1
      %vm582 = vcmp.eq.s32.totalorder %v566, 1
      %vm583 = vcmp.eq.s32.totalorder %v567, 1
      %vm584 = vcmp.eq.s32.totalorder %v568, 1
      %vm585 = vcmp.eq.s32.totalorder %v569, 1
      %vm586 = vcmp.eq.s32.totalorder %v570, 1
      %vm587 = vcmp.eq.s32.totalorder %v571, 1
      %vm588 = vcmp.eq.s32.totalorder %v572, 1
      %vm589 = vcmp.eq.s32.totalorder %v573, 1
      %vm590 = vcmp.eq.s32.totalorder %v574, 1
      %vm591 = vcmp.eq.s32.totalorder %v575, 1
      %vm592 = vcmp.eq.s32.totalorder %v576, 1
      %v593 = vsel %vm577, %v432, 0.0
      %v594 = vsel %vm578, %v437, 0.0
      %v595 = vsel %vm579, %v442, 0.0
      %v596 = vsel %vm580, %v447, 0.0
      %v597 = vsel %vm581, %v452, 0.0
      %v598 = vsel %vm582, %v457, 0.0
      %v599 = vsel %vm583, %v462, 0.0
      %v600 = vsel %vm584, %v467, 0.0
      %v601 = vsel %vm585, %v472, 0.0
      %v602 = vsel %vm586, %v477, 0.0
      %v603 = vsel %vm587, %v482, 0.0
      %v604 = vsel %vm588, %v487, 0.0
      %v605 = vsel %vm589, %v492, 0.0
      %v606 = vsel %vm590, %v497, 0.0
      %v607 = vsel %vm591, %v502, 0.0
      %v608 = vsel %vm592, %v507, 0.0
      %vm609 = vcmask 64512
      %610 = vst.msk [vmem:[%s224] sm:$0xff] %vm609, %v593
      %611 = vst.msk [vmem:[%s224 + $0x8] sm:$0xff] %vm609, %v594
      %612 = vst.msk [vmem:[%s224 + $0x10] sm:$0xff] %vm609, %v595
      %613 = vst.msk [vmem:[%s224 + $0x18] sm:$0xff] %vm609, %v596
      %614 = vst.msk [vmem:[%s224 + $0x20] sm:$0xff] %vm609, %v597
      %615 = vst.msk [vmem:[%s224 + $0x28] sm:$0xff] %vm609, %v598
      %616 = vst.msk [vmem:[%s224 + $0x30] sm:$0xff] %vm609, %v599
      %617 = vst.msk [vmem:[%s224 + $0x38] sm:$0xff] %vm609, %v600
      %618 = vst.msk [vmem:[%s224 + $0x40] sm:$0xff] %vm609, %v601
      %619 = vst.msk [vmem:[%s224 + $0x48] sm:$0xff] %vm609, %v602
      %620 = vst.msk [vmem:[%s224 + $0x50] sm:$0xff] %vm609, %v603
      %621 = vst.msk [vmem:[%s224 + $0x58] sm:$0xff] %vm609, %v604
      %622 = vst.msk [vmem:[%s224 + $0x60] sm:$0xff] %vm609, %v605
      %623 = vst.msk [vmem:[%s224 + $0x68] sm:$0xff] %vm609, %v606
      %624 = vst.msk [vmem:[%s224 + $0x70] sm:$0xff] %vm609, %v607
      %625 = vst.msk [vmem:[%s224 + $0x78] sm:$0xff] %vm609, %v608
      %v626 = vld [vmem:[#allocation2] sm:$0x1]
      %v627 = vsel %vm609, %v593, 0.0
      %v628 = vsel %vm609, %v594, 0.0
      %v629 = vadd.f32 %v627, %v628
      %v630 = vsel %vm609, %v595, 0.0
      %v631 = vadd.f32 %v629, %v630
      %v632 = vsel %vm609, %v596, 0.0
      %v633 = vadd.f32 %v631, %v632
      %v634 = vsel %vm609, %v597, 0.0
      %v635 = vadd.f32 %v633, %v634
      %v636 = vsel %vm609, %v598, 0.0
      %v637 = vadd.f32 %v635, %v636
      %v638 = vsel %vm609, %v599, 0.0
      %v639 = vadd.f32 %v637, %v638
      %v640 = vsel %vm609, %v600, 0.0
      %v641 = vadd.f32 %v639, %v640
      %v642 = vsel %vm609, %v601, 0.0
      %v643 = vadd.f32 %v641, %v642
      %v644 = vsel %vm609, %v602, 0.0
      %v645 = vadd.f32 %v643, %v644
      %v646 = vsel %vm609, %v603, 0.0
      %v647 = vadd.f32 %v645, %v646
      %v648 = vsel %vm609, %v604, 0.0
      %v649 = vadd.f32 %v647, %v648
      %v650 = vsel %vm609, %v605, 0.0
      %v651 = vadd.f32 %v649, %v650
      %v652 = vsel %vm609, %v606, 0.0
      %v653 = vadd.f32 %v651, %v652
      %v654 = vsel %vm609, %v607, 0.0
      %v655 = vadd.f32 %v653, %v654
      %v656 = vsel %vm609, %v608, 0.0
      %v657 = vadd.f32 %v655, %v656
      %v658 = vrot.slane %v657, 4
      %v659 = vadd.f32 %v657, %v658
      %v660 = vrot.slane %v659, 2
      %v661 = vadd.f32 %v659, %v660
      %v662 = vrot.slane %v661, 1
      %v663 = vadd.f32 %v661, %v662
      %v664 = vadd.f32 %v626, %v663
      %vm665 = vcmask 57344
      %666 = vst.msk [vmem:[#allocation2] sm:$0x1] %vm665, %v664
      %v667 = vld [vmem:[#allocation3] sm:$0x1]
      %v668 = vmul.f32 %v593, %v593
      %v669 = vmul.f32 %v594, %v594
      %v670 = vmul.f32 %v595, %v595
      %v671 = vmul.f32 %v596, %v596
      %v672 = vmul.f32 %v597, %v597
      %v673 = vmul.f32 %v598, %v598
      %v674 = vmul.f32 %v599, %v599
      %v675 = vmul.f32 %v600, %v600
      %v676 = vmul.f32 %v601, %v601
      %v677 = vmul.f32 %v602, %v602
      %v678 = vmul.f32 %v603, %v603
      %v679 = vmul.f32 %v604, %v604
      %v680 = vmul.f32 %v605, %v605
      %v681 = vmul.f32 %v606, %v606
      %v682 = vmul.f32 %v607, %v607
      %v683 = vmul.f32 %v608, %v608
      %v684 = vsel %vm609, %v668, 0.0
      %v685 = vsel %vm609, %v669, 0.0
      %v686 = vadd.f32 %v684, %v685
      %v687 = vsel %vm609, %v670, 0.0
      %v688 = vadd.f32 %v686, %v687
      %v689 = vsel %vm609, %v671, 0.0
      %v690 = vadd.f32 %v688, %v689
      %v691 = vsel %vm609, %v672, 0.0
      %v692 = vadd.f32 %v690, %v691
      %v693 = vsel %vm609, %v673, 0.0
      %v694 = vadd.f32 %v692, %v693
      %v695 = vsel %vm609, %v674, 0.0
      %v696 = vadd.f32 %v694, %v695
      %v697 = vsel %vm609, %v675, 0.0
      %v698 = vadd.f32 %v696, %v697
      %v699 = vsel %vm609, %v676, 0.0
      %v700 = vadd.f32 %v698, %v699
      %v701 = vsel %vm609, %v677, 0.0
      %v702 = vadd.f32 %v700, %v701
      %v703 = vsel %vm609, %v678, 0.0
      %v704 = vadd.f32 %v702, %v703
      %v705 = vsel %vm609, %v679, 0.0
      %v706 = vadd.f32 %v704, %v705
      %v707 = vsel %vm609, %v680, 0.0
      %v708 = vadd.f32 %v706, %v707
      %v709 = vsel %vm609, %v681, 0.0
      %v710 = vadd.f32 %v708, %v709
      %v711 = vsel %vm609, %v682, 0.0
      %v712 = vadd.f32 %v710, %v711
      %v713 = vsel %vm609, %v683, 0.0
      %v714 = vadd.f32 %v712, %v713
      %v715 = vrot.slane %v714, 4
      %v716 = vadd.f32 %v714, %v715
      %v717 = vrot.slane %v716, 2
      %v718 = vadd.f32 %v716, %v717
      %v719 = vrot.slane %v718, 1
      %v720 = vadd.f32 %v718, %v719
      %v721 = vadd.f32 %v667, %v720
      %722 = vst.msk [vmem:[#allocation3] sm:$0x1] %vm665, %v721
      %p723 = scmp.eq.s32.totalorder %s17, 3
      // Predicated region
      $region41: #{residual_block_up.6} parent=35 // pred_check
        %p724 = pneg %p723
      $region42: #{residual_block_up.6} parent=35 // pred_check_branch
        %726 = sbr.rel (%p724) target = $region44
      $region43: #{residual_block_up.6} parent=35 // pred_region
        %v727 = vld [vmem:[#allocation2] sm:$0x1]
        %728 = vst.msk [vmem:[%s5] sm:$0x1] %vm665, %v727
        %v729 = vld [vmem:[#allocation3] sm:$0x1]
        %730 = vst.msk [vmem:[%s5 + $0x1] sm:$0x1] %vm665, %v729
      $region44: #{residual_block_up.6} parent=35 // pred_fallthru
        _
      %s731 = smul.u32 16, %s17
      %p732 = scmp.lt.s32.totalorder %s731, 63
      %s733 = scalar_select %p732, %s731, 63
      %s734 = smul.addr %s733, 8
      %s735 = scalar_lea.vmem %s4, %s734
      // Predicated region
      $region45: #{residual_block_up.6} parent=35 // pred_check
        %p736 = pneg %p124
      $region46: #{residual_block_up.6} parent=35 // pred_check_branch
        %738 = sbr.rel (%p736) target = $region48
      $region47: #{residual_block_up.6} parent=35 // pred_region
        %s739 = smul.u32 16, %s17
      $region48: #{residual_block_up.6} parent=35 // pred_fallthru
        _
      // Predicated region
      $region49: #{residual_block_up.6} parent=35 // pred_check
        %p740 = pneg %p145
      $region50: #{residual_block_up.6} parent=35 // pred_check_branch
        %742 = sbr.rel (%p740) target = $region52
      $region51: #{residual_block_up.6} parent=35 // pred_region
        _
      $region52: #{residual_block_up.6} parent=35 // pred_fallthru
        _
      // Predicated region
      $region53: #{residual_block_up.6} parent=35 // pred_check
        %p743 = pneg %p145
      $region54: #{residual_block_up.6} parent=35 // pred_check_branch
        %745 = sbr.rel (%p743) target = $region56
      $region55: #{residual_block_up.6} parent=35 // pred_region
        _
      $region56: #{residual_block_up.6} parent=35 // pred_fallthru
        _
    $region36: #{residual_block_up.6} parent=5 // pred_fallthru
      _
    %p746 = scmp.le.s32.totalorder 2, %s12
    // Predicated region
    $region57: #{residual_block_up.6} parent=5 // pred_check
      %p747 = pneg %p746
    $region58: #{residual_block_up.6} parent=5 // pred_check_branch
      %749 = sbr.rel (%p747) target = $region60
    $region59: #{residual_block_up.6} parent=5 // pred_region
      %s750 = ssub.s32 %s12, 2
      // Predicated region
      $region61: #{residual_block_up.6} parent=59 // pred_check
        %p751 = pneg %p130
      $region62: #{residual_block_up.6} parent=59 // pred_check_branch
        %753 = sbr.rel (%p751) target = $region64
      $region63: #{residual_block_up.6} parent=59 // pred_region
        %s754 = smul.u32 16, %s18
        %p755 = scmp.lt.s32.totalorder %s754, 63
        %s756 = scalar_select %p755, %s754, 63
        %s757 = smul.addr %s756, 8
        %s758 = scalar_lea.vmem %s4, %s757
      $region64: #{residual_block_up.6} parent=59 // pred_fallthru
        _
    $region60: #{residual_block_up.6} parent=5 // pred_fallthru
      _
  $region6: #{residual_block_up.6} parent=0 // loop_footer
    %s16 = sadd.s32 1, %s12
  $region7: #{residual_block_up.6} parent=0 // loop_footer_branch
    %11 = sbr.rel target = $region3
  $region8: #{residual_block_up.6} parent=0 // loop_exit
    _

// kernel: residual_block_up.7
$region0: #{residual_block_up.7}
  #allocation0 [shape = 'u32[]', space=smem, size = 0x4, offset = 0x4, fixed_abs, tag = 'smem constant byte address 0x4 - core index']
  #allocation1 [shape = 'u32[144,128]{1,0:T(1,128)}', space=vmem, size = 0x12000, scoped, tag = 'internal scratch']
  %s0 = inlined_call_operand.vmem [shape: f32[512,8], index: 0, kind: input, shape index: {}]
  %s1 = inlined_call_operand.vmem [shape: f32[1,8], index: 1, kind: input, shape index: {}]
  %s2 = inlined_call_operand.vmem [shape: f32[1,8], index: 2, kind: input, shape index: {}]
  %s3 = inlined_call_operand.vmem [shape: f32[512,8], index: 3, kind: output, shape index: {}]
  %s4 = sld [smem:[#allocation0]]
  $region45: #{residual_block_up.7} parent=0
    _
  %s6 = ssub.s32 1, %s4
  %s7 = scalar_select 0, %s6, %s4
  loop: start=0, step=1, limit=6
  $region2: #{residual_block_up.7} parent=0 // loop_pre_header
    _
  $region3: #{residual_block_up.7} parent=0 // loop_header
    %s9 = sphi 0, %s13
    %p10 = scmp.ge.s32.totalorder %s9, 6
    %s19 = sphi 0, %s21
    %s22 = sphi 0, %s19
    %s23 = sphi 0, %s22
    %s39 = sphi 0, %s23
    %s43 = sphi 0, %s43
    %s45 = sphi 0, %s43
    %s46 = sphi 0, %s45
    %s60 = sphi 0, %s46
    %s64 = sphi 0, %s64
    %s66 = sphi 0, %s64
    %s67 = sphi 0, %s66
    %s81 = sphi 0, %s67
    %s87 = sphi 0, %s89
    %s90 = sphi 0, %s87
    %s91 = sphi 0, %s90
    %s107 = sphi 0, %s91
  $region4: #{residual_block_up.7} parent=0 // loop_header_branch
    %12 = sbr.rel (%p10) target = $region8
  $region5: #{residual_block_up.7} parent=0 // loop_body
    %s14 = ssub.s32 %s9, 1
    %s15 = ssub.s32 %s9, 2
    %s16 = sadd.s32 %s9, 1
    %s17 = ssub.s32 %s9, %s16
    %p18 = scmp.eq.s32.totalorder %s17, 0
    %s20 = sadd.s32 %s19, 1
    %s21 = scalar_select %p18, %s19, %s20
    %p24 = pneg %p18
    %p25 = scmp.eq.s32.totalorder %s9, 3
    %p26 = por %p24, %p25
    %p27 = scmp.ne.s32.totalorder %s19, %s22
    %p28 = scmp.eq.s32.totalorder %s9, 0
    %p29 = por %p27, %p28
    %p30 = scmp.ne.s32.totalorder %s19, %s22
    %p31 = scmp.eq.s32.totalorder %s14, 3
    %p32 = por %p30, %p31
    %p33 = scmp.ne.s32.totalorder %s22, %s23
    %p34 = scmp.eq.s32.totalorder %s14, 0
    %p35 = por %p33, %p34
    %p36 = scmp.ne.s32.totalorder %s22, %s23
    %p37 = scmp.eq.s32.totalorder %s15, 3
    %p38 = por %p36, %p37
    %p40 = scmp.ne.s32.totalorder %s23, %s39
    %p41 = scmp.eq.s32.totalorder %s15, 0
    %p42 = por %p40, %p41
    %s44 = sadd.s32 %s43, 1
    %p47 = scmp.eq.s32.totalorder %s9, 3
    %p48 = scmp.ne.s32.totalorder %s43, %s45
    %p49 = scmp.eq.s32.totalorder %s9, 0
    %p50 = por %p48, %p49
    %p51 = scmp.ne.s32.totalorder %s43, %s45
    %p52 = scmp.eq.s32.totalorder %s14, 3
    %p53 = por %p51, %p52
    %p54 = scmp.ne.s32.totalorder %s45, %s46
    %p55 = scmp.eq.s32.totalorder %s14, 0
    %p56 = por %p54, %p55
    %p57 = scmp.ne.s32.totalorder %s45, %s46
    %p58 = scmp.eq.s32.totalorder %s15, 3
    %p59 = por %p57, %p58
    %p61 = scmp.ne.s32.totalorder %s46, %s60
    %p62 = scmp.eq.s32.totalorder %s15, 0
    %p63 = por %p61, %p62
    %s65 = sadd.s32 %s64, 1
    %p68 = scmp.eq.s32.totalorder %s9, 3
    %p69 = scmp.ne.s32.totalorder %s64, %s66
    %p70 = scmp.eq.s32.totalorder %s9, 0
    %p71 = por %p69, %p70
    %p72 = scmp.ne.s32.totalorder %s64, %s66
    %p73 = scmp.eq.s32.totalorder %s14, 3
    %p74 = por %p72, %p73
    %p75 = scmp.ne.s32.totalorder %s66, %s67
    %p76 = scmp.eq.s32.totalorder %s14, 0
    %p77 = por %p75, %p76
    %p78 = scmp.ne.s32.totalorder %s66, %s67
    %p79 = scmp.eq.s32.totalorder %s15, 3
    %p80 = por %p78, %p79
    %p82 = scmp.ne.s32.totalorder %s67, %s81
    %p83 = scmp.eq.s32.totalorder %s15, 0
    %p84 = por %p82, %p83
    %s85 = ssub.s32 %s9, %s16
    %p86 = scmp.eq.s32.totalorder %s85, 0
    %s88 = sadd.s32 %s87, 1
    %s89 = scalar_select %p86, %s87, %s88
    %p92 = pneg %p86
    %p93 = scmp.eq.s32.totalorder %s9, 3
    %p94 = por %p92, %p93
    %p95 = scmp.ne.s32.totalorder %s87, %s90
    %p96 = scmp.eq.s32.totalorder %s9, 0
    %p97 = por %p95, %p96
    %p98 = scmp.ne.s32.totalorder %s87, %s90
    %p99 = scmp.eq.s32.totalorder %s14, 3
    %p100 = por %p98, %p99
    %p101 = scmp.ne.s32.totalorder %s90, %s91
    %p102 = scmp.eq.s32.totalorder %s14, 0
    %p103 = por %p101, %p102
    %p104 = scmp.ne.s32.totalorder %s90, %s91
    %p105 = scmp.eq.s32.totalorder %s15, 3
    %p106 = por %p104, %p105
    %p108 = scmp.ne.s32.totalorder %s91, %s107
    %p109 = scmp.eq.s32.totalorder %s15, 0
    %p110 = por %p108, %p109
    %p111 = scmp.le.s32.totalorder 1, %s9
    %p112 = scmp.lt.s32.totalorder %s9, 5
    %p113 = pnand %p111, %p112
    %p114 = pneg %p113
    // Predicated region
    $region9: #{residual_block_up.7} parent=5 // pred_check
      _
    $region10: #{residual_block_up.7} parent=5 // pred_check_branch
      %116 = sbr.rel (%p113) target = $region12
    $region11: #{residual_block_up.7} parent=5 // pred_region
      %s117 = ssub.s32 %s9, 1
      // Predicated region
      $region13: #{residual_block_up.7} parent=11 // pred_check
        %p118 = pneg %p56
      $region14: #{residual_block_up.7} parent=11 // pred_check_branch
        %120 = sbr.rel (%p118) target = $region16
      $region15: #{residual_block_up.7} parent=11 // pred_region
        _
      $region16: #{residual_block_up.7} parent=11 // pred_fallthru
        _
      // Predicated region
      $region17: #{residual_block_up.7} parent=11 // pred_check
        %p121 = pneg %p77
      $region18: #{residual_block_up.7} parent=11 // pred_check_branch
        %123 = sbr.rel (%p121) target = $region20
      $region19: #{residual_block_up.7} parent=11 // pred_region
        _
      $region20: #{residual_block_up.7} parent=11 // pred_fallthru
        _
    $region12: #{residual_block_up.7} parent=5 // pred_fallthru
      _
    %p124 = scmp.lt.s32.totalorder %s9, 4
    // Predicated region
    $region21: #{residual_block_up.7} parent=5 // pred_check
      %p125 = pneg %p124
    $region22: #{residual_block_up.7} parent=5 // pred_check_branch
      %127 = sbr.rel (%p125) target = $region24
    $region23: #{residual_block_up.7} parent=5 // pred_region
      // Predicated region
      $region25: #{residual_block_up.7} parent=23 // pred_check
        %p128 = pneg %p29
      $region26: #{residual_block_up.7} parent=23 // pred_check_branch
        %130 = sbr.rel (%p128) target = $region28
      $region27: #{residual_block_up.7} parent=23 // pred_region
        %s131 = smul.u32 16, %s9
        %p132 = scmp.lt.s32.totalorder %s131, 63
        %s133 = scalar_select %p132, %s131, 63
        %s134 = smul.addr %s133, 8
        %s135 = scalar_lea.vmem %s0, %s134
        %s136 = smul.u32 16, %s9
      $region28: #{residual_block_up.7} parent=23 // pred_fallthru
        _
    $region24: #{residual_block_up.7} parent=5 // pred_fallthru
      _
    %p137 = scmp.le.s32.totalorder 1, %s9
    %p138 = scmp.lt.s32.totalorder %s9, 5
    %p139 = pnand %p137, %p138
    %p140 = pneg %p139
    // Predicated region
    $region29: #{residual_block_up.7} parent=5 // pred_check
      _
    $region30: #{residual_block_up.7} parent=5 // pred_check_branch
      %142 = sbr.rel (%p139) target = $region32
    $region31: #{residual_block_up.7} parent=5 // pred_region
      %s143 = ssub.s32 %s9, 1
      %s144 = smul.u32 16, %s14
      %p145 = scmp.lt.s32.totalorder %s144, 63
      %s146 = scalar_select %p145, %s144, 63
      %s147 = smul.addr %s146, 8
      %s148 = scalar_lea.vmem %s0, %s147
      %p149 = pneg %p35
      %p150 = pneg %p32
      %p151 = pneg %p56
      %p152 = pneg %p53
      %p153 = pneg %p77
      %p154 = pneg %p74
      %p155 = pneg %p103
      %p156 = pneg %p100
      %s157 = smul.u32 16, %s14
      %p158 = scmp.lt.s32.totalorder %s157, 63
      %s159 = scalar_select %p158, %s157, 63
      %s160 = smul.addr %s159, 8
      %s161 = scalar_lea.vmem %s3, %s160
      %s162 = smul.u32 16, %s14
      %p163 = scmp.lt.s32.totalorder %s162, 63
      %s164 = scalar_select %p163, %s162, 63
      %s165 = smul.addr %s164, 8
      %s166 = scalar_lea.vmem %s0, %s165
      %s167 = smul.u32 16, %s14
      %s168 = smul.u32 16, %s14
      %p169 = scmp.lt.s32.totalorder %s168, 63
      %s170 = scalar_select %p169, %s168, 63
      %s171 = smul.addr %s170, 8
      %s172 = scalar_lea.vmem %s3, %s171
      %s173 = smul.u32 16, %s14
      %v174 = vld [vmem:[%s166] sm:$0xff]
      %v175 = vld [vmem:[%s166 + $0x8] sm:$0xff]
      %v176 = vld [vmem:[%s166 + $0x10] sm:$0xff]
      %v177 = vld [vmem:[%s166 + $0x18] sm:$0xff]
      %v178 = vld [vmem:[%s166 + $0x20] sm:$0xff]
      %v179 = vld [vmem:[%s166 + $0x28] sm:$0xff]
      %v180 = vld [vmem:[%s166 + $0x30] sm:$0xff]
      %v181 = vld [vmem:[%s166 + $0x38] sm:$0xff]
      %v182 = vld [vmem:[%s166 + $0x40] sm:$0xff]
      %v183 = vld [vmem:[%s166 + $0x48] sm:$0xff]
      %v184 = vld [vmem:[%s166 + $0x50] sm:$0xff]
      %v185 = vld [vmem:[%s166 + $0x58] sm:$0xff]
      %v186 = vld [vmem:[%s166 + $0x60] sm:$0xff]
      %v187 = vld [vmem:[%s166 + $0x68] sm:$0xff]
      %v188 = vld [vmem:[%s166 + $0x70] sm:$0xff]
      %v189 = vld [vmem:[%s166 + $0x78] sm:$0xff]
      %v190 = vld [vmem:[%s1] sm:$0x1]
      %v192 = vlaneseq
      %v193 = vshrl.u32 %v192, 7
      %v194 = vsub.s32 0, %v193
      %v195 = vrot.slane %v190, %v194
      %v197 = vmul.f32 %v174, %v195
      %v198 = vmul.f32 %v175, %v195
      %v199 = vmul.f32 %v176, %v195
      %v200 = vmul.f32 %v177, %v195
      %v201 = vmul.f32 %v178, %v195
      %v202 = vmul.f32 %v179, %v195
      %v203 = vmul.f32 %v180, %v195
      %v204 = vmul.f32 %v181, %v195
      %v205 = vmul.f32 %v182, %v195
      %v206 = vmul.f32 %v183, %v195
      %v207 = vmul.f32 %v184, %v195
      %v208 = vmul.f32 %v185, %v195
      %v209 = vmul.f32 %v186, %v195
      %v210 = vmul.f32 %v187, %v195
      %v211 = vmul.f32 %v188, %v195
      %v212 = vmul.f32 %v189, %v195
      %v213 = vld [vmem:[%s2] sm:$0x1]
      %v215 = vlaneseq
      %v216 = vshrl.u32 %v215, 7
      %v217 = vsub.s32 0, %v216
      %v218 = vrot.slane %v213, %v217
      %v220 = vadd.f32 %v197, %v218
      %v221 = vadd.f32 %v198, %v218
      %v222 = vadd.f32 %v199, %v218
      %v223 = vadd.f32 %v200, %v218
      %v224 = vadd.f32 %v201, %v218
      %v225 = vadd.f32 %v202, %v218
      %v226 = vadd.f32 %v203, %v218
      %v227 = vadd.f32 %v204, %v218
      %v228 = vadd.f32 %v205, %v218
      %v229 = vadd.f32 %v206, %v218
      %v230 = vadd.f32 %v207, %v218
      %v231 = vadd.f32 %v208, %v218
      %v232 = vadd.f32 %v209, %v218
      %v233 = vadd.f32 %v210, %v218
      %v234 = vadd.f32 %v211, %v218
      %v235 = vadd.f32 %v212, %v218
      %v236 = vmax.f32 %v220, 0.0
      %v237 = vmax.f32 %v221, 0.0
      %v238 = vmax.f32 %v222, 0.0
      %v239 = vmax.f32 %v223, 0.0
      %v240 = vmax.f32 %v224, 0.0
      %v241 = vmax.f32 %v225, 0.0
      %v242 = vmax.f32 %v226, 0.0
      %v243 = vmax.f32 %v227, 0.0
      %v244 = vmax.f32 %v228, 0.0
      %v245 = vmax.f32 %v229, 0.0
      %v246 = vmax.f32 %v230, 0.0
      %v247 = vmax.f32 %v231, 0.0
      %v248 = vmax.f32 %v232, 0.0
      %v249 = vmax.f32 %v233, 0.0
      %v250 = vmax.f32 %v234, 0.0
      %v251 = vmax.f32 %v235, 0.0
      %vm252 = vcmask 64512
      %253 = vst.msk [vmem:[%s172] sm:$0xff] %vm252, %v236
      %254 = vst.msk [vmem:[%s172 + $0x8] sm:$0xff] %vm252, %v237
      %255 = vst.msk [vmem:[%s172 + $0x10] sm:$0xff] %vm252, %v238
      %256 = vst.msk [vmem:[%s172 + $0x18] sm:$0xff] %vm252, %v239
      %257 = vst.msk [vmem:[%s172 + $0x20] sm:$0xff] %vm252, %v240
      %258 = vst.msk [vmem:[%s172 + $0x28] sm:$0xff] %vm252, %v241
      %259 = vst.msk [vmem:[%s172 + $0x30] sm:$0xff] %vm252, %v242
      %260 = vst.msk [vmem:[%s172 + $0x38] sm:$0xff] %vm252, %v243
      %261 = vst.msk [vmem:[%s172 + $0x40] sm:$0xff] %vm252, %v244
      %262 = vst.msk [vmem:[%s172 + $0x48] sm:$0xff] %vm252, %v245
      %263 = vst.msk [vmem:[%s172 + $0x50] sm:$0xff] %vm252, %v246
      %264 = vst.msk [vmem:[%s172 + $0x58] sm:$0xff] %vm252, %v247
      %265 = vst.msk [vmem:[%s172 + $0x60] sm:$0xff] %vm252, %v248
      %266 = vst.msk [vmem:[%s172 + $0x68] sm:$0xff] %vm252, %v249
      %267 = vst.msk [vmem:[%s172 + $0x70] sm:$0xff] %vm252, %v250
      %268 = vst.msk [vmem:[%s172 + $0x78] sm:$0xff] %vm252, %v251
      %s269 = smul.u32 16, %s14
      %p270 = scmp.lt.s32.totalorder %s269, 63
      %s271 = scalar_select %p270, %s269, 63
      %s272 = smul.addr %s271, 8
      %s273 = scalar_lea.vmem %s3, %s272
      // Predicated region
      $region33: #{residual_block_up.7} parent=31 // pred_check
        %p274 = pneg %p100
      $region34: #{residual_block_up.7} parent=31 // pred_check_branch
        %276 = sbr.rel (%p274) target = $region36
      $region35: #{residual_block_up.7} parent=31 // pred_region
        %s277 = smul.u32 16, %s14
      $region36: #{residual_block_up.7} parent=31 // pred_fallthru
        _
    $region32: #{residual_block_up.7} parent=5 // pred_fallthru
      _
    %p278 = scmp.le.s32.totalorder 2, %s9
    // Predicated region
    $region37: #{residual_block_up.7} parent=5 // pred_check
      %p279 = pneg %p278
    $region38: #{residual_block_up.7} parent=5 // pred_check_branch
      %281 = sbr.rel (%p279) target = $region40
    $region39: #{residual_block_up.7} parent=5 // pred_region
      %s282 = ssub.s32 %s9, 2
      // Predicated region
      $region41: #{residual_block_up.7} parent=39 // pred_check
        %p283 = pneg %p106
      $region42: #{residual_block_up.7} parent=39 // pred_check_branch
        %285 = sbr.rel (%p283) target = $region44
      $region43: #{residual_block_up.7} parent=39 // pred_region
        %s286 = smul.u32 16, %s15
        %p287 = scmp.lt.s32.totalorder %s286, 63
        %s288 = scalar_select %p287, %s286, 63
        %s289 = smul.addr %s288, 8
        %s290 = scalar_lea.vmem %s3, %s289
      $region44: #{residual_block_up.7} parent=39 // pred_fallthru
        _
    $region40: #{residual_block_up.7} parent=5 // pred_fallthru
      _
  $region6: #{residual_block_up.7} parent=0 // loop_footer
    %s13 = sadd.s32 1, %s9
  $region7: #{residual_block_up.7} parent=0 // loop_footer_branch
    %8 = sbr.rel target = $region3
  $region8: #{residual_block_up.7} parent=0 // loop_exit
    _

// kernel: residual_block_up.8
$region0: #{residual_block_up.8}
  #allocation0 [shape = 'u32[]', space=smem, size = 0x4, offset = 0x4, fixed_abs, tag = 'smem constant byte address 0x4 - core index']
  #allocation1 [shape = 'u32[144,128]{1,0:T(1,128)}', space=vmem, size = 0x12000, scoped, tag = 'internal scratch']
  #allocation2 [shape = 'f32[1,32]{1,0:T(1,128)}', space=vmem, size = 0x200, scoped, tag = 'scratch operand']
  #allocation3 [shape = 'f32[1,32]{1,0:T(1,128)}', space=vmem, size = 0x200, scoped, tag = 'scratch operand']
  %s0 = inlined_call_operand.vmem [shape: f32[512,72], index: 0, kind: input, shape index: {}]
  %s1 = inlined_call_operand.vmem [shape: f32[72,32], index: 1, kind: input, shape index: {}]
  %s2 = inlined_call_operand.vmem [shape: f32[512,32], index: 2, kind: output, shape index: {0}]
  %s3 = inlined_call_operand.vmem [shape: f32[2,32], index: 3, kind: output, shape index: {1}]
  %4 = xla_tuple %s2, %s3
  %s5 = sld [smem:[#allocation0]]
  $region57: #{residual_block_up.8} parent=0
    _
  %s7 = ssub.s32 1, %s5
  %s8 = scalar_select 0, %s7, %s5
  loop: start=0, step=1, limit=6
  $region2: #{residual_block_up.8} parent=0 // loop_pre_header
    _
  $region3: #{residual_block_up.8} parent=0 // loop_header
    %s10 = sphi 0, %s14
    %p11 = scmp.ge.s32.totalorder %s10, 6
    %s20 = sphi 0, %s22
    %s23 = sphi 0, %s20
    %s24 = sphi 0, %s23
    %s40 = sphi 0, %s24
    %s44 = sphi 0, %s44
    %s46 = sphi 0, %s44
    %s47 = sphi 0, %s46
    %s61 = sphi 0, %s47
    %s67 = sphi 0, %s69
    %s70 = sphi 0, %s67
    %s71 = sphi 0, %s70
    %s87 = sphi 0, %s71
    %s91 = sphi 0, %s91
    %s93 = sphi 0, %s91
    %s94 = sphi 0, %s93
    %s108 = sphi 0, %s94
  $region4: #{residual_block_up.8} parent=0 // loop_header_branch
    %13 = sbr.rel (%p11) target = $region8
  $region5: #{residual_block_up.8} parent=0 // loop_body
    %s15 = ssub.s32 %s10, 1
    %s16 = ssub.s32 %s10, 2
    %s17 = sadd.s32 %s10, 1
    %s18 = ssub.s32 %s10, %s17
    %p19 = scmp.eq.s32.totalorder %s18, 0
    %s21 = sadd.s32 %s20, 1
    %s22 = scalar_select %p19, %s20, %s21
    %p25 = pneg %p19
    %p26 = scmp.eq.s32.totalorder %s10, 3
    %p27 = por %p25, %p26
    %p28 = scmp.ne.s32.totalorder %s20, %s23
    %p29 = scmp.eq.s32.totalorder %s10, 0
    %p30 = por %p28, %p29
    %p31 = scmp.ne.s32.totalorder %s20, %s23
    %p32 = scmp.eq.s32.totalorder %s15, 3
    %p33 = por %p31, %p32
    %p34 = scmp.ne.s32.totalorder %s23, %s24
    %p35 = scmp.eq.s32.totalorder %s15, 0
    %p36 = por %p34, %p35
    %p37 = scmp.ne.s32.totalorder %s23, %s24
    %p38 = scmp.eq.s32.totalorder %s16, 3
    %p39 = por %p37, %p38
    %p41 = scmp.ne.s32.totalorder %s24, %s40
    %p42 = scmp.eq.s32.totalorder %s16, 0
    %p43 = por %p41, %p42
    %s45 = sadd.s32 %s44, 1
    %p48 = scmp.eq.s32.totalorder %s10, 3
    %p49 = scmp.ne.s32.totalorder %s44, %s46
    %p50 = scmp.eq.s32.totalorder %s10, 0
    %p51 = por %p49, %p50
    %p52 = scmp.ne.s32.totalorder %s44, %s46
    %p53 = scmp.eq.s32.totalorder %s15, 3
    %p54 = por %p52, %p53
    %p55 = scmp.ne.s32.totalorder %s46, %s47
    %p56 = scmp.eq.s32.totalorder %s15, 0
    %p57 = por %p55, %p56
    %p58 = scmp.ne.s32.totalorder %s46, %s47
    %p59 = scmp.eq.s32.totalorder %s16, 3
    %p60 = por %p58, %p59
    %p62 = scmp.ne.s32.totalorder %s47, %s61
    %p63 = scmp.eq.s32.totalorder %s16, 0
    %p64 = por %p62, %p63
    %s65 = ssub.s32 %s10, %s17
    %p66 = scmp.eq.s32.totalorder %s65, 0
    %s68 = sadd.s32 %s67, 1
    %s69 = scalar_select %p66, %s67, %s68
    %p72 = pneg %p66
    %p73 = scmp.eq.s32.totalorder %s10, 3
    %p74 = por %p72, %p73
    %p75 = scmp.ne.s32.totalorder %s67, %s70
    %p76 = scmp.eq.s32.totalorder %s10, 0
    %p77 = por %p75, %p76
    %p78 = scmp.ne.s32.totalorder %s67, %s70
    %p79 = scmp.eq.s32.totalorder %s15, 3
    %p80 = por %p78, %p79
    %p81 = scmp.ne.s32.totalorder %s70, %s71
    %p82 = scmp.eq.s32.totalorder %s15, 0
    %p83 = por %p81, %p82
    %p84 = scmp.ne.s32.totalorder %s70, %s71
    %p85 = scmp.eq.s32.totalorder %s16, 3
    %p86 = por %p84, %p85
    %p88 = scmp.ne.s32.totalorder %s71, %s87
    %p89 = scmp.eq.s32.totalorder %s16, 0
    %p90 = por %p88, %p89
    %s92 = sadd.s32 %s91, 1
    %p95 = scmp.eq.s32.totalorder %s10, 3
    %p96 = scmp.ne.s32.totalorder %s91, %s93
    %p97 = scmp.eq.s32.totalorder %s10, 0
    %p98 = por %p96, %p97
    %p99 = scmp.ne.s32.totalorder %s91, %s93
    %p100 = scmp.eq.s32.totalorder %s15, 3
    %p101 = por %p99, %p100
    %p102 = scmp.ne.s32.totalorder %s93, %s94
    %p103 = scmp.eq.s32.totalorder %s15, 0
    %p104 = por %p102, %p103
    %p105 = scmp.ne.s32.totalorder %s93, %s94
    %p106 = scmp.eq.s32.totalorder %s16, 3
    %p107 = por %p105, %p106
    %p109 = scmp.ne.s32.totalorder %s94, %s108
    %p110 = scmp.eq.s32.totalorder %s16, 0
    %p111 = por %p109, %p110
    %p112 = scmp.le.s32.totalorder 1, %s10
    %p113 = scmp.lt.s32.totalorder %s10, 5
    %p114 = pnand %p112, %p113
    %p115 = pneg %p114
    // Predicated region
    $region9: #{residual_block_up.8} parent=5 // pred_check
      _
    $region10: #{residual_block_up.8} parent=5 // pred_check_branch
      %117 = sbr.rel (%p114) target = $region12
    $region11: #{residual_block_up.8} parent=5 // pred_region
      %s118 = ssub.s32 %s10, 1
      // Predicated region
      $region13: #{residual_block_up.8} parent=11 // pred_check
        %p119 = pneg %p57
      $region14: #{residual_block_up.8} parent=11 // pred_check_branch
        %121 = sbr.rel (%p119) target = $region16
      $region15: #{residual_block_up.8} parent=11 // pred_region
        _
      $region16: #{residual_block_up.8} parent=11 // pred_fallthru
        _
    $region12: #{residual_block_up.8} parent=5 // pred_fallthru
      _
    %p122 = scmp.lt.s32.totalorder %s10, 4
    // Predicated region
    $region17: #{residual_block_up.8} parent=5 // pred_check
      %p123 = pneg %p122
    $region18: #{residual_block_up.8} parent=5 // pred_check_branch
      %125 = sbr.rel (%p123) target = $region20
    $region19: #{residual_block_up.8} parent=5 // pred_region
      // Predicated region
      $region21: #{residual_block_up.8} parent=19 // pred_check
        %p126 = pneg %p30
      $region22: #{residual_block_up.8} parent=19 // pred_check_branch
        %128 = sbr.rel (%p126) target = $region24
      $region23: #{residual_block_up.8} parent=19 // pred_region
        %s129 = smul.u32 16, %s10
        %p130 = scmp.lt.s32.totalorder %s129, 63
        %s131 = scalar_select %p130, %s129, 63
        %s132 = smul.addr %s131, 8
        %s133 = scalar_lea.vmem %s0, %s132
        %s134 = smul.u32 16, %s10
      $region24: #{residual_block_up.8} parent=19 // pred_fallthru
        _
    $region20: #{residual_block_up.8} parent=5 // pred_fallthru
      _
    %p135 = scmp.le.s32.totalorder 1, %s10
    %p136 = scmp.lt.s32.totalorder %s10, 5
    %p137 = pnand %p135, %p136
    %p138 = pneg %p137
    // Predicated region
    $region25: #{residual_block_up.8} parent=5 // pred_check
      _
    $region26: #{residual_block_up.8} parent=5 // pred_check_branch
      %140 = sbr.rel (%p137) target = $region28
    $region27: #{residual_block_up.8} parent=5 // pred_region
      %s141 = ssub.s32 %s10, 1
      %s142 = smul.u32 16, %s15
      %p143 = scmp.lt.s32.totalorder %s142, 63
      %s144 = scalar_select %p143, %s142, 63
      %s145 = smul.addr %s144, 8
      %s146 = scalar_lea.vmem %s0, %s145
      %p147 = pneg %p36
      %p148 = pneg %p33
      %p149 = pneg %p57
      %p150 = pneg %p54
      %p151 = pneg %p83
      %p152 = pneg %p80
      %s153 = smul.u32 16, %s15
      %p154 = scmp.lt.s32.totalorder %s153, 63
      %s155 = scalar_select %p154, %s153, 63
      %s156 = smul.addr %s155, 8
      %s157 = scalar_lea.vmem %s2, %s156
      %p158 = pneg %p104
      %p159 = pneg %p101
      %s160 = smul.u32 16, %s15
      %p161 = scmp.lt.s32.totalorder %s160, 63
      %s162 = scalar_select %p161, %s160, 63
      %s163 = smul.addr %s162, 8
      %s164 = scalar_lea.vmem %s0, %s163
      %s165 = smul.u32 16, %s15
      %s166 = smul.u32 16, %s15
      %p167 = scmp.lt.s32.totalorder %s166, 63
      %s168 = scalar_select %p167, %s166, 63
      %s169 = smul.addr %s168, 8
      %s170 = scalar_lea.vmem %s2, %s169
      %s171 = smul.u32 16, %s15
      %p172 = scmp.eq.s32.totalorder %s15, 0
      // Predicated region
      $region29: #{residual_block_up.8} parent=27 // pred_check
        %p173 = pneg %p172
      $region30: #{residual_block_up.8} parent=27 // pred_check_branch
        %175 = sbr.rel (%p173) target = $region32
      $region31: #{residual_block_up.8} parent=27 // pred_region
        %vm176 = vcmask 253952
        %177 = vst.msk [vmem:[#allocation2] sm:$0x1] %vm176, 0.0
        %178 = vst.msk [vmem:[#allocation3] sm:$0x1] %vm176, 0.0
      $region32: #{residual_block_up.8} parent=27 // pred_fallthru
        _
      %v179 = vld [vmem:[%s164] sm:$0xff]
      %v180 = vld [vmem:[%s164 + $0x8] sm:$0xff]
      %v181 = vld [vmem:[%s164 + $0x10] sm:$0xff]
      %v182 = vld [vmem:[%s164 + $0x18] sm:$0xff]
      %v183 = vld [vmem:[%s164 + $0x20] sm:$0xff]
      %v184 = vld [vmem:[%s164 + $0x28] sm:$0xff]
      %v185 = vld [vmem:[%s164 + $0x30] sm:$0xff]
      %v186 = vld [vmem:[%s164 + $0x38] sm:$0xff]
      %v187 = vld [vmem:[%s164 + $0x40] sm:$0xff]
      %v188 = vld [vmem:[%s164 + $0x48] sm:$0xff]
      %v189 = vld [vmem:[%s164 + $0x50] sm:$0xff]
      %v190 = vld [vmem:[%s164 + $0x58] sm:$0xff]
      %v191 = vld [vmem:[%s164 + $0x60] sm:$0xff]
      %v192 = vld [vmem:[%s164 + $0x68] sm:$0xff]
      %v193 = vld [vmem:[%s164 + $0x70] sm:$0xff]
      %v194 = vld [vmem:[%s164 + $0x78] sm:$0xff]
      %v195 = vld [vmem:[%s1] sm:$0xff]
      %v196 = vld [vmem:[%s1 + $0x8] sm:$0xff]
      %v197 = vld [vmem:[%s1 + $0x10] sm:$0xff]
      %v198 = vld [vmem:[%s1 + $0x18] sm:$0xff]
      %v199 = vld [vmem:[%s1 + $0x20] sm:$0xff]
      %v200 = vld [vmem:[%s1 + $0x28] sm:$0xff]
      %v201 = vld [vmem:[%s1 + $0x30] sm:$0xff]
      %v202 = vld [vmem:[%s1 + $0x38] sm:$0xff]
      %v203 = vld [vmem:[%s1 + $0x40] sm:$0xff]
      %vm204 = vcmask 588800
      %v206 = vsel %vm204, %v179, 0
      %v209 = vsel %vm204, %v180, 0
      %v212 = vsel %vm204, %v181, 0
      %v215 = vsel %vm204, %v182, 0
      %v218 = vsel %vm204, %v183, 0
      %v221 = vsel %vm204, %v184, 0
      %v224 = vsel %vm204, %v185, 0
      %v227 = vsel %vm204, %v186, 0
      %v230 = vsel %vm204, %v187, 0
      %v233 = vsel %vm204, %v188, 0
      %v236 = vsel %vm204, %v189, 0
      %v239 = vsel %vm204, %v190, 0
      %v242 = vsel %vm204, %v191, 0
      %v245 = vsel %vm204, %v192, 0
      %v248 = vsel %vm204, %v193, 0
      %v251 = vsel %vm204, %v194, 0
      %253 = vmatprep.subr.mxu0 0.0
      %254 = vmatpush1.msra.mxu0 %v195
      %255 = vmatprep.subr.mxu0 0.0
      %256 = vmatpush1.msra.mxu0 %v196
      %257 = vmatprep.subr.mxu0 0.0
      %258 = vmatpush1.msra.mxu0 %v197
      %259 = vmatprep.subr.mxu0 0.0
      %260 = vmatpush1.msra.mxu0 %v198
      %261 = vmatprep.subr.mxu0 0.0
      %262 = vmatpush1.msra.mxu0 %v199
      %263 = vmatprep.subr.mxu0 0.0
      %264 = vmatpush1.msra.mxu0 %v200
      %265 = vmatprep.subr.mxu0 0.0
      %266 = vmatpush1.msra.mxu0 %v201
      %267 = vmatprep.subr.mxu0 0.0
      %268 = vmatpush1.msra.mxu0 %v202
      %269 = vmatprep.subr.mxu0 0.0
      %270 = vmatpush1.msra.mxu0 %v203
      %271 = vmatprep.subr.mxu0 0.0
      %272 = vmatpush1.msra.mxu0 0.0
      %273 = vmatprep.subr.mxu0 0.0
      %274 = vmatpush1.msra.mxu0 0.0
      %275 = vmatprep.subr.mxu0 0.0
      %276 = vmatpush1.msra.mxu0 0.0
      %277 = vmatprep.subr.mxu0 0.0
      %278 = vmatpush1.msra.mxu0 0.0
      %279 = vmatprep.subr.mxu0 0.0
      %280 = vmatpush1.msra.mxu0 0.0
      %281 = vmatprep.subr.mxu0 0.0
      %282 = vmatpush1.msra.mxu0 0.0
      %283 = vmatprep.subr.mxu0 0.0
      %284 = vmatpush1.msra.mxu0 0.0
      %285 = vmatprep.subr.mxu0 0.0
      %286 = vmatpush1.msra.mxu0 0.0
      %287 = vmatprep.subr.mxu0 0.0
      %288 = vmatpush1.msra.mxu0 0.0
      %289 = vmatprep.subr.mxu0 0.0
      %290 = vmatpush1.msra.mxu0 0.0
      %291 = vmatprep.subr.mxu0 0.0
      %292 = vmatpush1.msra.mxu0 0.0
      %293 = vmatprep.subr.mxu0 0.0
      %294 = vmatpush1.msra.mxu0 0.0
      %295 = vmatprep.subr.mxu0 0.0
      %296 = vmatpush1.msra.mxu0 0.0
      %297 = vmatprep.subr.mxu0 0.0
      %298 = vmatpush1.msra.mxu0 0.0
      %299 = vmatprep.subr.mxu0 0.0
      %300 = vmatpush1.msra.mxu0 0.0
      %301 = vmatprep.subr.mxu0 0.0
      %302 = vmatpush1.msra.mxu0 0.0
      %303 = vmatprep.subr.mxu0 0.0
      %304 = vmatpush1.msra.mxu0 0.0
      %305 = vmatprep.subr.mxu0 0.0
      %306 = vmatpush1.msra.mxu0 0.0
      %307 = vmatprep.subr.mxu0 0.0
      %308 = vmatpush1.msra.mxu0 0.0
      %309 = vmatprep.subr.mxu0 0.0
      %310 = vmatpush1.msra.mxu0 0.0
      %311 = vmatprep.subr.mxu0 0.0
      %312 = vmatpush1.msra.mxu0 0.0
      %313 = vmatprep.subr.mxu0 0.0
      %314 = vmatpush1.msra.mxu0 0.0
      %315 = vmatprep.subr.mxu0 0.0
      %316 = vmatpush1.msra.mxu0 0.0
      %317 = vmatprep.mubr.f32.mxu0 0.0
      %318 = vmatmul.mubr.f32.gmra.mrb[0].mxu0 %v206
      %v319 = vpop.f32.mrb[0].mxu0
      %v320 = vadd.f32 0.0, %v319
      %v321 = vpop.f32.mrb[0].mxu0
      %322 = vmatprep.mubr.f32.mxu0 0.0
      %323 = vmatmul.mubr.f32.gmra.mrb[0].mxu0 %v209
      %v324 = vpop.f32.mrb[0].mxu0
      %v325 = vadd.f32 0.0, %v324
      %v326 = vpop.f32.mrb[0].mxu0
      %327 = vmatprep.mubr.f32.mxu0 0.0
      %328 = vmatmul.mubr.f32.gmra.mrb[0].mxu0 %v212
      %v329 = vpop.f32.mrb[0].mxu0
      %v330 = vadd.f32 0.0, %v329
      %v331 = vpop.f32.mrb[0].mxu0
      %332 = vmatprep.mubr.f32.mxu0 0.0
      %333 = vmatmul.mubr.f32.gmra.mrb[0].mxu0 %v215
      %v334 = vpop.f32.mrb[0].mxu0
      %v335 = vadd.f32 0.0, %v334
      %v336 = vpop.f32.mrb[0].mxu0
      %337 = vmatprep.mubr.f32.mxu0 0.0
      %338 = vmatmul.mubr.f32.gmra.mrb[0].mxu0 %v218
      %v339 = vpop.f32.mrb[0].mxu0
      %v340 = vadd.f32 0.0, %v339
      %v341 = vpop.f32.mrb[0].mxu0
      %342 = vmatprep.mubr.f32.mxu0 0.0
      %343 = vmatmul.mubr.f32.gmra.mrb[0].mxu0 %v221
      %v344 = vpop.f32.mrb[0].mxu0
      %v345 = vadd.f32 0.0, %v344
      %v346 = vpop.f32.mrb[0].mxu0
      %347 = vmatprep.mubr.f32.mxu0 0.0
      %348 = vmatmul.mubr.f32.gmra.mrb[0].mxu0 %v224
      %v349 = vpop.f32.mrb[0].mxu0
      %v350 = vadd.f32 0.0, %v349
      %v351 = vpop.f32.mrb[0].mxu0
      %352 = vmatprep.mubr.f32.mxu0 0.0
      %353 = vmatmul.mubr.f32.gmra.mrb[0].mxu0 %v227
      %v354 = vpop.f32.mrb[0].mxu0
      %v355 = vadd.f32 0.0, %v354
      %v356 = vpop.f32.mrb[0].mxu0
      %357 = vmatprep.mubr.f32.mxu0 0.0
      %358 = vmatmul.mubr.f32.gmra.mrb[0].mxu0 %v230
      %v359 = vpop.f32.mrb[0].mxu0
      %v360 = vadd.f32 0.0, %v359
      %v361 = vpop.f32.mrb[0].mxu0
      %362 = vmatprep.mubr.f32.mxu0 0.0
      %363 = vmatmul.mubr.f32.gmra.mrb[0].mxu0 %v233
      %v364 = vpop.f32.mrb[0].mxu0
      %v365 = vadd.f32 0.0, %v364
      %v366 = vpop.f32.mrb[0].mxu0
      %367 = vmatprep.mubr.f32.mxu0 0.0
      %368 = vmatmul.mubr.f32.gmra.mrb[0].mxu0 %v236
      %v369 = vpop.f32.mrb[0].mxu0
      %v370 = vadd.f32 0.0, %v369
      %v371 = vpop.f32.mrb[0].mxu0
      %372 = vmatprep.mubr.f32.mxu0 0.0
      %373 = vmatmul.mubr.f32.gmra.mrb[0].mxu0 %v239
      %v374 = vpop.f32.mrb[0].mxu0
      %v375 = vadd.f32 0.0, %v374
      %v376 = vpop.f32.mrb[0].mxu0
      %377 = vmatprep.mubr.f32.mxu0 0.0
      %378 = vmatmul.mubr.f32.gmra.mrb[0].mxu0 %v242
      %v379 = vpop.f32.mrb[0].mxu0
      %v380 = vadd.f32 0.0, %v379
      %v381 = vpop.f32.mrb[0].mxu0
      %382 = vmatprep.mubr.f32.mxu0 0.0
      %383 = vmatmul.mubr.f32.gmra.mrb[0].mxu0 %v245
      %v384 = vpop.f32.mrb[0].mxu0
      %v385 = vadd.f32 0.0, %v384
      %v386 = vpop.f32.mrb[0].mxu0
      %387 = vmatprep.mubr.f32.mxu0 0.0
      %388 = vmatmul.mubr.f32.gmra.mrb[0].mxu0 %v248
      %v389 = vpop.f32.mrb[0].mxu0
      %v390 = vadd.f32 0.0, %v389
      %v391 = vpop.f32.mrb[0].mxu0
      %392 = vmatprep.mubr.f32.mxu0 0.0
      %393 = vmatmul.mubr.f32.gmra.mrb[0].mxu0 %v251
      %v394 = vpop.f32.mrb[0].mxu0
      %v395 = vadd.f32 0.0, %v394
      %v396 = vpop.f32.mrb[0].mxu0
      %397 = vdwg.mxu0
      %vm398 = vcmask 261120
      %399 = vst.msk [vmem:[%s170] sm:$0xff] %vm398, %v320
      %400 = vst.msk [vmem:[%s170 + $0x8] sm:$0xff] %vm398, %v325
      %401 = vst.msk [vmem:[%s170 + $0x10] sm:$0xff] %vm398, %v330
      %402 = vst.msk [vmem:[%s170 + $0x18] sm:$0xff] %vm398, %v335
      %403 = vst.msk [vmem:[%s170 + $0x20] sm:$0xff] %vm398, %v340
      %404 = vst.msk [vmem:[%s170 + $0x28] sm:$0xff] %vm398, %v345
      %405 = vst.msk [vmem:[%s170 + $0x30] sm:$0xff] %vm398, %v350
      %406 = vst.msk [vmem:[%s170 + $0x38] sm:$0xff] %vm398, %v355
      %407 = vst.msk [vmem:[%s170 + $0x40] sm:$0xff] %vm398, %v360
      %408 = vst.msk [vmem:[%s170 + $0x48] sm:$0xff] %vm398, %v365
      %409 = vst.msk [vmem:[%s170 + $0x50] sm:$0xff] %vm398, %v370
      %410 = vst.msk [vmem:[%s170 + $0x58] sm:$0xff] %vm398, %v375
      %411 = vst.msk [vmem:[%s170 + $0x60] sm:$0xff] %vm398, %v380
      %412 = vst.msk [vmem:[%s170 + $0x68] sm:$0xff] %vm398, %v385
      %413 = vst.msk [vmem:[%s170 + $0x70] sm:$0xff] %vm398, %v390
      %414 = vst.msk [vmem:[%s170 + $0x78] sm:$0xff] %vm398, %v395
      %v415 = vld [vmem:[#allocation2] sm:$0x1]
      %v416 = vsel %vm398, %v320, 0.0
      %v417 = vsel %vm398, %v325, 0.0
      %v418 = vadd.f32 %v416, %v417
      %v419 = vsel %vm398, %v330, 0.0
      %v420 = vadd.f32 %v418, %v419
      %v421 = vsel %vm398, %v335, 0.0
      %v422 = vadd.f32 %v420, %v421
      %v423 = vsel %vm398, %v340, 0.0
      %v424 = vadd.f32 %v422, %v423
      %v425 = vsel %vm398, %v345, 0.0
      %v426 = vadd.f32 %v424, %v425
      %v427 = vsel %vm398, %v350, 0.0
      %v428 = vadd.f32 %v426, %v427
      %v429 = vsel %vm398, %v355, 0.0
      %v430 = vadd.f32 %v428, %v429
      %v431 = vsel %vm398, %v360, 0.0
      %v432 = vadd.f32 %v430, %v431
      %v433 = vsel %vm398, %v365, 0.0
      %v434 = vadd.f32 %v432, %v433
      %v435 = vsel %vm398, %v370, 0.0
      %v436 = vadd.f32 %v434, %v435
      %v437 = vsel %vm398, %v375, 0.0
      %v438 = vadd.f32 %v436, %v437
      %v439 = vsel %vm398, %v380, 0.0
      %v440 = vadd.f32 %v438, %v439
      %v441 = vsel %vm398, %v385, 0.0
      %v442 = vadd.f32 %v440, %v441
      %v443 = vsel %vm398, %v390, 0.0
      %v444 = vadd.f32 %v442, %v443
      %v445 = vsel %vm398, %v395, 0.0
      %v446 = vadd.f32 %v444, %v445
      %v447 = vrot.slane %v446, 4
      %v448 = vadd.f32 %v446, %v447
      %v449 = vrot.slane %v448, 2
      %v450 = vadd.f32 %v448, %v449
      %v451 = vrot.slane %v450, 1
      %v452 = vadd.f32 %v450, %v451
      %v453 = vadd.f32 %v415, %v452
      %vm454 = vcmask 253952
      %455 = vst.msk [vmem:[#allocation2] sm:$0x1] %vm454, %v453
      %v456 = vld [vmem:[#allocation3] sm:$0x1]
      %v457 = vmul.f32 %v320, %v320
      %v458 = vmul.f32 %v325, %v325
      %v459 = vmul.f32 %v330, %v330
      %v460 = vmul.f32 %v335, %v335
      %v461 = vmul.f32 %v340, %v340
      %v462 = vmul.f32 %v345, %v345
      %v463 = vmul.f32 %v350, %v350
      %v464 = vmul.f32 %v355, %v355
      %v465 = vmul.f32 %v360, %v360
      %v466 = vmul.f32 %v365, %v365
      %v467 = vmul.f32 %v370, %v370
      %v468 = vmul.f32 %v375, %v375
      %v469 = vmul.f32 %v380, %v380
      %v470 = vmul.f32 %v385, %v385
      %v471 = vmul.f32 %v390, %v390
      %v472 = vmul.f32 %v395, %v395
      %v473 = vsel %vm398, %v457, 0.0
      %v474 = vsel %vm398, %v458, 0.0
      %v475 = vadd.f32 %v473, %v474
      %v476 = vsel %vm398, %v459, 0.0
      %v477 = vadd.f32 %v475, %v476
      %v478 = vsel %vm398, %v460, 0.0
      %v479 = vadd.f32 %v477, %v478
      %v480 = vsel %vm398, %v461, 0.0
      %v481 = vadd.f32 %v479, %v480
      %v482 = vsel %vm398, %v462, 0.0
      %v483 = vadd.f32 %v481, %v482
      %v484 = vsel %vm398, %v463, 0.0
      %v485 = vadd.f32 %v483, %v484
      %v486 = vsel %vm398, %v464, 0.0
      %v487 = vadd.f32 %v485, %v486
      %v488 = vsel %vm398, %v465, 0.0
      %v489 = vadd.f32 %v487, %v488
      %v490 = vsel %vm398, %v466, 0.0
      %v491 = vadd.f32 %v489, %v490
      %v492 = vsel %vm398, %v467, 0.0
      %v493 = vadd.f32 %v491, %v492
      %v494 = vsel %vm398, %v468, 0.0
      %v495 = vadd.f32 %v493, %v494
      %v496 = vsel %vm398, %v469, 0.0
      %v497 = vadd.f32 %v495, %v496
      %v498 = vsel %vm398, %v470, 0.0
      %v499 = vadd.f32 %v497, %v498
      %v500 = vsel %vm398, %v471, 0.0
      %v501 = vadd.f32 %v499, %v500
      %v502 = vsel %vm398, %v472, 0.0
      %v503 = vadd.f32 %v501, %v502
      %v504 = vrot.slane %v503, 4
      %v505 = vadd.f32 %v503, %v504
      %v506 = vrot.slane %v505, 2
      %v507 = vadd.f32 %v505, %v506
      %v508 = vrot.slane %v507, 1
      %v509 = vadd.f32 %v507, %v508
      %v510 = vadd.f32 %v456, %v509
      %511 = vst.msk [vmem:[#allocation3] sm:$0x1] %vm454, %v510
      %p512 = scmp.eq.s32.totalorder %s15, 3
      // Predicated region
      $region33: #{residual_block_up.8} parent=27 // pred_check
        %p513 = pneg %p512
      $region34: #{residual_block_up.8} parent=27 // pred_check_branch
        %515 = sbr.rel (%p513) target = $region36
      $region35: #{residual_block_up.8} parent=27 // pred_region
        %v516 = vld [vmem:[#allocation2] sm:$0x1]
        %517 = vst.msk [vmem:[%s3] sm:$0x1] %vm454, %v516
        %v518 = vld [vmem:[#allocation3] sm:$0x1]
        %519 = vst.msk [vmem:[%s3 + $0x1] sm:$0x1] %vm454, %v518
      $region36: #{residual_block_up.8} parent=27 // pred_fallthru
        _
      %s520 = smul.u32 16, %s15
      %p521 = scmp.lt.s32.totalorder %s520, 63
      %s522 = scalar_select %p521, %s520, 63
      %s523 = smul.addr %s522, 8
      %s524 = scalar_lea.vmem %s2, %s523
      // Predicated region
      $region37: #{residual_block_up.8} parent=27 // pred_check
        %p525 = pneg %p80
      $region38: #{residual_block_up.8} parent=27 // pred_check_branch
        %527 = sbr.rel (%p525) target = $region40
      $region39: #{residual_block_up.8} parent=27 // pred_region
        %s528 = smul.u32 16, %s15
      $region40: #{residual_block_up.8} parent=27 // pred_fallthru
        _
      // Predicated region
      $region41: #{residual_block_up.8} parent=27 // pred_check
        %p529 = pneg %p101
      $region42: #{residual_block_up.8} parent=27 // pred_check_branch
        %531 = sbr.rel (%p529) target = $region44
      $region43: #{residual_block_up.8} parent=27 // pred_region
        _
      $region44: #{residual_block_up.8} parent=27 // pred_fallthru
        _
      // Predicated region
      $region45: #{residual_block_up.8} parent=27 // pred_check
        %p532 = pneg %p101
      $region46: #{residual_block_up.8} parent=27 // pred_check_branch
        %534 = sbr.rel (%p532) target = $region48
      $region47: #{residual_block_up.8} parent=27 // pred_region
        _
      $region48: #{residual_block_up.8} parent=27 // pred_fallthru
        _
    $region28: #{residual_block_up.8} parent=5 // pred_fallthru
      _
    %p535 = scmp.le.s32.totalorder 2, %s10
    // Predicated region
    $region49: #{residual_block_up.8} parent=5 // pred_check
      %p536 = pneg %p535
    $region50: #{residual_block_up.8} parent=5 // pred_check_branch
      %538 = sbr.rel (%p536) target = $region52
    $region51: #{residual_block_up.8} parent=5 // pred_region
      %s539 = ssub.s32 %s10, 2
      // Predicated region
      $region53: #{residual_block_up.8} parent=51 // pred_check
        %p540 = pneg %p86
      $region54: #{residual_block_up.8} parent=51 // pred_check_branch
        %542 = sbr.rel (%p540) target = $region56
      $region55: #{residual_block_up.8} parent=51 // pred_region
        %s543 = smul.u32 16, %s16
        %p544 = scmp.lt.s32.totalorder %s543, 63
        %s545 = scalar_select %p544, %s543, 63
        %s546 = smul.addr %s545, 8
        %s547 = scalar_lea.vmem %s2, %s546
      $region56: #{residual_block_up.8} parent=51 // pred_fallthru
        _
    $region52: #{residual_block_up.8} parent=5 // pred_fallthru
      _
  $region6: #{residual_block_up.8} parent=0 // loop_footer
    %s14 = sadd.s32 1, %s10
  $region7: #{residual_block_up.8} parent=0 // loop_footer_branch
    %9 = sbr.rel target = $region3
  $region8: #{residual_block_up.8} parent=0 // loop_exit
    _

// kernel: residual_block_up.9
$region0: #{residual_block_up.9}
  #allocation0 [shape = 'u32[]', space=smem, size = 0x4, offset = 0x4, fixed_abs, tag = 'smem constant byte address 0x4 - core index']
  #allocation1 [shape = 'u32[144,128]{1,0:T(1,128)}', space=vmem, size = 0x12000, scoped, tag = 'internal scratch']
  %s0 = inlined_call_operand.vmem [shape: f32[512,32], index: 0, kind: input, shape index: {}]
  %s1 = inlined_call_operand.vmem [shape: f32[512,36], index: 1, kind: input, shape index: {}]
  %s2 = inlined_call_operand.vmem [shape: f32[1,32], index: 2, kind: input, shape index: {}]
  %s3 = inlined_call_operand.vmem [shape: f32[1,32], index: 3, kind: input, shape index: {}]
  %s4 = inlined_call_operand.vmem [shape: f32[32,16], index: 4, kind: input, shape index: {}]
  %s5 = inlined_call_operand.vmem [shape: f32[36,16], index: 5, kind: input, shape index: {}]
  %s6 = inlined_call_operand.vmem [shape: f32[512,16], index: 6, kind: output, shape index: {}]
  %s7 = sld [smem:[#allocation0]]
  $region57: #{residual_block_up.9} parent=0
    _
  %s9 = ssub.s32 1, %s7
  %s10 = scalar_select 0, %s9, %s7
  loop: start=0, step=1, limit=6
  $region2: #{residual_block_up.9} parent=0 // loop_pre_header
    _
  $region3: #{residual_block_up.9} parent=0 // loop_header
    %s12 = sphi 0, %s16
    %p13 = scmp.ge.s32.totalorder %s12, 6
    %s22 = sphi 0, %s24
    %s25 = sphi 0, %s22
    %s26 = sphi 0, %s25
    %s42 = sphi 0, %s26
    %s48 = sphi 0, %s50
    %s51 = sphi 0, %s48
    %s52 = sphi 0, %s51
    %s68 = sphi 0, %s52
    %s72 = sphi 0, %s72
    %s74 = sphi 0, %s72
    %s75 = sphi 0, %s74
    %s89 = sphi 0, %s75
    %s93 = sphi 0, %s93
    %s95 = sphi 0, %s93
    %s96 = sphi 0, %s95
    %s110 = sphi 0, %s96
    %s114 = sphi 0, %s114
    %s116 = sphi 0, %s114
    %s117 = sphi 0, %s116
    %s131 = sphi 0, %s117
    %s135 = sphi 0, %s135
    %s137 = sphi 0, %s135
    %s138 = sphi 0, %s137
    %s152 = sphi 0, %s138
    %s158 = sphi 0, %s160
    %s161 = sphi 0, %s158
    %s162 = sphi 0, %s161
    %s178 = sphi 0, %s162
  $region4: #{residual_block_up.9} parent=0 // loop_header_branch
    %15 = sbr.rel (%p13) target = $region8
  $region5: #{residual_block_up.9} parent=0 // loop_body
    %s17 = ssub.s32 %s12, 1
    %s18 = ssub.s32 %s12, 2
    %s19 = sadd.s32 %s12, 1
    %s20 = ssub.s32 %s12, %s19
    %p21 = scmp.eq.s32.totalorder %s20, 0
    %s23 = sadd.s32 %s22, 1
    %s24 = scalar_select %p21, %s22, %s23
    %p27 = pneg %p21
    %p28 = scmp.eq.s32.totalorder %s12, 3
    %p29 = por %p27, %p28
    %p30 = scmp.ne.s32.totalorder %s22, %s25
    %p31 = scmp.eq.s32.totalorder %s12, 0
    %p32 = por %p30, %p31
    %p33 = scmp.ne.s32.totalorder %s22, %s25
    %p34 = scmp.eq.s32.totalorder %s17, 3
    %p35 = por %p33, %p34
    %p36 = scmp.ne.s32.totalorder %s25, %s26
    %p37 = scmp.eq.s32.totalorder %s17, 0
    %p38 = por %p36, %p37
    %p39 = scmp.ne.s32.totalorder %s25, %s26
    %p40 = scmp.eq.s32.totalorder %s18, 3
    %p41 = por %p39, %p40
    %p43 = scmp.ne.s32.totalorder %s26, %s42
    %p44 = scmp.eq.s32.totalorder %s18, 0
    %p45 = por %p43, %p44
    %s46 = ssub.s32 %s12, %s19
    %p47 = scmp.eq.s32.totalorder %s46, 0
    %s49 = sadd.s32 %s48, 1
    %s50 = scalar_select %p47, %s48, %s49
    %p53 = pneg %p47
    %p54 = scmp.eq.s32.totalorder %s12, 3
    %p55 = por %p53, %p54
    %p56 = scmp.ne.s32.totalorder %s48, %s51
    %p57 = scmp.eq.s32.totalorder %s12, 0
    %p58 = por %p56, %p57
    %p59 = scmp.ne.s32.totalorder %s48, %s51
    %p60 = scmp.eq.s32.totalorder %s17, 3
    %p61 = por %p59, %p60
    %p62 = scmp.ne.s32.totalorder %s51, %s52
    %p63 = scmp.eq.s32.totalorder %s17, 0
    %p64 = por %p62, %p63
    %p65 = scmp.ne.s32.totalorder %s51, %s52
    %p66 = scmp.eq.s32.totalorder %s18, 3
    %p67 = por %p65, %p66
    %p69 = scmp.ne.s32.totalorder %s52, %s68
    %p70 = scmp.eq.s32.totalorder %s18, 0
    %p71 = por %p69, %p70
    %s73 = sadd.s32 %s72, 1
    %p76 = scmp.eq.s32.totalorder %s12, 3
    %p77 = scmp.ne.s32.totalorder %s72, %s74
    %p78 = scmp.eq.s32.totalorder %s12, 0
    %p79 = por %p77, %p78
    %p80 = scmp.ne.s32.totalorder %s72, %s74
    %p81 = scmp.eq.s32.totalorder %s17, 3
    %p82 = por %p80, %p81
    %p83 = scmp.ne.s32.totalorder %s74, %s75
    %p84 = scmp.eq.s32.totalorder %s17, 0
    %p85 = por %p83, %p84
    %p86 = scmp.ne.s32.totalorder %s74, %s75
    %p87 = scmp.eq.s32.totalorder %s18, 3
    %p88 = por %p86, %p87
    %p90 = scmp.ne.s32.totalorder %s75, %s89
    %p91 = scmp.eq.s32.totalorder %s18, 0
    %p92 = por %p90, %p91
    %s94 = sadd.s32 %s93, 1
    %p97 = scmp.eq.s32.totalorder %s12, 3
    %p98 = scmp.ne.s32.totalorder %s93, %s95
    %p99 = scmp.eq.s32.totalorder %s12, 0
    %p100 = por %p98, %p99
    %p101 = scmp.ne.s32.totalorder %s93, %s95
    %p102 = scmp.eq.s32.totalorder %s17, 3
    %p103 = por %p101, %p102
    %p104 = scmp.ne.s32.totalorder %s95, %s96
    %p105 = scmp.eq.s32.totalorder %s17, 0
    %p106 = por %p104, %p105
    %p107 = scmp.ne.s32.totalorder %s95, %s96
    %p108 = scmp.eq.s32.totalorder %s18, 3
    %p109 = por %p107, %p108
    %p111 = scmp.ne.s32.totalorder %s96, %s110
    %p112 = scmp.eq.s32.totalorder %s18, 0
    %p113 = por %p111, %p112
    %s115 = sadd.s32 %s114, 1
    %p118 = scmp.eq.s32.totalorder %s12, 3
    %p119 = scmp.ne.s32.totalorder %s114, %s116
    %p120 = scmp.eq.s32.totalorder %s12, 0
    %p121 = por %p119, %p120
    %p122 = scmp.ne.s32.totalorder %s114, %s116
    %p123 = scmp.eq.s32.totalorder %s17, 3
    %p124 = por %p122, %p123
    %p125 = scmp.ne.s32.totalorder %s116, %s117
    %p126 = scmp.eq.s32.totalorder %s17, 0
    %p127 = por %p125, %p126
    %p128 = scmp.ne.s32.totalorder %s116, %s117
    %p129 = scmp.eq.s32.totalorder %s18, 3
    %p130 = por %p128, %p129
    %p132 = scmp.ne.s32.totalorder %s117, %s131
    %p133 = scmp.eq.s32.totalorder %s18, 0
    %p134 = por %p132, %p133
    %s136 = sadd.s32 %s135, 1
    %p139 = scmp.eq.s32.totalorder %s12, 3
    %p140 = scmp.ne.s32.totalorder %s135, %s137
    %p141 = scmp.eq.s32.totalorder %s12, 0
    %p142 = por %p140, %p141
    %p143 = scmp.ne.s32.totalorder %s135, %s137
    %p144 = scmp.eq.s32.totalorder %s17, 3
    %p145 = por %p143, %p144
    %p146 = scmp.ne.s32.totalorder %s137, %s138
    %p147 = scmp.eq.s32.totalorder %s17, 0
    %p148 = por %p146, %p147
    %p149 = scmp.ne.s32.totalorder %s137, %s138
    %p150 = scmp.eq.s32.totalorder %s18, 3
    %p151 = por %p149, %p150
    %p153 = scmp.ne.s32.totalorder %s138, %s152
    %p154 = scmp.eq.s32.totalorder %s18, 0
    %p155 = por %p153, %p154
    %s156 = ssub.s32 %s12, %s19
    %p157 = scmp.eq.s32.totalorder %s156, 0
    %s159 = sadd.s32 %s158, 1
    %s160 = scalar_select %p157, %s158, %s159
    %p163 = pneg %p157
    %p164 = scmp.eq.s32.totalorder %s12, 3
    %p165 = por %p163, %p164
    %p166 = scmp.ne.s32.totalorder %s158, %s161
    %p167 = scmp.eq.s32.totalorder %s12, 0
    %p168 = por %p166, %p167
    %p169 = scmp.ne.s32.totalorder %s158, %s161
    %p170 = scmp.eq.s32.totalorder %s17, 3
    %p171 = por %p169, %p170
    %p172 = scmp.ne.s32.totalorder %s161, %s162
    %p173 = scmp.eq.s32.totalorder %s17, 0
    %p174 = por %p172, %p173
    %p175 = scmp.ne.s32.totalorder %s161, %s162
    %p176 = scmp.eq.s32.totalorder %s18, 3
    %p177 = por %p175, %p176
    %p179 = scmp.ne.s32.totalorder %s162, %s178
    %p180 = scmp.eq.s32.totalorder %s18, 0
    %p181 = por %p179, %p180
    %p182 = scmp.le.s32.totalorder 1, %s12
    %p183 = scmp.lt.s32.totalorder %s12, 5
    %p184 = pnand %p182, %p183
    %p185 = pneg %p184
    // Predicated region
    $region9: #{residual_block_up.9} parent=5 // pred_check
      _
    $region10: #{residual_block_up.9} parent=5 // pred_check_branch
      %187 = sbr.rel (%p184) target = $region12
    $region11: #{residual_block_up.9} parent=5 // pred_region
      %s188 = ssub.s32 %s12, 1
      // Predicated region
      $region13: #{residual_block_up.9} parent=11 // pred_check
        %p189 = pneg %p85
      $region14: #{residual_block_up.9} parent=11 // pred_check_branch
        %191 = sbr.rel (%p189) target = $region16
      $region15: #{residual_block_up.9} parent=11 // pred_region
        _
      $region16: #{residual_block_up.9} parent=11 // pred_fallthru
        _
      // Predicated region
      $region17: #{residual_block_up.9} parent=11 // pred_check
        %p192 = pneg %p106
      $region18: #{residual_block_up.9} parent=11 // pred_check_branch
        %194 = sbr.rel (%p192) target = $region20
      $region19: #{residual_block_up.9} parent=11 // pred_region
        _
      $region20: #{residual_block_up.9} parent=11 // pred_fallthru
        _
      // Predicated region
      $region21: #{residual_block_up.9} parent=11 // pred_check
        %p195 = pneg %p127
      $region22: #{residual_block_up.9} parent=11 // pred_check_branch
        %197 = sbr.rel (%p195) target = $region24
      $region23: #{residual_block_up.9} parent=11 // pred_region
        _
      $region24: #{residual_block_up.9} parent=11 // pred_fallthru
        _
      // Predicated region
      $region25: #{residual_block_up.9} parent=11 // pred_check
        %p198 = pneg %p148
      $region26: #{residual_block_up.9} parent=11 // pred_check_branch
        %200 = sbr.rel (%p198) target = $region28
      $region27: #{residual_block_up.9} parent=11 // pred_region
        _
      $region28: #{residual_block_up.9} parent=11 // pred_fallthru
        _
    $region12: #{residual_block_up.9} parent=5 // pred_fallthru
      _
    %p201 = scmp.lt.s32.totalorder %s12, 4
    // Predicated region
    $region29: #{residual_block_up.9} parent=5 // pred_check
      %p202 = pneg %p201
    $region30: #{residual_block_up.9} parent=5 // pred_check_branch
      %204 = sbr.rel (%p202) target = $region32
    $region31: #{residual_block_up.9} parent=5 // pred_region
      // Predicated region
      $region33: #{residual_block_up.9} parent=31 // pred_check
        %p205 = pneg %p32
      $region34: #{residual_block_up.9} parent=31 // pred_check_branch
        %207 = sbr.rel (%p205) target = $region36
      $region35: #{residual_block_up.9} parent=31 // pred_region
        %s208 = smul.u32 16, %s12
        %p209 = scmp.lt.s32.totalorder %s208, 63
        %s210 = scalar_select %p209, %s208, 63
        %s211 = smul.addr %s210, 8
        %s212 = scalar_lea.vmem %s0, %s211
        %s213 = smul.u32 16, %s12
      $region36: #{residual_block_up.9} parent=31 // pred_fallthru
        _
      // Predicated region
      $region37: #{residual_block_up.9} parent=31 // pred_check
        %p214 = pneg %p58
      $region38: #{residual_block_up.9} parent=31 // pred_check_branch
        %216 = sbr.rel (%p214) target = $region40
      $region39: #{residual_block_up.9} parent=31 // pred_region
        %s217 = smul.u32 16, %s12
        %p218 = scmp.lt.s32.totalorder %s217, 63
        %s219 = scalar_select %p218, %s217, 63
        %s220 = smul.addr %s219, 8
        %s221 = scalar_lea.vmem %s1, %s220
        %s222 = smul.u32 16, %s12
      $region40: #{residual_block_up.9} parent=31 // pred_fallthru
        _
    $region32: #{residual_block_up.9} parent=5 // pred_fallthru
      _
    %p223 = scmp.le.s32.totalorder 1, %s12
    %p224 = scmp.lt.s32.totalorder %s12, 5
    %p225 = pnand %p223, %p224
    %p226 = pneg %p225
    // Predicated region
    $region41: #{residual_block_up.9} parent=5 // pred_check
      _
    $region42: #{residual_block_up.9} parent=5 // pred_check_branch
      %228 = sbr.rel (%p225) target = $region44
    $region43: #{residual_block_up.9} parent=5 // pred_region
      %s229 = ssub.s32 %s12, 1
      %s230 = smul.u32 16, %s17
      %p231 = scmp.lt.s32.totalorder %s230, 63
      %s232 = scalar_select %p231, %s230, 63
      %s233 = smul.addr %s232, 8
      %s234 = scalar_lea.vmem %s0, %s233
      %p235 = pneg %p38
      %p236 = pneg %p35
      %s237 = smul.u32 16, %s17
      %p238 = scmp.lt.s32.totalorder %s237, 63
      %s239 = scalar_select %p238, %s237, 63
      %s240 = smul.addr %s239, 8
      %s241 = scalar_lea.vmem %s1, %s240
      %p242 = pneg %p64
      %p243 = pneg %p61
      %p244 = pneg %p85
      %p245 = pneg %p82
      %p246 = pneg %p106
      %p247 = pneg %p103
      %p248 = pneg %p127
      %p249 = pneg %p124
      %p250 = pneg %p148
      %p251 = pneg %p145
      %p252 = pneg %p174
      %p253 = pneg %p171
      %s254 = smul.u32 16, %s17
      %p255 = scmp.lt.s32.totalorder %s254, 63
      %s256 = scalar_select %p255, %s254, 63
      %s257 = smul.addr %s256, 8
      %s258 = scalar_lea.vmem %s6, %s257
      %s259 = smul.u32 16, %s17
      %p260 = scmp.lt.s32.totalorder %s259, 63
      %s261 = scalar_select %p260, %s259, 63
      %s262 = smul.addr %s261, 8
      %s263 = scalar_lea.vmem %s0, %s262
      %s264 = smul.u32 16, %s17
      %s265 = smul.u32 16, %s17
      %p266 = scmp.lt.s32.totalorder %s265, 63
      %s267 = scalar_select %p266, %s265, 63
      %s268 = smul.addr %s267, 8
      %s269 = scalar_lea.vmem %s1, %s268
      %s270 = smul.u32 16, %s17
      %s271 = smul.u32 16, %s17
      %p272 = scmp.lt.s32.totalorder %s271, 63
      %s273 = scalar_select %p272, %s271, 63
      %s274 = smul.addr %s273, 8
      %s275 = scalar_lea.vmem %s6, %s274
      %s276 = smul.u32 16, %s17
      %v277 = vld [vmem:[%s263] sm:$0xff]
      %v278 = vld [vmem:[%s263 + $0x8] sm:$0xff]
      %v279 = vld [vmem:[%s263 + $0x10] sm:$0xff]
      %v280 = vld [vmem:[%s263 + $0x18] sm:$0xff]
      %v281 = vld [vmem:[%s263 + $0x20] sm:$0xff]
      %v282 = vld [vmem:[%s263 + $0x28] sm:$0xff]
      %v283 = vld [vmem:[%s263 + $0x30] sm:$0xff]
      %v284 = vld [vmem:[%s263 + $0x38] sm:$0xff]
      %v285 = vld [vmem:[%s263 + $0x40] sm:$0xff]
      %v286 = vld [vmem:[%s263 + $0x48] sm:$0xff]
      %v287 = vld [vmem:[%s263 + $0x50] sm:$0xff]
      %v288 = vld [vmem:[%s263 + $0x58] sm:$0xff]
      %v289 = vld [vmem:[%s263 + $0x60] sm:$0xff]
      %v290 = vld [vmem:[%s263 + $0x68] sm:$0xff]
      %v291 = vld [vmem:[%s263 + $0x70] sm:$0xff]
      %v292 = vld [vmem:[%s263 + $0x78] sm:$0xff]
      %v293 = vld [vmem:[%s2] sm:$0x1]
      %v295 = vlaneseq
      %v296 = vshrl.u32 %v295, 7
      %v297 = vsub.s32 0, %v296
      %v298 = vrot.slane %v293, %v297
      %v300 = vmul.f32 %v277, %v298
      %v301 = vmul.f32 %v278, %v298
      %v302 = vmul.f32 %v279, %v298
      %v303 = vmul.f32 %v280, %v298
      %v304 = vmul.f32 %v281, %v298
      %v305 = vmul.f32 %v282, %v298
      %v306 = vmul.f32 %v283, %v298
      %v307 = vmul.f32 %v284, %v298
      %v308 = vmul.f32 %v285, %v298
      %v309 = vmul.f32 %v286, %v298
      %v310 = vmul.f32 %v287, %v298
      %v311 = vmul.f32 %v288, %v298
      %v312 = vmul.f32 %v289, %v298
      %v313 = vmul.f32 %v290, %v298
      %v314 = vmul.f32 %v291, %v298
      %v315 = vmul.f32 %v292, %v298
      %v316 = vld [vmem:[%s3] sm:$0x1]
      %v318 = vlaneseq
      %v319 = vshrl.u32 %v318, 7
      %v320 = vsub.s32 0, %v319
      %v321 = vrot.slane %v316, %v320
      %v323 = vadd.f32 %v300, %v321
      %v324 = vadd.f32 %v301, %v321
      %v325 = vadd.f32 %v302, %v321
      %v326 = vadd.f32 %v303, %v321
      %v327 = vadd.f32 %v304, %v321
      %v328 = vadd.f32 %v305, %v321
      %v329 = vadd.f32 %v306, %v321
      %v330 = vadd.f32 %v307, %v321
      %v331 = vadd.f32 %v308, %v321
      %v332 = vadd.f32 %v309, %v321
      %v333 = vadd.f32 %v310, %v321
      %v334 = vadd.f32 %v311, %v321
      %v335 = vadd.f32 %v312, %v321
      %v336 = vadd.f32 %v313, %v321
      %v337 = vadd.f32 %v314, %v321
      %v338 = vadd.f32 %v315, %v321
      %v339 = vmax.f32 %v323, 0.0
      %v340 = vmax.f32 %v324, 0.0
      %v341 = vmax.f32 %v325, 0.0
      %v342 = vmax.f32 %v326, 0.0
      %v343 = vmax.f32 %v327, 0.0
      %v344 = vmax.f32 %v328, 0.0
      %v345 = vmax.f32 %v329, 0.0
      %v346 = vmax.f32 %v330, 0.0
      %v347 = vmax.f32 %v331, 0.0
      %v348 = vmax.f32 %v332, 0.0
      %v349 = vmax.f32 %v333, 0.0
      %v350 = vmax.f32 %v334, 0.0
      %v351 = vmax.f32 %v335, 0.0
      %v352 = vmax.f32 %v336, 0.0
      %v353 = vmax.f32 %v337, 0.0
      %v354 = vmax.f32 %v338, 0.0
      %v355 = vld [vmem:[%s4] sm:$0xff]
      %v356 = vld [vmem:[%s4 + $0x8] sm:$0xff]
      %v357 = vld [vmem:[%s4 + $0x10] sm:$0xff]
      %v358 = vld [vmem:[%s4 + $0x18] sm:$0xff]
      %v359 = vld [vmem:[%s269] sm:$0xff]
      %v360 = vld [vmem:[%s269 + $0x8] sm:$0xff]
      %v361 = vld [vmem:[%s269 + $0x10] sm:$0xff]
      %v362 = vld [vmem:[%s269 + $0x18] sm:$0xff]
      %v363 = vld [vmem:[%s269 + $0x20] sm:$0xff]
      %v364 = vld [vmem:[%s269 + $0x28] sm:$0xff]
      %v365 = vld [vmem:[%s269 + $0x30] sm:$0xff]
      %v366 = vld [vmem:[%s269 + $0x38] sm:$0xff]
      %v367 = vld [vmem:[%s269 + $0x40] sm:$0xff]
      %v368 = vld [vmem:[%s269 + $0x48] sm:$0xff]
      %v369 = vld [vmem:[%s269 + $0x50] sm:$0xff]
      %v370 = vld [vmem:[%s269 + $0x58] sm:$0xff]
      %v371 = vld [vmem:[%s269 + $0x60] sm:$0xff]
      %v372 = vld [vmem:[%s269 + $0x68] sm:$0xff]
      %v373 = vld [vmem:[%s269 + $0x70] sm:$0xff]
      %v374 = vld [vmem:[%s269 + $0x78] sm:$0xff]
      %v375 = vld [vmem:[%s5] sm:$0xff]
      %v376 = vld [vmem:[%s5 + $0x8] sm:$0xff]
      %v377 = vld [vmem:[%s5 + $0x10] sm:$0xff]
      %v378 = vld [vmem:[%s5 + $0x18] sm:$0xff]
      %v379 = vld [vmem:[%s5 + $0x20] sm:$0xf]
      %vm380 = vcmask 293888
      %v382 = vsel %vm380, %v359, 0
      %v385 = vsel %vm380, %v360, 0
      %v388 = vsel %vm380, %v361, 0
      %v391 = vsel %vm380, %v362, 0
      %v394 = vsel %vm380, %v363, 0
      %v397 = vsel %vm380, %v364, 0
      %v400 = vsel %vm380, %v365, 0
      %v403 = vsel %vm380, %v366, 0
      %v406 = vsel %vm380, %v367, 0
      %v409 = vsel %vm380, %v368, 0
      %v412 = vsel %vm380, %v369, 0
      %v415 = vsel %vm380, %v370, 0
      %v418 = vsel %vm380, %v371, 0
      %v421 = vsel %vm380, %v372, 0
      %v424 = vsel %vm380, %v373, 0
      %v427 = vsel %vm380, %v374, 0
      %vm429 = vcmask 1043456
      %v431 = vsel %vm429, %v379, 0
      %433 = vmatprep.subr.mxu0 0.0
      %434 = vmatpush1.msra.mxu0 %v375
      %435 = vmatprep.subr.mxu0 0.0
      %436 = vmatpush1.msra.mxu0 %v376
      %437 = vmatprep.subr.mxu0 0.0
      %438 = vmatpush1.msra.mxu0 %v377
      %439 = vmatprep.subr.mxu0 0.0
      %440 = vmatpush1.msra.mxu0 %v378
      %441 = vmatprep.subr.mxu0 0.0
      %442 = vmatpush1.msra.mxu0 %v431
      %443 = vmatprep.subr.mxu0 0.0
      %444 = vmatpush1.msra.mxu0 0.0
      %445 = vmatprep.subr.mxu0 0.0
      %446 = vmatpush1.msra.mxu0 0.0
      %447 = vmatprep.subr.mxu0 0.0
      %448 = vmatpush1.msra.mxu0 0.0
      %449 = vmatprep.subr.mxu0 0.0
      %450 = vmatpush1.msra.mxu0 0.0
      %451 = vmatprep.subr.mxu0 0.0
      %452 = vmatpush1.msra.mxu0 0.0
      %453 = vmatprep.subr.mxu0 0.0
      %454 = vmatpush1.msra.mxu0 0.0
      %455 = vmatprep.subr.mxu0 0.0
      %456 = vmatpush1.msra.mxu0 0.0
      %457 = vmatprep.subr.mxu0 0.0
      %458 = vmatpush1.msra.mxu0 0.0
      %459 = vmatprep.subr.mxu0 0.0
      %460 = vmatpush1.msra.mxu0 0.0
      %461 = vmatprep.subr.mxu0 0.0
      %462 = vmatpush1.msra.mxu0 0.0
      %463 = vmatprep.subr.mxu0 0.0
      %464 = vmatpush1.msra.mxu0 0.0
      %465 = vmatprep.subr.mxu0 0.0
      %466 = vmatpush1.msra.mxu0 0.0
      %467 = vmatprep.subr.mxu0 0.0
      %468 = vmatpush1.msra.mxu0 0.0
      %469 = vmatprep.subr.mxu0 0.0
      %470 = vmatpush1.msra.mxu0 0.0
      %471 = vmatprep.subr.mxu0 0.0
      %472 = vmatpush1.msra.mxu0 0.0
      %473 = vmatprep.subr.mxu0 0.0
      %474 = vmatpush1.msra.mxu0 0.0
      %475 = vmatprep.subr.mxu0 0.0
      %476 = vmatpush1.msra.mxu0 0.0
      %477 = vmatprep.subr.mxu0 0.0
      %478 = vmatpush1.msra.mxu0 0.0
      %479 = vmatprep.subr.mxu0 0.0
      %480 = vmatpush1.msra.mxu0 0.0
      %481 = vmatprep.subr.mxu0 0.0
      %482 = vmatpush1.msra.mxu0 0.0
      %483 = vmatprep.subr.mxu0 0.0
      %484 = vmatpush1.msra.mxu0 0.0
      %485 = vmatprep.subr.mxu0 0.0
      %486 = vmatpush1.msra.mxu0 0.0
      %487 = vmatprep.subr.mxu0 0.0
      %488 = vmatpush1.msra.mxu0 0.0
      %489 = vmatprep.subr.mxu0 0.0
      %490 = vmatpush1.msra.mxu0 0.0
      %491 = vmatprep.subr.mxu0 0.0
      %492 = vmatpush1.msra.mxu0 0.0
      %493 = vmatprep.subr.mxu0 0.0
      %494 = vmatpush1.msra.mxu0 0.0
      %495 = vmatprep.subr.mxu0 0.0
      %496 = vmatpush1.msra.mxu0 0.0
      %497 = vmatprep.mubr.f32.mxu0 0.0
      %498 = vmatmul.mubr.f32.gmra.mrb[0].mxu0 %v382
      %v499 = vpop.f32.mrb[0].mxu0
      %v500 = vadd.f32 0.0, %v499
      %v501 = vpop.f32.mrb[0].mxu0
      %502 = vmatprep.mubr.f32.mxu0 0.0
      %503 = vmatmul.mubr.f32.gmra.mrb[0].mxu0 %v385
      %v504 = vpop.f32.mrb[0].mxu0
      %v505 = vadd.f32 0.0, %v504
      %v506 = vpop.f32.mrb[0].mxu0
      %507 = vmatprep.mubr.f32.mxu0 0.0
      %508 = vmatmul.mubr.f32.gmra.mrb[0].mxu0 %v388
      %v509 = vpop.f32.mrb[0].mxu0
      %v510 = vadd.f32 0.0, %v509
      %v511 = vpop.f32.mrb[0].mxu0
      %512 = vmatprep.mubr.f32.mxu0 0.0
      %513 = vmatmul.mubr.f32.gmra.mrb[0].mxu0 %v391
      %v514 = vpop.f32.mrb[0].mxu0
      %v515 = vadd.f32 0.0, %v514
      %v516 = vpop.f32.mrb[0].mxu0
      %517 = vmatprep.mubr.f32.mxu0 0.0
      %518 = vmatmul.mubr.f32.gmra.mrb[0].mxu0 %v394
      %v519 = vpop.f32.mrb[0].mxu0
      %v520 = vadd.f32 0.0, %v519
      %v521 = vpop.f32.mrb[0].mxu0
      %522 = vmatprep.mubr.f32.mxu0 0.0
      %523 = vmatmul.mubr.f32.gmra.mrb[0].mxu0 %v397
      %v524 = vpop.f32.mrb[0].mxu0
      %v525 = vadd.f32 0.0, %v524
      %v526 = vpop.f32.mrb[0].mxu0
      %527 = vmatprep.mubr.f32.mxu0 0.0
      %528 = vmatmul.mubr.f32.gmra.mrb[0].mxu0 %v400
      %v529 = vpop.f32.mrb[0].mxu0
      %v530 = vadd.f32 0.0, %v529
      %v531 = vpop.f32.mrb[0].mxu0
      %532 = vmatprep.mubr.f32.mxu0 0.0
      %533 = vmatmul.mubr.f32.gmra.mrb[0].mxu0 %v403
      %v534 = vpop.f32.mrb[0].mxu0
      %v535 = vadd.f32 0.0, %v534
      %v536 = vpop.f32.mrb[0].mxu0
      %537 = vmatprep.mubr.f32.mxu0 0.0
      %538 = vmatmul.mubr.f32.gmra.mrb[0].mxu0 %v406
      %v539 = vpop.f32.mrb[0].mxu0
      %v540 = vadd.f32 0.0, %v539
      %v541 = vpop.f32.mrb[0].mxu0
      %542 = vmatprep.mubr.f32.mxu0 0.0
      %543 = vmatmul.mubr.f32.gmra.mrb[0].mxu0 %v409
      %v544 = vpop.f32.mrb[0].mxu0
      %v545 = vadd.f32 0.0, %v544
      %v546 = vpop.f32.mrb[0].mxu0
      %547 = vmatprep.mubr.f32.mxu0 0.0
      %548 = vmatmul.mubr.f32.gmra.mrb[0].mxu0 %v412
      %v549 = vpop.f32.mrb[0].mxu0
      %v550 = vadd.f32 0.0, %v549
      %v551 = vpop.f32.mrb[0].mxu0
      %552 = vmatprep.mubr.f32.mxu0 0.0
      %553 = vmatmul.mubr.f32.gmra.mrb[0].mxu0 %v415
      %v554 = vpop.f32.mrb[0].mxu0
      %v555 = vadd.f32 0.0, %v554
      %v556 = vpop.f32.mrb[0].mxu0
      %557 = vmatprep.mubr.f32.mxu0 0.0
      %558 = vmatmul.mubr.f32.gmra.mrb[0].mxu0 %v418
      %v559 = vpop.f32.mrb[0].mxu0
      %v560 = vadd.f32 0.0, %v559
      %v561 = vpop.f32.mrb[0].mxu0
      %562 = vmatprep.mubr.f32.mxu0 0.0
      %563 = vmatmul.mubr.f32.gmra.mrb[0].mxu0 %v421
      %v564 = vpop.f32.mrb[0].mxu0
      %v565 = vadd.f32 0.0, %v564
      %v566 = vpop.f32.mrb[0].mxu0
      %567 = vmatprep.mubr.f32.mxu0 0.0
      %568 = vmatmul.mubr.f32.gmra.mrb[0].mxu0 %v424
      %v569 = vpop.f32.mrb[0].mxu0
      %v570 = vadd.f32 0.0, %v569
      %v571 = vpop.f32.mrb[0].mxu0
      %572 = vmatprep.mubr.f32.mxu0 0.0
      %573 = vmatmul.mubr.f32.gmra.mrb[0].mxu0 %v427
      %v574 = vpop.f32.mrb[0].mxu0
      %v575 = vadd.f32 0.0, %v574
      %v576 = vpop.f32.mrb[0].mxu0
      %577 = vdwg.mxu0
      %vm578 = vcmask 261120
      %v580 = vsel %vm578, %v339, 0
      %v583 = vsel %vm578, %v340, 0
      %v586 = vsel %vm578, %v341, 0
      %v589 = vsel %vm578, %v342, 0
      %v592 = vsel %vm578, %v343, 0
      %v595 = vsel %vm578, %v344, 0
      %v598 = vsel %vm578, %v345, 0
      %v601 = vsel %vm578, %v346, 0
      %v604 = vsel %vm578, %v347, 0
      %v607 = vsel %vm578, %v348, 0
      %v610 = vsel %vm578, %v349, 0
      %v613 = vsel %vm578, %v350, 0
      %v616 = vsel %vm578, %v351, 0
      %v619 = vsel %vm578, %v352, 0
      %v622 = vsel %vm578, %v353, 0
      %v625 = vsel %vm578, %v354, 0
      %627 = vmatprep.subr.mxu0 0.0
      %628 = vmatpush1.msra.mxu0 %v355
      %629 = vmatprep.subr.mxu0 0.0
      %630 = vmatpush1.msra.mxu0 %v356
      %631 = vmatprep.subr.mxu0 0.0
      %632 = vmatpush1.msra.mxu0 %v357
      %633 = vmatprep.subr.mxu0 0.0
      %634 = vmatpush1.msra.mxu0 %v358
      %635 = vmatprep.subr.mxu0 0.0
      %636 = vmatpush1.msra.mxu0 0.0
      %637 = vmatprep.subr.mxu0 0.0
      %638 = vmatpush1.msra.mxu0 0.0
      %639 = vmatprep.subr.mxu0 0.0
      %640 = vmatpush1.msra.mxu0 0.0
      %641 = vmatprep.subr.mxu0 0.0
      %642 = vmatpush1.msra.mxu0 0.0
      %643 = vmatprep.subr.mxu0 0.0
      %644 = vmatpush1.msra.mxu0 0.0
      %645 = vmatprep.subr.mxu0 0.0
      %646 = vmatpush1.msra.mxu0 0.0
      %647 = vmatprep.subr.mxu0 0.0
      %648 = vmatpush1.msra.mxu0 0.0
      %649 = vmatprep.subr.mxu0 0.0
      %650 = vmatpush1.msra.mxu0 0.0
      %651 = vmatprep.subr.mxu0 0.0
      %652 = vmatpush1.msra.mxu0 0.0
      %653 = vmatprep.subr.mxu0 0.0
      %654 = vmatpush1.msra.mxu0 0.0
      %655 = vmatprep.subr.mxu0 0.0
      %656 = vmatpush1.msra.mxu0 0.0
      %657 = vmatprep.subr.mxu0 0.0
      %658 = vmatpush1.msra.mxu0 0.0
      %659 = vmatprep.subr.mxu0 0.0
      %660 = vmatpush1.msra.mxu0 0.0
      %661 = vmatprep.subr.mxu0 0.0
      %662 = vmatpush1.msra.mxu0 0.0
      %663 = vmatprep.subr.mxu0 0.0
      %664 = vmatpush1.msra.mxu0 0.0
      %665 = vmatprep.subr.mxu0 0.0
      %666 = vmatpush1.msra.mxu0 0.0
      %667 = vmatprep.subr.mxu0 0.0
      %668 = vmatpush1.msra.mxu0 0.0
      %669 = vmatprep.subr.mxu0 0.0
      %670 = vmatpush1.msra.mxu0 0.0
      %671 = vmatprep.subr.mxu0 0.0
      %672 = vmatpush1.msra.mxu0 0.0
      %673 = vmatprep.subr.mxu0 0.0
      %674 = vmatpush1.msra.mxu0 0.0
      %675 = vmatprep.subr.mxu0 0.0
      %676 = vmatpush1.msra.mxu0 0.0
      %677 = vmatprep.subr.mxu0 0.0
      %678 = vmatpush1.msra.mxu0 0.0
      %679 = vmatprep.subr.mxu0 0.0
      %680 = vmatpush1.msra.mxu0 0.0
      %681 = vmatprep.subr.mxu0 0.0
      %682 = vmatpush1.msra.mxu0 0.0
      %683 = vmatprep.subr.mxu0 0.0
      %684 = vmatpush1.msra.mxu0 0.0
      %685 = vmatprep.subr.mxu0 0.0
      %686 = vmatpush1.msra.mxu0 0.0
      %687 = vmatprep.subr.mxu0 0.0
      %688 = vmatpush1.msra.mxu0 0.0
      %689 = vmatprep.subr.mxu0 0.0
      %690 = vmatpush1.msra.mxu0 0.0
      %691 = vmatprep.mubr.f32.mxu0 0.0
      %692 = vmatmul.mubr.f32.gmra.mrb[0].mxu0 %v580
      %v693 = vpop.f32.mrb[0].mxu0
      %v694 = vadd.f32 %v500, %v693
      %v695 = vpop.f32.mrb[0].mxu0
      %696 = vmatprep.mubr.f32.mxu0 0.0
      %697 = vmatmul.mubr.f32.gmra.mrb[0].mxu0 %v583
      %v698 = vpop.f32.mrb[0].mxu0
      %v699 = vadd.f32 %v505, %v698
      %v700 = vpop.f32.mrb[0].mxu0
      %701 = vmatprep.mubr.f32.mxu0 0.0
      %702 = vmatmul.mubr.f32.gmra.mrb[0].mxu0 %v586
      %v703 = vpop.f32.mrb[0].mxu0
      %v704 = vadd.f32 %v510, %v703
      %v705 = vpop.f32.mrb[0].mxu0
      %706 = vmatprep.mubr.f32.mxu0 0.0
      %707 = vmatmul.mubr.f32.gmra.mrb[0].mxu0 %v589
      %v708 = vpop.f32.mrb[0].mxu0
      %v709 = vadd.f32 %v515, %v708
      %v710 = vpop.f32.mrb[0].mxu0
      %711 = vmatprep.mubr.f32.mxu0 0.0
      %712 = vmatmul.mubr.f32.gmra.mrb[0].mxu0 %v592
      %v713 = vpop.f32.mrb[0].mxu0
      %v714 = vadd.f32 %v520, %v713
      %v715 = vpop.f32.mrb[0].mxu0
      %716 = vmatprep.mubr.f32.mxu0 0.0
      %717 = vmatmul.mubr.f32.gmra.mrb[0].mxu0 %v595
      %v718 = vpop.f32.mrb[0].mxu0
      %v719 = vadd.f32 %v525, %v718
      %v720 = vpop.f32.mrb[0].mxu0
      %721 = vmatprep.mubr.f32.mxu0 0.0
      %722 = vmatmul.mubr.f32.gmra.mrb[0].mxu0 %v598
      %v723 = vpop.f32.mrb[0].mxu0
      %v724 = vadd.f32 %v530, %v723
      %v725 = vpop.f32.mrb[0].mxu0
      %726 = vmatprep.mubr.f32.mxu0 0.0
      %727 = vmatmul.mubr.f32.gmra.mrb[0].mxu0 %v601
      %v728 = vpop.f32.mrb[0].mxu0
      %v729 = vadd.f32 %v535, %v728
      %v730 = vpop.f32.mrb[0].mxu0
      %731 = vmatprep.mubr.f32.mxu0 0.0
      %732 = vmatmul.mubr.f32.gmra.mrb[0].mxu0 %v604
      %v733 = vpop.f32.mrb[0].mxu0
      %v734 = vadd.f32 %v540, %v733
      %v735 = vpop.f32.mrb[0].mxu0
      %736 = vmatprep.mubr.f32.mxu0 0.0
      %737 = vmatmul.mubr.f32.gmra.mrb[0].mxu0 %v607
      %v738 = vpop.f32.mrb[0].mxu0
      %v739 = vadd.f32 %v545, %v738
      %v740 = vpop.f32.mrb[0].mxu0
      %741 = vmatprep.mubr.f32.mxu0 0.0
      %742 = vmatmul.mubr.f32.gmra.mrb[0].mxu0 %v610
      %v743 = vpop.f32.mrb[0].mxu0
      %v744 = vadd.f32 %v550, %v743
      %v745 = vpop.f32.mrb[0].mxu0
      %746 = vmatprep.mubr.f32.mxu0 0.0
      %747 = vmatmul.mubr.f32.gmra.mrb[0].mxu0 %v613
      %v748 = vpop.f32.mrb[0].mxu0
      %v749 = vadd.f32 %v555, %v748
      %v750 = vpop.f32.mrb[0].mxu0
      %751 = vmatprep.mubr.f32.mxu0 0.0
      %752 = vmatmul.mubr.f32.gmra.mrb[0].mxu0 %v616
      %v753 = vpop.f32.mrb[0].mxu0
      %v754 = vadd.f32 %v560, %v753
      %v755 = vpop.f32.mrb[0].mxu0
      %756 = vmatprep.mubr.f32.mxu0 0.0
      %757 = vmatmul.mubr.f32.gmra.mrb[0].mxu0 %v619
      %v758 = vpop.f32.mrb[0].mxu0
      %v759 = vadd.f32 %v565, %v758
      %v760 = vpop.f32.mrb[0].mxu0
      %761 = vmatprep.mubr.f32.mxu0 0.0
      %762 = vmatmul.mubr.f32.gmra.mrb[0].mxu0 %v622
      %v763 = vpop.f32.mrb[0].mxu0
      %v764 = vadd.f32 %v570, %v763
      %v765 = vpop.f32.mrb[0].mxu0
      %766 = vmatprep.mubr.f32.mxu0 0.0
      %767 = vmatmul.mubr.f32.gmra.mrb[0].mxu0 %v625
      %v768 = vpop.f32.mrb[0].mxu0
      %v769 = vadd.f32 %v575, %v768
      %v770 = vpop.f32.mrb[0].mxu0
      %771 = vdwg.mxu0
      %vm772 = vcmask 130048
      %773 = vst.msk [vmem:[%s275] sm:$0xff] %vm772, %v694
      %774 = vst.msk [vmem:[%s275 + $0x8] sm:$0xff] %vm772, %v699
      %775 = vst.msk [vmem:[%s275 + $0x10] sm:$0xff] %vm772, %v704
      %776 = vst.msk [vmem:[%s275 + $0x18] sm:$0xff] %vm772, %v709
      %777 = vst.msk [vmem:[%s275 + $0x20] sm:$0xff] %vm772, %v714
      %778 = vst.msk [vmem:[%s275 + $0x28] sm:$0xff] %vm772, %v719
      %779 = vst.msk [vmem:[%s275 + $0x30] sm:$0xff] %vm772, %v724
      %780 = vst.msk [vmem:[%s275 + $0x38] sm:$0xff] %vm772, %v729
      %781 = vst.msk [vmem:[%s275 + $0x40] sm:$0xff] %vm772, %v734
      %782 = vst.msk [vmem:[%s275 + $0x48] sm:$0xff] %vm772, %v739
      %783 = vst.msk [vmem:[%s275 + $0x50] sm:$0xff] %vm772, %v744
      %784 = vst.msk [vmem:[%s275 + $0x58] sm:$0xff] %vm772, %v749
      %785 = vst.msk [vmem:[%s275 + $0x60] sm:$0xff] %vm772, %v754
      %786 = vst.msk [vmem:[%s275 + $0x68] sm:$0xff] %vm772, %v759
      %787 = vst.msk [vmem:[%s275 + $0x70] sm:$0xff] %vm772, %v764
      %788 = vst.msk [vmem:[%s275 + $0x78] sm:$0xff] %vm772, %v769
      %s789 = smul.u32 16, %s17
      %p790 = scmp.lt.s32.totalorder %s789, 63
      %s791 = scalar_select %p790, %s789, 63
      %s792 = smul.addr %s791, 8
      %s793 = scalar_lea.vmem %s6, %s792
      // Predicated region
      $region45: #{residual_block_up.9} parent=43 // pred_check
        %p794 = pneg %p171
      $region46: #{residual_block_up.9} parent=43 // pred_check_branch
        %796 = sbr.rel (%p794) target = $region48
      $region47: #{residual_block_up.9} parent=43 // pred_region
        %s797 = smul.u32 16, %s17
      $region48: #{residual_block_up.9} parent=43 // pred_fallthru
        _
    $region44: #{residual_block_up.9} parent=5 // pred_fallthru
      _
    %p798 = scmp.le.s32.totalorder 2, %s12
    // Predicated region
    $region49: #{residual_block_up.9} parent=5 // pred_check
      %p799 = pneg %p798
    $region50: #{residual_block_up.9} parent=5 // pred_check_branch
      %801 = sbr.rel (%p799) target = $region52
    $region51: #{residual_block_up.9} parent=5 // pred_region
      %s802 = ssub.s32 %s12, 2
      // Predicated region
      $region53: #{residual_block_up.9} parent=51 // pred_check
        %p803 = pneg %p177
      $region54: #{residual_block_up.9} parent=51 // pred_check_branch
        %805 = sbr.rel (%p803) target = $region56
      $region55: #{residual_block_up.9} parent=51 // pred_region
        %s806 = smul.u32 16, %s18
        %p807 = scmp.lt.s32.totalorder %s806, 63
        %s808 = scalar_select %p807, %s806, 63
        %s809 = smul.addr %s808, 8
        %s810 = scalar_lea.vmem %s6, %s809
      $region56: #{residual_block_up.9} parent=51 // pred_fallthru
        _
    $region52: #{residual_block_up.9} parent=5 // pred_fallthru
      _
  $region6: #{residual_block_up.9} parent=0 // loop_footer
    %s16 = sadd.s32 1, %s12
  $region7: #{residual_block_up.9} parent=0 // loop_footer_branch
    %11 = sbr.rel target = $region3
  $region8: #{residual_block_up.9} parent=0 // loop_exit
    _

</llo_original>
